<compile_context>
chip_gen: v5e
topology: v5e:2x2
jax: 0.10.0
libtpu: 0.0.40
codegen_flags: <defaults>
</compile_context>

<pallas_src>
import jax
import jax.numpy as jnp
from jax.experimental import pallas as pl
from jax.experimental.pallas import tpu as pltpu

K = 20       # kernel_size of every conv / conv-transpose in the module
HMAX = 32    # max hidden width (smooth branch); data branch (4) is zero-padded
CMID = 64    # middle channel count of both branches


def _rot(x, shift):
    """Lane rotation with jnp.roll semantics: out[..., j] = x[..., (j - shift) % n].

    Implemented as two static lane slices + a lane concat (guaranteed Mosaic
    lowering, same data movement as a native rotate at these sizes).
    """
    n = x.shape[-1]
    s = shift % n
    if s == 0:
        return x
    return jnp.concatenate([x[..., n - s:], x[..., :n - s]], axis=-1)


# ----------------------------------------------------------------------------
# Fused Pallas kernel: one full 4-layer branch per grid step, all in VMEM.
# Activations are (channels, B*L) with sample b at lane offset b*L.
# ----------------------------------------------------------------------------
def _autoencoder_branch_kernel(x_ref, mask_ref, w1_ref, b1_ref, w2_ref, b2_ref,
                               w3_ref, b3_ref, w4_ref, b4_ref, o_ref):
    x = x_ref[0]                       # (1, BL) f32, lane-packed samples
    BL = x.shape[-1]
    masks = mask_ref[...]              # (2, BL) f32
    mask2 = masks[0:1, :]              # valid lanes after layer 2 (t < L2)
    mask3 = masks[1:2, :]              # valid lanes after layer 3 (t < L3)

    w1t = w1_ref[0]                    # (HMAX, K)   f32
    b1c = b1_ref[0]                    # (HMAX, 1)   f32
    b2c = b2_ref[0]                    # (CMID, 1)   f32
    b3c = b3_ref[0]                    # (HMAX, 1)   f32
    w4t = w4_ref[0]                    # (HMAX, K)   f32
    b4 = b4_ref[0]                     # (1, 1)      f32

    # -- layer 1: Conv1d(1, H, K) + ReLU — VPU broadcast FMAs (Cin == 1) -----
    # h1[c, j] = sum_k w1[c, k] * x[0, j + k]
    h1 = jnp.zeros((HMAX, BL), jnp.float32)
    for k in range(K):
        h1 = h1 + w1t[:, k:k + 1] * _rot(x, -k)
    h1 = jnp.maximum(h1 + b1c, 0.0)                       # (HMAX, BL)
    h1b = h1.astype(jnp.bfloat16)

    # -- layer 2: Conv1d(H, 64, K) + ReLU — per-tap bf16 MXU matmuls ---------
    # h2[o, j] = sum_k sum_c W2_k[o, c] * h1[c, j + k]
    acc2 = jnp.zeros((CMID, BL), jnp.float32)
    for k in range(K):
        acc2 = acc2 + jnp.dot(w2_ref[0, k], _rot(h1b, -k),
                              preferred_element_type=jnp.float32)
    h2 = jnp.maximum(acc2 + b2c, 0.0) * mask2             # zero inter-sample lanes
    h2b = h2.astype(jnp.bfloat16)

    # -- layer 3: ConvTranspose1d(64, H, K) + ReLU — per-tap bf16 MXU matmuls
    # h3[o, j] = sum_k sum_c W3_k[o, c] * h2[c, j - k]   (W3_k = weight[:, :, k].T)
    acc3 = jnp.zeros((HMAX, BL), jnp.float32)
    for k in range(K):
        acc3 = acc3 + jnp.dot(w3_ref[0, k], _rot(h2b, k),
                              preferred_element_type=jnp.float32)
    h3 = jnp.maximum(acc3 + b3c, 0.0) * mask3             # zero inter-sample lanes

    # -- layer 4: ConvTranspose1d(H, 1, K) — VPU FMAs + sublane reduce -------
    # out[0, j] = sum_k sum_c w4[c, k] * h3[c, j - k]
    acc4 = jnp.zeros((HMAX, BL), jnp.float32)
    for k in range(K):
        acc4 = acc4 + w4t[:, k:k + 1] * _rot(h3, k)
    o_ref[0] = jnp.sum(acc4, axis=0, keepdims=True) + b4  # (1, BL) lane-dense


# ----------------------------------------------------------------------------
# Host wrapper: pack samples along lanes, build validity masks, one pallas_call.
# ----------------------------------------------------------------------------
@jax.jit
def model_forward(x, packed):
    """x: (B, 2, L) float32 -> (B, 2, L) float32."""
    W1T, B1, W2, B2, W3, B3, W4T, B4 = packed
    Bsz, nchan, L = x.shape
    assert nchan == 2
    L2 = L - 2 * (K - 1)      # length after the two valid convs
    L3 = L - (K - 1)          # length after the first conv-transpose
    assert L2 >= 1, "L must be at least 39 for two valid k=20 convolutions"
    BL = Bsz * L

    # (2, 1, B*L): branch leading, all samples lane-packed at stride L.
    x_p = jnp.transpose(x, (1, 0, 2)).reshape(2, 1, BL)

    # Per-stage lane-validity masks (shared by both branches).
    t = jnp.arange(L)
    m2 = jnp.tile((t < L2).astype(jnp.float32), Bsz)
    m3 = jnp.tile((t < L3).astype(jnp.float32), Bsz)
    masks = jnp.stack([m2, m3], axis=0)                   # (2, BL)

    args = (x_p, masks, W1T, B1, W2, B2, W3, B3, W4T, B4)

    def branch_spec(a):
        nd = a.ndim
        return pl.BlockSpec((1,) + tuple(a.shape[1:]),
                            lambda g, _nd=nd: (g,) + (0,) * (_nd - 1))

    in_specs = [branch_spec(x_p),
                pl.BlockSpec(masks.shape, lambda g: (0, 0)),
                branch_spec(W1T), branch_spec(B1),
                branch_spec(W2), branch_spec(B2),
                branch_spec(W3), branch_spec(B3),
                branch_spec(W4T), branch_spec(B4)]

    out = pl.pallas_call(
        _autoencoder_branch_kernel,
        out_shape=jax.ShapeDtypeStruct((2, 1, BL), jnp.float32),
        grid=(2,),
        in_specs=in_specs,
        out_specs=pl.BlockSpec((1, 1, BL), lambda g: (g, 0, 0)),
        compiler_params=pltpu.CompilerParams(
            dimension_semantics=("parallel",)),
    )(*args)

    # (2, 1, B*L) -> (B, 2, L)
    return jnp.transpose(out.reshape(2, Bsz, L), (1, 0, 2))


# ----------------------------------------------------------------------------
# Deterministic parameter init (PyTorch layouts; synthetic values)
# ----------------------------------------------------------------------------
def _init_conv(key, cin, cout, k):
    bound = 1.0 / float(jnp.sqrt(cin * k))
    kw, kb = jax.random.split(key)
    w = jax.random.uniform(kw, (cout, cin, k), jnp.float32, -bound, bound)
    b = jax.random.uniform(kb, (cout,), jnp.float32, -bound, bound)
    return w, b


def _init_convT(key, cin, cout, k):
    bound = 1.0 / float(jnp.sqrt(cin * k))
    kw, kb = jax.random.split(key)
    w = jax.random.uniform(kw, (cin, cout, k), jnp.float32, -bound, bound)
    b = jax.random.uniform(kb, (cout,), jnp.float32, -bound, bound)
    return w, b


def init_branch_params(key, hidden):
    ks = jax.random.split(key, 4)
    c1_w, c1_b = _init_conv(ks[0], 1, hidden, K)        # Conv1d(1, H, 20)
    c2_w, c2_b = _init_conv(ks[1], hidden, CMID, K)     # Conv1d(H, 64, 20)
    d1_w, d1_b = _init_convT(ks[2], CMID, hidden, K)    # ConvT(64, H, 20)
    d2_w, d2_b = _init_convT(ks[3], hidden, 1, K)       # ConvT(H, 1, 20)
    return dict(c1_w=c1_w, c1_b=c1_b, c2_w=c2_w, c2_b=c2_b,
                d1_w=d1_w, d1_b=d1_b, d2_w=d2_w, d2_b=d2_b)


# ----------------------------------------------------------------------------
# One-time packing: per-tap weight matrices in kernel layout.
# Zero-padding H -> HMAX is exact because padded biases are zero and ReLU(0)=0.
# ----------------------------------------------------------------------------
def _pack_branch(p, hidden):
    H = hidden

    def padc(a, axis):
        pw = [(0, 0)] * a.ndim
        pw[axis] = (0, HMAX - H)
        return jnp.pad(a, pw)

    # layer 1: Conv1d(1, H, K)    w1t[c, k] = c1_w[c, 0, k]
    w1t = padc(p['c1_w'][:, 0, :], 0)                          # (HMAX, K) f32
    b1c = padc(p['c1_b'], 0)[:, None]                          # (HMAX, 1)
    # layer 2: Conv1d(H, 64, K)   W2_k[o, c] = c2_w[o, c, k]   (gather form)
    w2 = padc(jnp.transpose(p['c2_w'], (2, 0, 1)), 2)          # (K, 64, HMAX)
    w2 = w2.astype(jnp.bfloat16)
    b2c = p['c2_b'][:, None]                                   # (64, 1)
    # layer 3: ConvT(64, H, K)    W3_k[o, c] = d1_w[c, o, k]   (no flip needed)
    w3 = padc(jnp.transpose(p['d1_w'], (2, 1, 0)), 1)          # (K, HMAX, 64)
    w3 = w3.astype(jnp.bfloat16)
    b3c = padc(p['d1_b'], 0)[:, None]                          # (HMAX, 1)
    # layer 4: ConvT(H, 1, K)     w4t[c, k] = d2_w[c, 0, k]    (no flip needed)
    w4t = padc(p['d2_w'][:, 0, :], 0)                          # (HMAX, K)
    b4 = p['d2_b'].reshape(1, 1)                               # (1, 1)
    return (w1t, b1c, w2, b2c, w3, b3c, w4t, b4)


def pack_params(params_data, params_smooth):
    pd = _pack_branch(params_data, 4)
    ps = _pack_branch(params_smooth, HMAX)
    return tuple(jnp.stack([a, b], axis=0) for a, b in zip(pd, ps))


# ----------------------------------------------------------------------------
# Pure-JAX reference (PyTorch-layout params) for correctness check
# ----------------------------------------------------------------------------
def _to_kern(w):  # Conv1d weight (Cout, Cin, K) -> (K, Cin, Cout)
    return jnp.transpose(w, (2, 1, 0))


def _conv1d_ref(x, w, b, relu):
    ksize, _, Cout = w.shape
    Lout = x.shape[1] - ksize + 1
    acc = jnp.zeros((x.shape[0], Lout, Cout), jnp.float32)
    for k in range(ksize):
        acc = acc + jnp.einsum("blc,co->blo", x[:, k:k + Lout, :], w[k],
                               precision=jax.lax.Precision.HIGHEST)
    acc = acc + b.reshape(1, 1, Cout)
    return jnp.maximum(acc, 0.0) if relu else acc


def _convT_ref(x, w, b, relu):
    ksize = w.shape[2]
    x_pad = jnp.pad(x, ((0, 0), (ksize - 1, ksize - 1), (0, 0)))
    w_flip = jnp.transpose(w[:, :, ::-1], (2, 0, 1))
    return _conv1d_ref(x_pad, w_flip, b, relu)


def _branch_ref(x_blc, p):
    h = _conv1d_ref(x_blc, _to_kern(p['c1_w']), p['c1_b'], True)
    h = _conv1d_ref(h, _to_kern(p['c2_w']), p['c2_b'], True)
    h = _convT_ref(h, p['d1_w'], p['d1_b'], True)
    h = _convT_ref(h, p['d2_w'], p['d2_b'], False)
    return h


def model_ref(x, pd, ps):
    o1 = _branch_ref(x[:, 0, :][:, :, None], pd)
    o2 = _branch_ref(x[:, 1, :][:, :, None], ps)
    return jnp.concatenate([jnp.transpose(o1, (0, 2, 1)),
                            jnp.transpose(o2, (0, 2, 1))], axis=1)


if __name__ == "__main__":
    B, L = 2, 64                                 # L >= 39; B*L = 128 (lane-dense)
    key = jax.random.PRNGKey(0)
    kx, kd, ks = jax.random.split(key, 3)
    x = jax.random.normal(kx, (B, 2, L), jnp.float32)

    params_data = init_branch_params(kd, 4)       # data_module:   1->4->64->4->1
    params_smooth = init_branch_params(ks, 32)    # smooth_module: 1->32->64->32->1
    packed = pack_params(params_data, params_smooth)

    out = model_forward(x, packed)
    jax.block_until_ready(out)

    assert out.shape == (B, 2, L), out.shape
    ref = model_ref(x, params_data, params_smooth)
    assert bool(jnp.all(jnp.isfinite(out)))
    assert jnp.allclose(out, ref, rtol=1e-2, atol=1e-2), "mismatch vs pure-JAX reference"
    print("KERNEL_OK")
</pallas_src>

<mosaic_0001>
module attributes {stable_mosaic.version = 11 : i64} {
  func.func @_autoencoder_branch_kernel(%arg0: i32, %arg1: memref<1x1x128xf32, #tpu.memory_space<vmem>>, %arg2: memref<2x128xf32, #tpu.memory_space<vmem>>, %arg3: memref<1x32x20xf32, #tpu.memory_space<vmem>>, %arg4: memref<1x32x1xf32, #tpu.memory_space<vmem>>, %arg5: memref<1x20x64x32xbf16, #tpu.memory_space<vmem>>, %arg6: memref<1x64x1xf32, #tpu.memory_space<vmem>>, %arg7: memref<1x20x32x64xbf16, #tpu.memory_space<vmem>>, %arg8: memref<1x32x1xf32, #tpu.memory_space<vmem>>, %arg9: memref<1x32x20xf32, #tpu.memory_space<vmem>>, %arg10: memref<1x1x1xf32, #tpu.memory_space<vmem>>, %arg11: memref<1x1x128xf32, #tpu.memory_space<vmem>>) attributes {dimension_semantics = [#tpu.dimension_semantics<parallel>], iteration_bounds = array<i64: 2>, scalar_prefetch = 0 : i64, scratch_operands = 0 : i64, tpu.core_type = #tpu.core_type<tc>, window_params = [{transform_indices = @transform_0, window_bounds = array<i64: 1, 1, 128>}, {pipeline_mode = #tpu.pipeline_mode<synchronous>, transform_indices = @transform_1, window_bounds = array<i64: 2, 128>}, {transform_indices = @transform_2, window_bounds = array<i64: 1, 32, 20>}, {transform_indices = @transform_3, window_bounds = array<i64: 1, 32, 1>}, {transform_indices = @transform_4, window_bounds = array<i64: 1, 20, 64, 32>}, {transform_indices = @transform_5, window_bounds = array<i64: 1, 64, 1>}, {transform_indices = @transform_6, window_bounds = array<i64: 1, 20, 32, 64>}, {transform_indices = @transform_7, window_bounds = array<i64: 1, 32, 1>}, {transform_indices = @transform_8, window_bounds = array<i64: 1, 32, 20>}, {transform_indices = @transform_9, window_bounds = array<i64: 1, 1, 1>}, {transform_indices = @transform_10, window_bounds = array<i64: 1, 1, 128>}]} {
    %c0 = arith.constant 0 : index
    %c0_0 = arith.constant 0 : index
    %c0_1 = arith.constant 0 : index
    %0 = vector.load %arg1[%c0, %c0_0, %c0_1] : memref<1x1x128xf32, #tpu.memory_space<vmem>>, vector<1x1x128xf32>
    %1 = vector.shape_cast %0 : vector<1x1x128xf32> to vector<1x128xf32>
    %c0_2 = arith.constant 0 : index
    %c0_3 = arith.constant 0 : index
    %2 = vector.load %arg2[%c0_2, %c0_3] : memref<2x128xf32, #tpu.memory_space<vmem>>, vector<2x128xf32>
    %3 = vector.extract_strided_slice %2 {offsets = [0, 0], sizes = [1, 128], strides = [1, 1]} : vector<2x128xf32> to vector<1x128xf32>
    %4 = vector.extract_strided_slice %2 {offsets = [1, 0], sizes = [1, 128], strides = [1, 1]} : vector<2x128xf32> to vector<1x128xf32>
    %c0_4 = arith.constant 0 : index
    %c0_5 = arith.constant 0 : index
    %c0_6 = arith.constant 0 : index
    %5 = vector.load %arg3[%c0_4, %c0_5, %c0_6] : memref<1x32x20xf32, #tpu.memory_space<vmem>>, vector<1x32x20xf32>
    %6 = vector.shape_cast %5 : vector<1x32x20xf32> to vector<32x20xf32>
    %c0_7 = arith.constant 0 : index
    %c0_8 = arith.constant 0 : index
    %c0_9 = arith.constant 0 : index
    %7 = vector.load %arg4[%c0_7, %c0_8, %c0_9] : memref<1x32x1xf32, #tpu.memory_space<vmem>>, vector<1x32x1xf32>
    %8 = vector.shape_cast %7 : vector<1x32x1xf32> to vector<32x1xf32>
    %c0_10 = arith.constant 0 : index
    %c0_11 = arith.constant 0 : index
    %c0_12 = arith.constant 0 : index
    %9 = vector.load %arg6[%c0_10, %c0_11, %c0_12] : memref<1x64x1xf32, #tpu.memory_space<vmem>>, vector<1x64x1xf32>
    %10 = vector.shape_cast %9 : vector<1x64x1xf32> to vector<64x1xf32>
    %c0_13 = arith.constant 0 : index
    %c0_14 = arith.constant 0 : index
    %c0_15 = arith.constant 0 : index
    %11 = vector.load %arg8[%c0_13, %c0_14, %c0_15] : memref<1x32x1xf32, #tpu.memory_space<vmem>>, vector<1x32x1xf32>
    %12 = vector.shape_cast %11 : vector<1x32x1xf32> to vector<32x1xf32>
    %c0_16 = arith.constant 0 : index
    %c0_17 = arith.constant 0 : index
    %c0_18 = arith.constant 0 : index
    %13 = vector.load %arg9[%c0_16, %c0_17, %c0_18] : memref<1x32x20xf32, #tpu.memory_space<vmem>>, vector<1x32x20xf32>
    %14 = vector.shape_cast %13 : vector<1x32x20xf32> to vector<32x20xf32>
    %c0_19 = arith.constant 0 : index
    %c0_20 = arith.constant 0 : index
    %c0_21 = arith.constant 0 : index
    %15 = vector.load %arg10[%c0_19, %c0_20, %c0_21] : memref<1x1x1xf32, #tpu.memory_space<vmem>>, vector<1x1x1xf32>
    %16 = vector.shape_cast %15 : vector<1x1x1xf32> to vector<1x1xf32>
    %cst = arith.constant 0.000000e+00 : f32
    %17 = vector.broadcast %cst : f32 to vector<32x128xf32>
    %18 = vector.extract_strided_slice %6 {offsets = [0, 0], sizes = [32, 1], strides = [1, 1]} : vector<32x20xf32> to vector<32x1xf32>
    %19 = vector.broadcast %18 : vector<32x1xf32> to vector<32x128xf32>
    %20 = vector.broadcast %1 : vector<1x128xf32> to vector<32x128xf32>
    %21 = arith.mulf %19, %20 : vector<32x128xf32>
    %22 = arith.addf %17, %21 : vector<32x128xf32>
    %23 = vector.extract_strided_slice %6 {offsets = [0, 1], sizes = [32, 1], strides = [1, 1]} : vector<32x20xf32> to vector<32x1xf32>
    %24 = vector.extract_strided_slice %1 {offsets = [0, 1], sizes = [1, 127], strides = [1, 1]} : vector<1x128xf32> to vector<1x127xf32>
    %25 = vector.extract_strided_slice %1 {offsets = [0, 0], sizes = [1, 1], strides = [1, 1]} : vector<1x128xf32> to vector<1x1xf32>
    %26 = tpu.concatenate %24, %25 in 1 : vector<1x127xf32>, vector<1x1xf32> -> vector<1x128xf32>
    %27 = vector.broadcast %23 : vector<32x1xf32> to vector<32x128xf32>
    %28 = vector.broadcast %26 : vector<1x128xf32> to vector<32x128xf32>
    %29 = arith.mulf %27, %28 : vector<32x128xf32>
    %30 = arith.addf %22, %29 : vector<32x128xf32>
    %31 = vector.extract_strided_slice %6 {offsets = [0, 2], sizes = [32, 1], strides = [1, 1]} : vector<32x20xf32> to vector<32x1xf32>
    %32 = vector.extract_strided_slice %1 {offsets = [0, 2], sizes = [1, 126], strides = [1, 1]} : vector<1x128xf32> to vector<1x126xf32>
    %33 = vector.extract_strided_slice %1 {offsets = [0, 0], sizes = [1, 2], strides = [1, 1]} : vector<1x128xf32> to vector<1x2xf32>
    %34 = tpu.concatenate %32, %33 in 1 : vector<1x126xf32>, vector<1x2xf32> -> vector<1x128xf32>
    %35 = vector.broadcast %31 : vector<32x1xf32> to vector<32x128xf32>
    %36 = vector.broadcast %34 : vector<1x128xf32> to vector<32x128xf32>
    %37 = arith.mulf %35, %36 : vector<32x128xf32>
    %38 = arith.addf %30, %37 : vector<32x128xf32>
    %39 = vector.extract_strided_slice %6 {offsets = [0, 3], sizes = [32, 1], strides = [1, 1]} : vector<32x20xf32> to vector<32x1xf32>
    %40 = vector.extract_strided_slice %1 {offsets = [0, 3], sizes = [1, 125], strides = [1, 1]} : vector<1x128xf32> to vector<1x125xf32>
    %41 = vector.extract_strided_slice %1 {offsets = [0, 0], sizes = [1, 3], strides = [1, 1]} : vector<1x128xf32> to vector<1x3xf32>
    %42 = tpu.concatenate %40, %41 in 1 : vector<1x125xf32>, vector<1x3xf32> -> vector<1x128xf32>
    %43 = vector.broadcast %39 : vector<32x1xf32> to vector<32x128xf32>
    %44 = vector.broadcast %42 : vector<1x128xf32> to vector<32x128xf32>
    %45 = arith.mulf %43, %44 : vector<32x128xf32>
    %46 = arith.addf %38, %45 : vector<32x128xf32>
    %47 = vector.extract_strided_slice %6 {offsets = [0, 4], sizes = [32, 1], strides = [1, 1]} : vector<32x20xf32> to vector<32x1xf32>
    %48 = vector.extract_strided_slice %1 {offsets = [0, 4], sizes = [1, 124], strides = [1, 1]} : vector<1x128xf32> to vector<1x124xf32>
    %49 = vector.extract_strided_slice %1 {offsets = [0, 0], sizes = [1, 4], strides = [1, 1]} : vector<1x128xf32> to vector<1x4xf32>
    %50 = tpu.concatenate %48, %49 in 1 : vector<1x124xf32>, vector<1x4xf32> -> vector<1x128xf32>
    %51 = vector.broadcast %47 : vector<32x1xf32> to vector<32x128xf32>
    %52 = vector.broadcast %50 : vector<1x128xf32> to vector<32x128xf32>
    %53 = arith.mulf %51, %52 : vector<32x128xf32>
    %54 = arith.addf %46, %53 : vector<32x128xf32>
    %55 = vector.extract_strided_slice %6 {offsets = [0, 5], sizes = [32, 1], strides = [1, 1]} : vector<32x20xf32> to vector<32x1xf32>
    %56 = vector.extract_strided_slice %1 {offsets = [0, 5], sizes = [1, 123], strides = [1, 1]} : vector<1x128xf32> to vector<1x123xf32>
    %57 = vector.extract_strided_slice %1 {offsets = [0, 0], sizes = [1, 5], strides = [1, 1]} : vector<1x128xf32> to vector<1x5xf32>
    %58 = tpu.concatenate %56, %57 in 1 : vector<1x123xf32>, vector<1x5xf32> -> vector<1x128xf32>
    %59 = vector.broadcast %55 : vector<32x1xf32> to vector<32x128xf32>
    %60 = vector.broadcast %58 : vector<1x128xf32> to vector<32x128xf32>
    %61 = arith.mulf %59, %60 : vector<32x128xf32>
    %62 = arith.addf %54, %61 : vector<32x128xf32>
    %63 = vector.extract_strided_slice %6 {offsets = [0, 6], sizes = [32, 1], strides = [1, 1]} : vector<32x20xf32> to vector<32x1xf32>
    %64 = vector.extract_strided_slice %1 {offsets = [0, 6], sizes = [1, 122], strides = [1, 1]} : vector<1x128xf32> to vector<1x122xf32>
    %65 = vector.extract_strided_slice %1 {offsets = [0, 0], sizes = [1, 6], strides = [1, 1]} : vector<1x128xf32> to vector<1x6xf32>
    %66 = tpu.concatenate %64, %65 in 1 : vector<1x122xf32>, vector<1x6xf32> -> vector<1x128xf32>
    %67 = vector.broadcast %63 : vector<32x1xf32> to vector<32x128xf32>
    %68 = vector.broadcast %66 : vector<1x128xf32> to vector<32x128xf32>
    %69 = arith.mulf %67, %68 : vector<32x128xf32>
    %70 = arith.addf %62, %69 : vector<32x128xf32>
    %71 = vector.extract_strided_slice %6 {offsets = [0, 7], sizes = [32, 1], strides = [1, 1]} : vector<32x20xf32> to vector<32x1xf32>
    %72 = vector.extract_strided_slice %1 {offsets = [0, 7], sizes = [1, 121], strides = [1, 1]} : vector<1x128xf32> to vector<1x121xf32>
    %73 = vector.extract_strided_slice %1 {offsets = [0, 0], sizes = [1, 7], strides = [1, 1]} : vector<1x128xf32> to vector<1x7xf32>
    %74 = tpu.concatenate %72, %73 in 1 : vector<1x121xf32>, vector<1x7xf32> -> vector<1x128xf32>
    %75 = vector.broadcast %71 : vector<32x1xf32> to vector<32x128xf32>
    %76 = vector.broadcast %74 : vector<1x128xf32> to vector<32x128xf32>
    %77 = arith.mulf %75, %76 : vector<32x128xf32>
    %78 = arith.addf %70, %77 : vector<32x128xf32>
    %79 = vector.extract_strided_slice %6 {offsets = [0, 8], sizes = [32, 1], strides = [1, 1]} : vector<32x20xf32> to vector<32x1xf32>
    %80 = vector.extract_strided_slice %1 {offsets = [0, 8], sizes = [1, 120], strides = [1, 1]} : vector<1x128xf32> to vector<1x120xf32>
    %81 = vector.extract_strided_slice %1 {offsets = [0, 0], sizes = [1, 8], strides = [1, 1]} : vector<1x128xf32> to vector<1x8xf32>
    %82 = tpu.concatenate %80, %81 in 1 : vector<1x120xf32>, vector<1x8xf32> -> vector<1x128xf32>
    %83 = vector.broadcast %79 : vector<32x1xf32> to vector<32x128xf32>
    %84 = vector.broadcast %82 : vector<1x128xf32> to vector<32x128xf32>
    %85 = arith.mulf %83, %84 : vector<32x128xf32>
    %86 = arith.addf %78, %85 : vector<32x128xf32>
    %87 = vector.extract_strided_slice %6 {offsets = [0, 9], sizes = [32, 1], strides = [1, 1]} : vector<32x20xf32> to vector<32x1xf32>
    %88 = vector.extract_strided_slice %1 {offsets = [0, 9], sizes = [1, 119], strides = [1, 1]} : vector<1x128xf32> to vector<1x119xf32>
    %89 = vector.extract_strided_slice %1 {offsets = [0, 0], sizes = [1, 9], strides = [1, 1]} : vector<1x128xf32> to vector<1x9xf32>
    %90 = tpu.concatenate %88, %89 in 1 : vector<1x119xf32>, vector<1x9xf32> -> vector<1x128xf32>
    %91 = vector.broadcast %87 : vector<32x1xf32> to vector<32x128xf32>
    %92 = vector.broadcast %90 : vector<1x128xf32> to vector<32x128xf32>
    %93 = arith.mulf %91, %92 : vector<32x128xf32>
    %94 = arith.addf %86, %93 : vector<32x128xf32>
    %95 = vector.extract_strided_slice %6 {offsets = [0, 10], sizes = [32, 1], strides = [1, 1]} : vector<32x20xf32> to vector<32x1xf32>
    %96 = vector.extract_strided_slice %1 {offsets = [0, 10], sizes = [1, 118], strides = [1, 1]} : vector<1x128xf32> to vector<1x118xf32>
    %97 = vector.extract_strided_slice %1 {offsets = [0, 0], sizes = [1, 10], strides = [1, 1]} : vector<1x128xf32> to vector<1x10xf32>
    %98 = tpu.concatenate %96, %97 in 1 : vector<1x118xf32>, vector<1x10xf32> -> vector<1x128xf32>
    %99 = vector.broadcast %95 : vector<32x1xf32> to vector<32x128xf32>
    %100 = vector.broadcast %98 : vector<1x128xf32> to vector<32x128xf32>
    %101 = arith.mulf %99, %100 : vector<32x128xf32>
    %102 = arith.addf %94, %101 : vector<32x128xf32>
    %103 = vector.extract_strided_slice %6 {offsets = [0, 11], sizes = [32, 1], strides = [1, 1]} : vector<32x20xf32> to vector<32x1xf32>
    %104 = vector.extract_strided_slice %1 {offsets = [0, 11], sizes = [1, 117], strides = [1, 1]} : vector<1x128xf32> to vector<1x117xf32>
    %105 = vector.extract_strided_slice %1 {offsets = [0, 0], sizes = [1, 11], strides = [1, 1]} : vector<1x128xf32> to vector<1x11xf32>
    %106 = tpu.concatenate %104, %105 in 1 : vector<1x117xf32>, vector<1x11xf32> -> vector<1x128xf32>
    %107 = vector.broadcast %103 : vector<32x1xf32> to vector<32x128xf32>
    %108 = vector.broadcast %106 : vector<1x128xf32> to vector<32x128xf32>
    %109 = arith.mulf %107, %108 : vector<32x128xf32>
    %110 = arith.addf %102, %109 : vector<32x128xf32>
    %111 = vector.extract_strided_slice %6 {offsets = [0, 12], sizes = [32, 1], strides = [1, 1]} : vector<32x20xf32> to vector<32x1xf32>
    %112 = vector.extract_strided_slice %1 {offsets = [0, 12], sizes = [1, 116], strides = [1, 1]} : vector<1x128xf32> to vector<1x116xf32>
    %113 = vector.extract_strided_slice %1 {offsets = [0, 0], sizes = [1, 12], strides = [1, 1]} : vector<1x128xf32> to vector<1x12xf32>
    %114 = tpu.concatenate %112, %113 in 1 : vector<1x116xf32>, vector<1x12xf32> -> vector<1x128xf32>
    %115 = vector.broadcast %111 : vector<32x1xf32> to vector<32x128xf32>
    %116 = vector.broadcast %114 : vector<1x128xf32> to vector<32x128xf32>
    %117 = arith.mulf %115, %116 : vector<32x128xf32>
    %118 = arith.addf %110, %117 : vector<32x128xf32>
    %119 = vector.extract_strided_slice %6 {offsets = [0, 13], sizes = [32, 1], strides = [1, 1]} : vector<32x20xf32> to vector<32x1xf32>
    %120 = vector.extract_strided_slice %1 {offsets = [0, 13], sizes = [1, 115], strides = [1, 1]} : vector<1x128xf32> to vector<1x115xf32>
    %121 = vector.extract_strided_slice %1 {offsets = [0, 0], sizes = [1, 13], strides = [1, 1]} : vector<1x128xf32> to vector<1x13xf32>
    %122 = tpu.concatenate %120, %121 in 1 : vector<1x115xf32>, vector<1x13xf32> -> vector<1x128xf32>
    %123 = vector.broadcast %119 : vector<32x1xf32> to vector<32x128xf32>
    %124 = vector.broadcast %122 : vector<1x128xf32> to vector<32x128xf32>
    %125 = arith.mulf %123, %124 : vector<32x128xf32>
    %126 = arith.addf %118, %125 : vector<32x128xf32>
    %127 = vector.extract_strided_slice %6 {offsets = [0, 14], sizes = [32, 1], strides = [1, 1]} : vector<32x20xf32> to vector<32x1xf32>
    %128 = vector.extract_strided_slice %1 {offsets = [0, 14], sizes = [1, 114], strides = [1, 1]} : vector<1x128xf32> to vector<1x114xf32>
    %129 = vector.extract_strided_slice %1 {offsets = [0, 0], sizes = [1, 14], strides = [1, 1]} : vector<1x128xf32> to vector<1x14xf32>
    %130 = tpu.concatenate %128, %129 in 1 : vector<1x114xf32>, vector<1x14xf32> -> vector<1x128xf32>
    %131 = vector.broadcast %127 : vector<32x1xf32> to vector<32x128xf32>
    %132 = vector.broadcast %130 : vector<1x128xf32> to vector<32x128xf32>
    %133 = arith.mulf %131, %132 : vector<32x128xf32>
    %134 = arith.addf %126, %133 : vector<32x128xf32>
    %135 = vector.extract_strided_slice %6 {offsets = [0, 15], sizes = [32, 1], strides = [1, 1]} : vector<32x20xf32> to vector<32x1xf32>
    %136 = vector.extract_strided_slice %1 {offsets = [0, 15], sizes = [1, 113], strides = [1, 1]} : vector<1x128xf32> to vector<1x113xf32>
    %137 = vector.extract_strided_slice %1 {offsets = [0, 0], sizes = [1, 15], strides = [1, 1]} : vector<1x128xf32> to vector<1x15xf32>
    %138 = tpu.concatenate %136, %137 in 1 : vector<1x113xf32>, vector<1x15xf32> -> vector<1x128xf32>
    %139 = vector.broadcast %135 : vector<32x1xf32> to vector<32x128xf32>
    %140 = vector.broadcast %138 : vector<1x128xf32> to vector<32x128xf32>
    %141 = arith.mulf %139, %140 : vector<32x128xf32>
    %142 = arith.addf %134, %141 : vector<32x128xf32>
    %143 = vector.extract_strided_slice %6 {offsets = [0, 16], sizes = [32, 1], strides = [1, 1]} : vector<32x20xf32> to vector<32x1xf32>
    %144 = vector.extract_strided_slice %1 {offsets = [0, 16], sizes = [1, 112], strides = [1, 1]} : vector<1x128xf32> to vector<1x112xf32>
    %145 = vector.extract_strided_slice %1 {offsets = [0, 0], sizes = [1, 16], strides = [1, 1]} : vector<1x128xf32> to vector<1x16xf32>
    %146 = tpu.concatenate %144, %145 in 1 : vector<1x112xf32>, vector<1x16xf32> -> vector<1x128xf32>
    %147 = vector.broadcast %143 : vector<32x1xf32> to vector<32x128xf32>
    %148 = vector.broadcast %146 : vector<1x128xf32> to vector<32x128xf32>
    %149 = arith.mulf %147, %148 : vector<32x128xf32>
    %150 = arith.addf %142, %149 : vector<32x128xf32>
    %151 = vector.extract_strided_slice %6 {offsets = [0, 17], sizes = [32, 1], strides = [1, 1]} : vector<32x20xf32> to vector<32x1xf32>
    %152 = vector.extract_strided_slice %1 {offsets = [0, 17], sizes = [1, 111], strides = [1, 1]} : vector<1x128xf32> to vector<1x111xf32>
    %153 = vector.extract_strided_slice %1 {offsets = [0, 0], sizes = [1, 17], strides = [1, 1]} : vector<1x128xf32> to vector<1x17xf32>
    %154 = tpu.concatenate %152, %153 in 1 : vector<1x111xf32>, vector<1x17xf32> -> vector<1x128xf32>
    %155 = vector.broadcast %151 : vector<32x1xf32> to vector<32x128xf32>
    %156 = vector.broadcast %154 : vector<1x128xf32> to vector<32x128xf32>
    %157 = arith.mulf %155, %156 : vector<32x128xf32>
    %158 = arith.addf %150, %157 : vector<32x128xf32>
    %159 = vector.extract_strided_slice %6 {offsets = [0, 18], sizes = [32, 1], strides = [1, 1]} : vector<32x20xf32> to vector<32x1xf32>
    %160 = vector.extract_strided_slice %1 {offsets = [0, 18], sizes = [1, 110], strides = [1, 1]} : vector<1x128xf32> to vector<1x110xf32>
    %161 = vector.extract_strided_slice %1 {offsets = [0, 0], sizes = [1, 18], strides = [1, 1]} : vector<1x128xf32> to vector<1x18xf32>
    %162 = tpu.concatenate %160, %161 in 1 : vector<1x110xf32>, vector<1x18xf32> -> vector<1x128xf32>
    %163 = vector.broadcast %159 : vector<32x1xf32> to vector<32x128xf32>
    %164 = vector.broadcast %162 : vector<1x128xf32> to vector<32x128xf32>
    %165 = arith.mulf %163, %164 : vector<32x128xf32>
    %166 = arith.addf %158, %165 : vector<32x128xf32>
    %167 = vector.extract_strided_slice %6 {offsets = [0, 19], sizes = [32, 1], strides = [1, 1]} : vector<32x20xf32> to vector<32x1xf32>
    %168 = vector.extract_strided_slice %1 {offsets = [0, 19], sizes = [1, 109], strides = [1, 1]} : vector<1x128xf32> to vector<1x109xf32>
    %169 = vector.extract_strided_slice %1 {offsets = [0, 0], sizes = [1, 19], strides = [1, 1]} : vector<1x128xf32> to vector<1x19xf32>
    %170 = tpu.concatenate %168, %169 in 1 : vector<1x109xf32>, vector<1x19xf32> -> vector<1x128xf32>
    %171 = vector.broadcast %167 : vector<32x1xf32> to vector<32x128xf32>
    %172 = vector.broadcast %170 : vector<1x128xf32> to vector<32x128xf32>
    %173 = arith.mulf %171, %172 : vector<32x128xf32>
    %174 = arith.addf %166, %173 : vector<32x128xf32>
    %175 = vector.broadcast %8 : vector<32x1xf32> to vector<32x128xf32>
    %176 = arith.addf %174, %175 : vector<32x128xf32>
    %cst_22 = arith.constant 0.000000e+00 : f32
    %177 = vector.broadcast %cst_22 : f32 to vector<32x128xf32>
    %178 = arith.maximumf %176, %177 : vector<32x128xf32>
    %179 = arith.truncf %178 : vector<32x128xf32> to vector<32x128xbf16>
    %cst_23 = arith.constant 0.000000e+00 : f32
    %180 = vector.broadcast %cst_23 : f32 to vector<64x128xf32>
    %c0_24 = arith.constant 0 : index
    %c0_25 = arith.constant 0 : index
    %c0_26 = arith.constant 0 : index
    %c0_27 = arith.constant 0 : index
    %181 = vector.load %arg5[%c0_24, %c0_25, %c0_26, %c0_27] : memref<1x20x64x32xbf16, #tpu.memory_space<vmem>>, vector<1x1x64x32xbf16>
    %182 = vector.shape_cast %181 : vector<1x1x64x32xbf16> to vector<64x32xbf16>
    %cst_28 = arith.constant dense<0.000000e+00> : vector<64x128xf32>
    %183 = tpu.matmul %182, %179, %cst_28 {dimension_numbers = #tpu.dot_dimension_numbers<[1], [0], [0], [1], [0, 0, 1, 1], [], []>} : vector<64x32xbf16>, vector<32x128xbf16>, vector<64x128xf32> -> vector<64x128xf32>
    %184 = arith.addf %180, %183 : vector<64x128xf32>
    %c0_29 = arith.constant 0 : index
    %c1 = arith.constant 1 : index
    %c0_30 = arith.constant 0 : index
    %c0_31 = arith.constant 0 : index
    %185 = vector.load %arg5[%c0_29, %c1, %c0_30, %c0_31] : memref<1x20x64x32xbf16, #tpu.memory_space<vmem>>, vector<1x1x64x32xbf16>
    %186 = vector.shape_cast %185 : vector<1x1x64x32xbf16> to vector<64x32xbf16>
    %187 = vector.extract_strided_slice %179 {offsets = [0, 1], sizes = [32, 127], strides = [1, 1]} : vector<32x128xbf16> to vector<32x127xbf16>
    %188 = vector.extract_strided_slice %179 {offsets = [0, 0], sizes = [32, 1], strides = [1, 1]} : vector<32x128xbf16> to vector<32x1xbf16>
    %189 = tpu.concatenate %187, %188 in 1 : vector<32x127xbf16>, vector<32x1xbf16> -> vector<32x128xbf16>
    %cst_32 = arith.constant dense<0.000000e+00> : vector<64x128xf32>
    %190 = tpu.matmul %186, %189, %cst_32 {dimension_numbers = #tpu.dot_dimension_numbers<[1], [0], [0], [1], [0, 0, 1, 1], [], []>} : vector<64x32xbf16>, vector<32x128xbf16>, vector<64x128xf32> -> vector<64x128xf32>
    %191 = arith.addf %184, %190 : vector<64x128xf32>
    %c0_33 = arith.constant 0 : index
    %c2 = arith.constant 2 : index
    %c0_34 = arith.constant 0 : index
    %c0_35 = arith.constant 0 : index
    %192 = vector.load %arg5[%c0_33, %c2, %c0_34, %c0_35] : memref<1x20x64x32xbf16, #tpu.memory_space<vmem>>, vector<1x1x64x32xbf16>
    %193 = vector.shape_cast %192 : vector<1x1x64x32xbf16> to vector<64x32xbf16>
    %194 = vector.extract_strided_slice %179 {offsets = [0, 2], sizes = [32, 126], strides = [1, 1]} : vector<32x128xbf16> to vector<32x126xbf16>
    %195 = vector.extract_strided_slice %179 {offsets = [0, 0], sizes = [32, 2], strides = [1, 1]} : vector<32x128xbf16> to vector<32x2xbf16>
    %196 = tpu.concatenate %194, %195 in 1 : vector<32x126xbf16>, vector<32x2xbf16> -> vector<32x128xbf16>
    %cst_36 = arith.constant dense<0.000000e+00> : vector<64x128xf32>
    %197 = tpu.matmul %193, %196, %cst_36 {dimension_numbers = #tpu.dot_dimension_numbers<[1], [0], [0], [1], [0, 0, 1, 1], [], []>} : vector<64x32xbf16>, vector<32x128xbf16>, vector<64x128xf32> -> vector<64x128xf32>
    %198 = arith.addf %191, %197 : vector<64x128xf32>
    %c0_37 = arith.constant 0 : index
    %c3 = arith.constant 3 : index
    %c0_38 = arith.constant 0 : index
    %c0_39 = arith.constant 0 : index
    %199 = vector.load %arg5[%c0_37, %c3, %c0_38, %c0_39] : memref<1x20x64x32xbf16, #tpu.memory_space<vmem>>, vector<1x1x64x32xbf16>
    %200 = vector.shape_cast %199 : vector<1x1x64x32xbf16> to vector<64x32xbf16>
    %201 = vector.extract_strided_slice %179 {offsets = [0, 3], sizes = [32, 125], strides = [1, 1]} : vector<32x128xbf16> to vector<32x125xbf16>
    %202 = vector.extract_strided_slice %179 {offsets = [0, 0], sizes = [32, 3], strides = [1, 1]} : vector<32x128xbf16> to vector<32x3xbf16>
    %203 = tpu.concatenate %201, %202 in 1 : vector<32x125xbf16>, vector<32x3xbf16> -> vector<32x128xbf16>
    %cst_40 = arith.constant dense<0.000000e+00> : vector<64x128xf32>
    %204 = tpu.matmul %200, %203, %cst_40 {dimension_numbers = #tpu.dot_dimension_numbers<[1], [0], [0], [1], [0, 0, 1, 1], [], []>} : vector<64x32xbf16>, vector<32x128xbf16>, vector<64x128xf32> -> vector<64x128xf32>
    %205 = arith.addf %198, %204 : vector<64x128xf32>
    %c0_41 = arith.constant 0 : index
    %c4 = arith.constant 4 : index
    %c0_42 = arith.constant 0 : index
    %c0_43 = arith.constant 0 : index
    %206 = vector.load %arg5[%c0_41, %c4, %c0_42, %c0_43] : memref<1x20x64x32xbf16, #tpu.memory_space<vmem>>, vector<1x1x64x32xbf16>
    %207 = vector.shape_cast %206 : vector<1x1x64x32xbf16> to vector<64x32xbf16>
    %208 = vector.extract_strided_slice %179 {offsets = [0, 4], sizes = [32, 124], strides = [1, 1]} : vector<32x128xbf16> to vector<32x124xbf16>
    %209 = vector.extract_strided_slice %179 {offsets = [0, 0], sizes = [32, 4], strides = [1, 1]} : vector<32x128xbf16> to vector<32x4xbf16>
    %210 = tpu.concatenate %208, %209 in 1 : vector<32x124xbf16>, vector<32x4xbf16> -> vector<32x128xbf16>
    %cst_44 = arith.constant dense<0.000000e+00> : vector<64x128xf32>
    %211 = tpu.matmul %207, %210, %cst_44 {dimension_numbers = #tpu.dot_dimension_numbers<[1], [0], [0], [1], [0, 0, 1, 1], [], []>} : vector<64x32xbf16>, vector<32x128xbf16>, vector<64x128xf32> -> vector<64x128xf32>
    %212 = arith.addf %205, %211 : vector<64x128xf32>
    %c0_45 = arith.constant 0 : index
    %c5 = arith.constant 5 : index
    %c0_46 = arith.constant 0 : index
    %c0_47 = arith.constant 0 : index
    %213 = vector.load %arg5[%c0_45, %c5, %c0_46, %c0_47] : memref<1x20x64x32xbf16, #tpu.memory_space<vmem>>, vector<1x1x64x32xbf16>
    %214 = vector.shape_cast %213 : vector<1x1x64x32xbf16> to vector<64x32xbf16>
    %215 = vector.extract_strided_slice %179 {offsets = [0, 5], sizes = [32, 123], strides = [1, 1]} : vector<32x128xbf16> to vector<32x123xbf16>
    %216 = vector.extract_strided_slice %179 {offsets = [0, 0], sizes = [32, 5], strides = [1, 1]} : vector<32x128xbf16> to vector<32x5xbf16>
    %217 = tpu.concatenate %215, %216 in 1 : vector<32x123xbf16>, vector<32x5xbf16> -> vector<32x128xbf16>
    %cst_48 = arith.constant dense<0.000000e+00> : vector<64x128xf32>
    %218 = tpu.matmul %214, %217, %cst_48 {dimension_numbers = #tpu.dot_dimension_numbers<[1], [0], [0], [1], [0, 0, 1, 1], [], []>} : vector<64x32xbf16>, vector<32x128xbf16>, vector<64x128xf32> -> vector<64x128xf32>
    %219 = arith.addf %212, %218 : vector<64x128xf32>
    %c0_49 = arith.constant 0 : index
    %c6 = arith.constant 6 : index
    %c0_50 = arith.constant 0 : index
    %c0_51 = arith.constant 0 : index
    %220 = vector.load %arg5[%c0_49, %c6, %c0_50, %c0_51] : memref<1x20x64x32xbf16, #tpu.memory_space<vmem>>, vector<1x1x64x32xbf16>
    %221 = vector.shape_cast %220 : vector<1x1x64x32xbf16> to vector<64x32xbf16>
    %222 = vector.extract_strided_slice %179 {offsets = [0, 6], sizes = [32, 122], strides = [1, 1]} : vector<32x128xbf16> to vector<32x122xbf16>
    %223 = vector.extract_strided_slice %179 {offsets = [0, 0], sizes = [32, 6], strides = [1, 1]} : vector<32x128xbf16> to vector<32x6xbf16>
    %224 = tpu.concatenate %222, %223 in 1 : vector<32x122xbf16>, vector<32x6xbf16> -> vector<32x128xbf16>
    %cst_52 = arith.constant dense<0.000000e+00> : vector<64x128xf32>
    %225 = tpu.matmul %221, %224, %cst_52 {dimension_numbers = #tpu.dot_dimension_numbers<[1], [0], [0], [1], [0, 0, 1, 1], [], []>} : vector<64x32xbf16>, vector<32x128xbf16>, vector<64x128xf32> -> vector<64x128xf32>
    %226 = arith.addf %219, %225 : vector<64x128xf32>
    %c0_53 = arith.constant 0 : index
    %c7 = arith.constant 7 : index
    %c0_54 = arith.constant 0 : index
    %c0_55 = arith.constant 0 : index
    %227 = vector.load %arg5[%c0_53, %c7, %c0_54, %c0_55] : memref<1x20x64x32xbf16, #tpu.memory_space<vmem>>, vector<1x1x64x32xbf16>
    %228 = vector.shape_cast %227 : vector<1x1x64x32xbf16> to vector<64x32xbf16>
    %229 = vector.extract_strided_slice %179 {offsets = [0, 7], sizes = [32, 121], strides = [1, 1]} : vector<32x128xbf16> to vector<32x121xbf16>
    %230 = vector.extract_strided_slice %179 {offsets = [0, 0], sizes = [32, 7], strides = [1, 1]} : vector<32x128xbf16> to vector<32x7xbf16>
    %231 = tpu.concatenate %229, %230 in 1 : vector<32x121xbf16>, vector<32x7xbf16> -> vector<32x128xbf16>
    %cst_56 = arith.constant dense<0.000000e+00> : vector<64x128xf32>
    %232 = tpu.matmul %228, %231, %cst_56 {dimension_numbers = #tpu.dot_dimension_numbers<[1], [0], [0], [1], [0, 0, 1, 1], [], []>} : vector<64x32xbf16>, vector<32x128xbf16>, vector<64x128xf32> -> vector<64x128xf32>
    %233 = arith.addf %226, %232 : vector<64x128xf32>
    %c0_57 = arith.constant 0 : index
    %c8 = arith.constant 8 : index
    %c0_58 = arith.constant 0 : index
    %c0_59 = arith.constant 0 : index
    %234 = vector.load %arg5[%c0_57, %c8, %c0_58, %c0_59] : memref<1x20x64x32xbf16, #tpu.memory_space<vmem>>, vector<1x1x64x32xbf16>
    %235 = vector.shape_cast %234 : vector<1x1x64x32xbf16> to vector<64x32xbf16>
    %236 = vector.extract_strided_slice %179 {offsets = [0, 8], sizes = [32, 120], strides = [1, 1]} : vector<32x128xbf16> to vector<32x120xbf16>
    %237 = vector.extract_strided_slice %179 {offsets = [0, 0], sizes = [32, 8], strides = [1, 1]} : vector<32x128xbf16> to vector<32x8xbf16>
    %238 = tpu.concatenate %236, %237 in 1 : vector<32x120xbf16>, vector<32x8xbf16> -> vector<32x128xbf16>
    %cst_60 = arith.constant dense<0.000000e+00> : vector<64x128xf32>
    %239 = tpu.matmul %235, %238, %cst_60 {dimension_numbers = #tpu.dot_dimension_numbers<[1], [0], [0], [1], [0, 0, 1, 1], [], []>} : vector<64x32xbf16>, vector<32x128xbf16>, vector<64x128xf32> -> vector<64x128xf32>
    %240 = arith.addf %233, %239 : vector<64x128xf32>
    %c0_61 = arith.constant 0 : index
    %c9 = arith.constant 9 : index
    %c0_62 = arith.constant 0 : index
    %c0_63 = arith.constant 0 : index
    %241 = vector.load %arg5[%c0_61, %c9, %c0_62, %c0_63] : memref<1x20x64x32xbf16, #tpu.memory_space<vmem>>, vector<1x1x64x32xbf16>
    %242 = vector.shape_cast %241 : vector<1x1x64x32xbf16> to vector<64x32xbf16>
    %243 = vector.extract_strided_slice %179 {offsets = [0, 9], sizes = [32, 119], strides = [1, 1]} : vector<32x128xbf16> to vector<32x119xbf16>
    %244 = vector.extract_strided_slice %179 {offsets = [0, 0], sizes = [32, 9], strides = [1, 1]} : vector<32x128xbf16> to vector<32x9xbf16>
    %245 = tpu.concatenate %243, %244 in 1 : vector<32x119xbf16>, vector<32x9xbf16> -> vector<32x128xbf16>
    %cst_64 = arith.constant dense<0.000000e+00> : vector<64x128xf32>
    %246 = tpu.matmul %242, %245, %cst_64 {dimension_numbers = #tpu.dot_dimension_numbers<[1], [0], [0], [1], [0, 0, 1, 1], [], []>} : vector<64x32xbf16>, vector<32x128xbf16>, vector<64x128xf32> -> vector<64x128xf32>
    %247 = arith.addf %240, %246 : vector<64x128xf32>
    %c0_65 = arith.constant 0 : index
    %c10 = arith.constant 10 : index
    %c0_66 = arith.constant 0 : index
    %c0_67 = arith.constant 0 : index
    %248 = vector.load %arg5[%c0_65, %c10, %c0_66, %c0_67] : memref<1x20x64x32xbf16, #tpu.memory_space<vmem>>, vector<1x1x64x32xbf16>
    %249 = vector.shape_cast %248 : vector<1x1x64x32xbf16> to vector<64x32xbf16>
    %250 = vector.extract_strided_slice %179 {offsets = [0, 10], sizes = [32, 118], strides = [1, 1]} : vector<32x128xbf16> to vector<32x118xbf16>
    %251 = vector.extract_strided_slice %179 {offsets = [0, 0], sizes = [32, 10], strides = [1, 1]} : vector<32x128xbf16> to vector<32x10xbf16>
    %252 = tpu.concatenate %250, %251 in 1 : vector<32x118xbf16>, vector<32x10xbf16> -> vector<32x128xbf16>
    %cst_68 = arith.constant dense<0.000000e+00> : vector<64x128xf32>
    %253 = tpu.matmul %249, %252, %cst_68 {dimension_numbers = #tpu.dot_dimension_numbers<[1], [0], [0], [1], [0, 0, 1, 1], [], []>} : vector<64x32xbf16>, vector<32x128xbf16>, vector<64x128xf32> -> vector<64x128xf32>
    %254 = arith.addf %247, %253 : vector<64x128xf32>
    %c0_69 = arith.constant 0 : index
    %c11 = arith.constant 11 : index
    %c0_70 = arith.constant 0 : index
    %c0_71 = arith.constant 0 : index
    %255 = vector.load %arg5[%c0_69, %c11, %c0_70, %c0_71] : memref<1x20x64x32xbf16, #tpu.memory_space<vmem>>, vector<1x1x64x32xbf16>
    %256 = vector.shape_cast %255 : vector<1x1x64x32xbf16> to vector<64x32xbf16>
    %257 = vector.extract_strided_slice %179 {offsets = [0, 11], sizes = [32, 117], strides = [1, 1]} : vector<32x128xbf16> to vector<32x117xbf16>
    %258 = vector.extract_strided_slice %179 {offsets = [0, 0], sizes = [32, 11], strides = [1, 1]} : vector<32x128xbf16> to vector<32x11xbf16>
    %259 = tpu.concatenate %257, %258 in 1 : vector<32x117xbf16>, vector<32x11xbf16> -> vector<32x128xbf16>
    %cst_72 = arith.constant dense<0.000000e+00> : vector<64x128xf32>
    %260 = tpu.matmul %256, %259, %cst_72 {dimension_numbers = #tpu.dot_dimension_numbers<[1], [0], [0], [1], [0, 0, 1, 1], [], []>} : vector<64x32xbf16>, vector<32x128xbf16>, vector<64x128xf32> -> vector<64x128xf32>
    %261 = arith.addf %254, %260 : vector<64x128xf32>
    %c0_73 = arith.constant 0 : index
    %c12 = arith.constant 12 : index
    %c0_74 = arith.constant 0 : index
    %c0_75 = arith.constant 0 : index
    %262 = vector.load %arg5[%c0_73, %c12, %c0_74, %c0_75] : memref<1x20x64x32xbf16, #tpu.memory_space<vmem>>, vector<1x1x64x32xbf16>
    %263 = vector.shape_cast %262 : vector<1x1x64x32xbf16> to vector<64x32xbf16>
    %264 = vector.extract_strided_slice %179 {offsets = [0, 12], sizes = [32, 116], strides = [1, 1]} : vector<32x128xbf16> to vector<32x116xbf16>
    %265 = vector.extract_strided_slice %179 {offsets = [0, 0], sizes = [32, 12], strides = [1, 1]} : vector<32x128xbf16> to vector<32x12xbf16>
    %266 = tpu.concatenate %264, %265 in 1 : vector<32x116xbf16>, vector<32x12xbf16> -> vector<32x128xbf16>
    %cst_76 = arith.constant dense<0.000000e+00> : vector<64x128xf32>
    %267 = tpu.matmul %263, %266, %cst_76 {dimension_numbers = #tpu.dot_dimension_numbers<[1], [0], [0], [1], [0, 0, 1, 1], [], []>} : vector<64x32xbf16>, vector<32x128xbf16>, vector<64x128xf32> -> vector<64x128xf32>
    %268 = arith.addf %261, %267 : vector<64x128xf32>
    %c0_77 = arith.constant 0 : index
    %c13 = arith.constant 13 : index
    %c0_78 = arith.constant 0 : index
    %c0_79 = arith.constant 0 : index
    %269 = vector.load %arg5[%c0_77, %c13, %c0_78, %c0_79] : memref<1x20x64x32xbf16, #tpu.memory_space<vmem>>, vector<1x1x64x32xbf16>
    %270 = vector.shape_cast %269 : vector<1x1x64x32xbf16> to vector<64x32xbf16>
    %271 = vector.extract_strided_slice %179 {offsets = [0, 13], sizes = [32, 115], strides = [1, 1]} : vector<32x128xbf16> to vector<32x115xbf16>
    %272 = vector.extract_strided_slice %179 {offsets = [0, 0], sizes = [32, 13], strides = [1, 1]} : vector<32x128xbf16> to vector<32x13xbf16>
    %273 = tpu.concatenate %271, %272 in 1 : vector<32x115xbf16>, vector<32x13xbf16> -> vector<32x128xbf16>
    %cst_80 = arith.constant dense<0.000000e+00> : vector<64x128xf32>
    %274 = tpu.matmul %270, %273, %cst_80 {dimension_numbers = #tpu.dot_dimension_numbers<[1], [0], [0], [1], [0, 0, 1, 1], [], []>} : vector<64x32xbf16>, vector<32x128xbf16>, vector<64x128xf32> -> vector<64x128xf32>
    %275 = arith.addf %268, %274 : vector<64x128xf32>
    %c0_81 = arith.constant 0 : index
    %c14 = arith.constant 14 : index
    %c0_82 = arith.constant 0 : index
    %c0_83 = arith.constant 0 : index
    %276 = vector.load %arg5[%c0_81, %c14, %c0_82, %c0_83] : memref<1x20x64x32xbf16, #tpu.memory_space<vmem>>, vector<1x1x64x32xbf16>
    %277 = vector.shape_cast %276 : vector<1x1x64x32xbf16> to vector<64x32xbf16>
    %278 = vector.extract_strided_slice %179 {offsets = [0, 14], sizes = [32, 114], strides = [1, 1]} : vector<32x128xbf16> to vector<32x114xbf16>
    %279 = vector.extract_strided_slice %179 {offsets = [0, 0], sizes = [32, 14], strides = [1, 1]} : vector<32x128xbf16> to vector<32x14xbf16>
    %280 = tpu.concatenate %278, %279 in 1 : vector<32x114xbf16>, vector<32x14xbf16> -> vector<32x128xbf16>
    %cst_84 = arith.constant dense<0.000000e+00> : vector<64x128xf32>
    %281 = tpu.matmul %277, %280, %cst_84 {dimension_numbers = #tpu.dot_dimension_numbers<[1], [0], [0], [1], [0, 0, 1, 1], [], []>} : vector<64x32xbf16>, vector<32x128xbf16>, vector<64x128xf32> -> vector<64x128xf32>
    %282 = arith.addf %275, %281 : vector<64x128xf32>
    %c0_85 = arith.constant 0 : index
    %c15 = arith.constant 15 : index
    %c0_86 = arith.constant 0 : index
    %c0_87 = arith.constant 0 : index
    %283 = vector.load %arg5[%c0_85, %c15, %c0_86, %c0_87] : memref<1x20x64x32xbf16, #tpu.memory_space<vmem>>, vector<1x1x64x32xbf16>
    %284 = vector.shape_cast %283 : vector<1x1x64x32xbf16> to vector<64x32xbf16>
    %285 = vector.extract_strided_slice %179 {offsets = [0, 15], sizes = [32, 113], strides = [1, 1]} : vector<32x128xbf16> to vector<32x113xbf16>
    %286 = vector.extract_strided_slice %179 {offsets = [0, 0], sizes = [32, 15], strides = [1, 1]} : vector<32x128xbf16> to vector<32x15xbf16>
    %287 = tpu.concatenate %285, %286 in 1 : vector<32x113xbf16>, vector<32x15xbf16> -> vector<32x128xbf16>
    %cst_88 = arith.constant dense<0.000000e+00> : vector<64x128xf32>
    %288 = tpu.matmul %284, %287, %cst_88 {dimension_numbers = #tpu.dot_dimension_numbers<[1], [0], [0], [1], [0, 0, 1, 1], [], []>} : vector<64x32xbf16>, vector<32x128xbf16>, vector<64x128xf32> -> vector<64x128xf32>
    %289 = arith.addf %282, %288 : vector<64x128xf32>
    %c0_89 = arith.constant 0 : index
    %c16 = arith.constant 16 : index
    %c0_90 = arith.constant 0 : index
    %c0_91 = arith.constant 0 : index
    %290 = vector.load %arg5[%c0_89, %c16, %c0_90, %c0_91] : memref<1x20x64x32xbf16, #tpu.memory_space<vmem>>, vector<1x1x64x32xbf16>
    %291 = vector.shape_cast %290 : vector<1x1x64x32xbf16> to vector<64x32xbf16>
    %292 = vector.extract_strided_slice %179 {offsets = [0, 16], sizes = [32, 112], strides = [1, 1]} : vector<32x128xbf16> to vector<32x112xbf16>
    %293 = vector.extract_strided_slice %179 {offsets = [0, 0], sizes = [32, 16], strides = [1, 1]} : vector<32x128xbf16> to vector<32x16xbf16>
    %294 = tpu.concatenate %292, %293 in 1 : vector<32x112xbf16>, vector<32x16xbf16> -> vector<32x128xbf16>
    %cst_92 = arith.constant dense<0.000000e+00> : vector<64x128xf32>
    %295 = tpu.matmul %291, %294, %cst_92 {dimension_numbers = #tpu.dot_dimension_numbers<[1], [0], [0], [1], [0, 0, 1, 1], [], []>} : vector<64x32xbf16>, vector<32x128xbf16>, vector<64x128xf32> -> vector<64x128xf32>
    %296 = arith.addf %289, %295 : vector<64x128xf32>
    %c0_93 = arith.constant 0 : index
    %c17 = arith.constant 17 : index
    %c0_94 = arith.constant 0 : index
    %c0_95 = arith.constant 0 : index
    %297 = vector.load %arg5[%c0_93, %c17, %c0_94, %c0_95] : memref<1x20x64x32xbf16, #tpu.memory_space<vmem>>, vector<1x1x64x32xbf16>
    %298 = vector.shape_cast %297 : vector<1x1x64x32xbf16> to vector<64x32xbf16>
    %299 = vector.extract_strided_slice %179 {offsets = [0, 17], sizes = [32, 111], strides = [1, 1]} : vector<32x128xbf16> to vector<32x111xbf16>
    %300 = vector.extract_strided_slice %179 {offsets = [0, 0], sizes = [32, 17], strides = [1, 1]} : vector<32x128xbf16> to vector<32x17xbf16>
    %301 = tpu.concatenate %299, %300 in 1 : vector<32x111xbf16>, vector<32x17xbf16> -> vector<32x128xbf16>
    %cst_96 = arith.constant dense<0.000000e+00> : vector<64x128xf32>
    %302 = tpu.matmul %298, %301, %cst_96 {dimension_numbers = #tpu.dot_dimension_numbers<[1], [0], [0], [1], [0, 0, 1, 1], [], []>} : vector<64x32xbf16>, vector<32x128xbf16>, vector<64x128xf32> -> vector<64x128xf32>
    %303 = arith.addf %296, %302 : vector<64x128xf32>
    %c0_97 = arith.constant 0 : index
    %c18 = arith.constant 18 : index
    %c0_98 = arith.constant 0 : index
    %c0_99 = arith.constant 0 : index
    %304 = vector.load %arg5[%c0_97, %c18, %c0_98, %c0_99] : memref<1x20x64x32xbf16, #tpu.memory_space<vmem>>, vector<1x1x64x32xbf16>
    %305 = vector.shape_cast %304 : vector<1x1x64x32xbf16> to vector<64x32xbf16>
    %306 = vector.extract_strided_slice %179 {offsets = [0, 18], sizes = [32, 110], strides = [1, 1]} : vector<32x128xbf16> to vector<32x110xbf16>
    %307 = vector.extract_strided_slice %179 {offsets = [0, 0], sizes = [32, 18], strides = [1, 1]} : vector<32x128xbf16> to vector<32x18xbf16>
    %308 = tpu.concatenate %306, %307 in 1 : vector<32x110xbf16>, vector<32x18xbf16> -> vector<32x128xbf16>
    %cst_100 = arith.constant dense<0.000000e+00> : vector<64x128xf32>
    %309 = tpu.matmul %305, %308, %cst_100 {dimension_numbers = #tpu.dot_dimension_numbers<[1], [0], [0], [1], [0, 0, 1, 1], [], []>} : vector<64x32xbf16>, vector<32x128xbf16>, vector<64x128xf32> -> vector<64x128xf32>
    %310 = arith.addf %303, %309 : vector<64x128xf32>
    %c0_101 = arith.constant 0 : index
    %c19 = arith.constant 19 : index
    %c0_102 = arith.constant 0 : index
    %c0_103 = arith.constant 0 : index
    %311 = vector.load %arg5[%c0_101, %c19, %c0_102, %c0_103] : memref<1x20x64x32xbf16, #tpu.memory_space<vmem>>, vector<1x1x64x32xbf16>
    %312 = vector.shape_cast %311 : vector<1x1x64x32xbf16> to vector<64x32xbf16>
    %313 = vector.extract_strided_slice %179 {offsets = [0, 19], sizes = [32, 109], strides = [1, 1]} : vector<32x128xbf16> to vector<32x109xbf16>
    %314 = vector.extract_strided_slice %179 {offsets = [0, 0], sizes = [32, 19], strides = [1, 1]} : vector<32x128xbf16> to vector<32x19xbf16>
    %315 = tpu.concatenate %313, %314 in 1 : vector<32x109xbf16>, vector<32x19xbf16> -> vector<32x128xbf16>
    %cst_104 = arith.constant dense<0.000000e+00> : vector<64x128xf32>
    %316 = tpu.matmul %312, %315, %cst_104 {dimension_numbers = #tpu.dot_dimension_numbers<[1], [0], [0], [1], [0, 0, 1, 1], [], []>} : vector<64x32xbf16>, vector<32x128xbf16>, vector<64x128xf32> -> vector<64x128xf32>
    %317 = arith.addf %310, %316 : vector<64x128xf32>
    %318 = vector.broadcast %10 : vector<64x1xf32> to vector<64x128xf32>
    %319 = arith.addf %317, %318 : vector<64x128xf32>
    %cst_105 = arith.constant 0.000000e+00 : f32
    %320 = vector.broadcast %cst_105 : f32 to vector<64x128xf32>
    %321 = arith.maximumf %319, %320 : vector<64x128xf32>
    %322 = vector.broadcast %3 : vector<1x128xf32> to vector<64x128xf32>
    %323 = arith.mulf %321, %322 : vector<64x128xf32>
    %324 = arith.truncf %323 : vector<64x128xf32> to vector<64x128xbf16>
    %cst_106 = arith.constant 0.000000e+00 : f32
    %325 = vector.broadcast %cst_106 : f32 to vector<32x128xf32>
    %c0_107 = arith.constant 0 : index
    %c0_108 = arith.constant 0 : index
    %c0_109 = arith.constant 0 : index
    %c0_110 = arith.constant 0 : index
    %326 = vector.load %arg7[%c0_107, %c0_108, %c0_109, %c0_110] : memref<1x20x32x64xbf16, #tpu.memory_space<vmem>>, vector<1x1x32x64xbf16>
    %327 = vector.shape_cast %326 : vector<1x1x32x64xbf16> to vector<32x64xbf16>
    %cst_111 = arith.constant dense<0.000000e+00> : vector<32x128xf32>
    %328 = tpu.matmul %327, %324, %cst_111 {dimension_numbers = #tpu.dot_dimension_numbers<[1], [0], [0], [1], [0, 0, 1, 1], [], []>} : vector<32x64xbf16>, vector<64x128xbf16>, vector<32x128xf32> -> vector<32x128xf32>
    %329 = arith.addf %325, %328 : vector<32x128xf32>
    %c0_112 = arith.constant 0 : index
    %c1_113 = arith.constant 1 : index
    %c0_114 = arith.constant 0 : index
    %c0_115 = arith.constant 0 : index
    %330 = vector.load %arg7[%c0_112, %c1_113, %c0_114, %c0_115] : memref<1x20x32x64xbf16, #tpu.memory_space<vmem>>, vector<1x1x32x64xbf16>
    %331 = vector.shape_cast %330 : vector<1x1x32x64xbf16> to vector<32x64xbf16>
    %332 = vector.extract_strided_slice %324 {offsets = [0, 127], sizes = [64, 1], strides = [1, 1]} : vector<64x128xbf16> to vector<64x1xbf16>
    %333 = vector.extract_strided_slice %324 {offsets = [0, 0], sizes = [64, 127], strides = [1, 1]} : vector<64x128xbf16> to vector<64x127xbf16>
    %334 = tpu.concatenate %332, %333 in 1 : vector<64x1xbf16>, vector<64x127xbf16> -> vector<64x128xbf16>
    %cst_116 = arith.constant dense<0.000000e+00> : vector<32x128xf32>
    %335 = tpu.matmul %331, %334, %cst_116 {dimension_numbers = #tpu.dot_dimension_numbers<[1], [0], [0], [1], [0, 0, 1, 1], [], []>} : vector<32x64xbf16>, vector<64x128xbf16>, vector<32x128xf32> -> vector<32x128xf32>
    %336 = arith.addf %329, %335 : vector<32x128xf32>
    %c0_117 = arith.constant 0 : index
    %c2_118 = arith.constant 2 : index
    %c0_119 = arith.constant 0 : index
    %c0_120 = arith.constant 0 : index
    %337 = vector.load %arg7[%c0_117, %c2_118, %c0_119, %c0_120] : memref<1x20x32x64xbf16, #tpu.memory_space<vmem>>, vector<1x1x32x64xbf16>
    %338 = vector.shape_cast %337 : vector<1x1x32x64xbf16> to vector<32x64xbf16>
    %339 = vector.extract_strided_slice %324 {offsets = [0, 126], sizes = [64, 2], strides = [1, 1]} : vector<64x128xbf16> to vector<64x2xbf16>
    %340 = vector.extract_strided_slice %324 {offsets = [0, 0], sizes = [64, 126], strides = [1, 1]} : vector<64x128xbf16> to vector<64x126xbf16>
    %341 = tpu.concatenate %339, %340 in 1 : vector<64x2xbf16>, vector<64x126xbf16> -> vector<64x128xbf16>
    %cst_121 = arith.constant dense<0.000000e+00> : vector<32x128xf32>
    %342 = tpu.matmul %338, %341, %cst_121 {dimension_numbers = #tpu.dot_dimension_numbers<[1], [0], [0], [1], [0, 0, 1, 1], [], []>} : vector<32x64xbf16>, vector<64x128xbf16>, vector<32x128xf32> -> vector<32x128xf32>
    %343 = arith.addf %336, %342 : vector<32x128xf32>
    %c0_122 = arith.constant 0 : index
    %c3_123 = arith.constant 3 : index
    %c0_124 = arith.constant 0 : index
    %c0_125 = arith.constant 0 : index
    %344 = vector.load %arg7[%c0_122, %c3_123, %c0_124, %c0_125] : memref<1x20x32x64xbf16, #tpu.memory_space<vmem>>, vector<1x1x32x64xbf16>
    %345 = vector.shape_cast %344 : vector<1x1x32x64xbf16> to vector<32x64xbf16>
    %346 = vector.extract_strided_slice %324 {offsets = [0, 125], sizes = [64, 3], strides = [1, 1]} : vector<64x128xbf16> to vector<64x3xbf16>
    %347 = vector.extract_strided_slice %324 {offsets = [0, 0], sizes = [64, 125], strides = [1, 1]} : vector<64x128xbf16> to vector<64x125xbf16>
    %348 = tpu.concatenate %346, %347 in 1 : vector<64x3xbf16>, vector<64x125xbf16> -> vector<64x128xbf16>
    %cst_126 = arith.constant dense<0.000000e+00> : vector<32x128xf32>
    %349 = tpu.matmul %345, %348, %cst_126 {dimension_numbers = #tpu.dot_dimension_numbers<[1], [0], [0], [1], [0, 0, 1, 1], [], []>} : vector<32x64xbf16>, vector<64x128xbf16>, vector<32x128xf32> -> vector<32x128xf32>
    %350 = arith.addf %343, %349 : vector<32x128xf32>
    %c0_127 = arith.constant 0 : index
    %c4_128 = arith.constant 4 : index
    %c0_129 = arith.constant 0 : index
    %c0_130 = arith.constant 0 : index
    %351 = vector.load %arg7[%c0_127, %c4_128, %c0_129, %c0_130] : memref<1x20x32x64xbf16, #tpu.memory_space<vmem>>, vector<1x1x32x64xbf16>
    %352 = vector.shape_cast %351 : vector<1x1x32x64xbf16> to vector<32x64xbf16>
    %353 = vector.extract_strided_slice %324 {offsets = [0, 124], sizes = [64, 4], strides = [1, 1]} : vector<64x128xbf16> to vector<64x4xbf16>
    %354 = vector.extract_strided_slice %324 {offsets = [0, 0], sizes = [64, 124], strides = [1, 1]} : vector<64x128xbf16> to vector<64x124xbf16>
    %355 = tpu.concatenate %353, %354 in 1 : vector<64x4xbf16>, vector<64x124xbf16> -> vector<64x128xbf16>
    %cst_131 = arith.constant dense<0.000000e+00> : vector<32x128xf32>
    %356 = tpu.matmul %352, %355, %cst_131 {dimension_numbers = #tpu.dot_dimension_numbers<[1], [0], [0], [1], [0, 0, 1, 1], [], []>} : vector<32x64xbf16>, vector<64x128xbf16>, vector<32x128xf32> -> vector<32x128xf32>
    %357 = arith.addf %350, %356 : vector<32x128xf32>
    %c0_132 = arith.constant 0 : index
    %c5_133 = arith.constant 5 : index
    %c0_134 = arith.constant 0 : index
    %c0_135 = arith.constant 0 : index
    %358 = vector.load %arg7[%c0_132, %c5_133, %c0_134, %c0_135] : memref<1x20x32x64xbf16, #tpu.memory_space<vmem>>, vector<1x1x32x64xbf16>
    %359 = vector.shape_cast %358 : vector<1x1x32x64xbf16> to vector<32x64xbf16>
    %360 = vector.extract_strided_slice %324 {offsets = [0, 123], sizes = [64, 5], strides = [1, 1]} : vector<64x128xbf16> to vector<64x5xbf16>
    %361 = vector.extract_strided_slice %324 {offsets = [0, 0], sizes = [64, 123], strides = [1, 1]} : vector<64x128xbf16> to vector<64x123xbf16>
    %362 = tpu.concatenate %360, %361 in 1 : vector<64x5xbf16>, vector<64x123xbf16> -> vector<64x128xbf16>
    %cst_136 = arith.constant dense<0.000000e+00> : vector<32x128xf32>
    %363 = tpu.matmul %359, %362, %cst_136 {dimension_numbers = #tpu.dot_dimension_numbers<[1], [0], [0], [1], [0, 0, 1, 1], [], []>} : vector<32x64xbf16>, vector<64x128xbf16>, vector<32x128xf32> -> vector<32x128xf32>
    %364 = arith.addf %357, %363 : vector<32x128xf32>
    %c0_137 = arith.constant 0 : index
    %c6_138 = arith.constant 6 : index
    %c0_139 = arith.constant 0 : index
    %c0_140 = arith.constant 0 : index
    %365 = vector.load %arg7[%c0_137, %c6_138, %c0_139, %c0_140] : memref<1x20x32x64xbf16, #tpu.memory_space<vmem>>, vector<1x1x32x64xbf16>
    %366 = vector.shape_cast %365 : vector<1x1x32x64xbf16> to vector<32x64xbf16>
    %367 = vector.extract_strided_slice %324 {offsets = [0, 122], sizes = [64, 6], strides = [1, 1]} : vector<64x128xbf16> to vector<64x6xbf16>
    %368 = vector.extract_strided_slice %324 {offsets = [0, 0], sizes = [64, 122], strides = [1, 1]} : vector<64x128xbf16> to vector<64x122xbf16>
    %369 = tpu.concatenate %367, %368 in 1 : vector<64x6xbf16>, vector<64x122xbf16> -> vector<64x128xbf16>
    %cst_141 = arith.constant dense<0.000000e+00> : vector<32x128xf32>
    %370 = tpu.matmul %366, %369, %cst_141 {dimension_numbers = #tpu.dot_dimension_numbers<[1], [0], [0], [1], [0, 0, 1, 1], [], []>} : vector<32x64xbf16>, vector<64x128xbf16>, vector<32x128xf32> -> vector<32x128xf32>
    %371 = arith.addf %364, %370 : vector<32x128xf32>
    %c0_142 = arith.constant 0 : index
    %c7_143 = arith.constant 7 : index
    %c0_144 = arith.constant 0 : index
    %c0_145 = arith.constant 0 : index
    %372 = vector.load %arg7[%c0_142, %c7_143, %c0_144, %c0_145] : memref<1x20x32x64xbf16, #tpu.memory_space<vmem>>, vector<1x1x32x64xbf16>
    %373 = vector.shape_cast %372 : vector<1x1x32x64xbf16> to vector<32x64xbf16>
    %374 = vector.extract_strided_slice %324 {offsets = [0, 121], sizes = [64, 7], strides = [1, 1]} : vector<64x128xbf16> to vector<64x7xbf16>
    %375 = vector.extract_strided_slice %324 {offsets = [0, 0], sizes = [64, 121], strides = [1, 1]} : vector<64x128xbf16> to vector<64x121xbf16>
    %376 = tpu.concatenate %374, %375 in 1 : vector<64x7xbf16>, vector<64x121xbf16> -> vector<64x128xbf16>
    %cst_146 = arith.constant dense<0.000000e+00> : vector<32x128xf32>
    %377 = tpu.matmul %373, %376, %cst_146 {dimension_numbers = #tpu.dot_dimension_numbers<[1], [0], [0], [1], [0, 0, 1, 1], [], []>} : vector<32x64xbf16>, vector<64x128xbf16>, vector<32x128xf32> -> vector<32x128xf32>
    %378 = arith.addf %371, %377 : vector<32x128xf32>
    %c0_147 = arith.constant 0 : index
    %c8_148 = arith.constant 8 : index
    %c0_149 = arith.constant 0 : index
    %c0_150 = arith.constant 0 : index
    %379 = vector.load %arg7[%c0_147, %c8_148, %c0_149, %c0_150] : memref<1x20x32x64xbf16, #tpu.memory_space<vmem>>, vector<1x1x32x64xbf16>
    %380 = vector.shape_cast %379 : vector<1x1x32x64xbf16> to vector<32x64xbf16>
    %381 = vector.extract_strided_slice %324 {offsets = [0, 120], sizes = [64, 8], strides = [1, 1]} : vector<64x128xbf16> to vector<64x8xbf16>
    %382 = vector.extract_strided_slice %324 {offsets = [0, 0], sizes = [64, 120], strides = [1, 1]} : vector<64x128xbf16> to vector<64x120xbf16>
    %383 = tpu.concatenate %381, %382 in 1 : vector<64x8xbf16>, vector<64x120xbf16> -> vector<64x128xbf16>
    %cst_151 = arith.constant dense<0.000000e+00> : vector<32x128xf32>
    %384 = tpu.matmul %380, %383, %cst_151 {dimension_numbers = #tpu.dot_dimension_numbers<[1], [0], [0], [1], [0, 0, 1, 1], [], []>} : vector<32x64xbf16>, vector<64x128xbf16>, vector<32x128xf32> -> vector<32x128xf32>
    %385 = arith.addf %378, %384 : vector<32x128xf32>
    %c0_152 = arith.constant 0 : index
    %c9_153 = arith.constant 9 : index
    %c0_154 = arith.constant 0 : index
    %c0_155 = arith.constant 0 : index
    %386 = vector.load %arg7[%c0_152, %c9_153, %c0_154, %c0_155] : memref<1x20x32x64xbf16, #tpu.memory_space<vmem>>, vector<1x1x32x64xbf16>
    %387 = vector.shape_cast %386 : vector<1x1x32x64xbf16> to vector<32x64xbf16>
    %388 = vector.extract_strided_slice %324 {offsets = [0, 119], sizes = [64, 9], strides = [1, 1]} : vector<64x128xbf16> to vector<64x9xbf16>
    %389 = vector.extract_strided_slice %324 {offsets = [0, 0], sizes = [64, 119], strides = [1, 1]} : vector<64x128xbf16> to vector<64x119xbf16>
    %390 = tpu.concatenate %388, %389 in 1 : vector<64x9xbf16>, vector<64x119xbf16> -> vector<64x128xbf16>
    %cst_156 = arith.constant dense<0.000000e+00> : vector<32x128xf32>
    %391 = tpu.matmul %387, %390, %cst_156 {dimension_numbers = #tpu.dot_dimension_numbers<[1], [0], [0], [1], [0, 0, 1, 1], [], []>} : vector<32x64xbf16>, vector<64x128xbf16>, vector<32x128xf32> -> vector<32x128xf32>
    %392 = arith.addf %385, %391 : vector<32x128xf32>
    %c0_157 = arith.constant 0 : index
    %c10_158 = arith.constant 10 : index
    %c0_159 = arith.constant 0 : index
    %c0_160 = arith.constant 0 : index
    %393 = vector.load %arg7[%c0_157, %c10_158, %c0_159, %c0_160] : memref<1x20x32x64xbf16, #tpu.memory_space<vmem>>, vector<1x1x32x64xbf16>
    %394 = vector.shape_cast %393 : vector<1x1x32x64xbf16> to vector<32x64xbf16>
    %395 = vector.extract_strided_slice %324 {offsets = [0, 118], sizes = [64, 10], strides = [1, 1]} : vector<64x128xbf16> to vector<64x10xbf16>
    %396 = vector.extract_strided_slice %324 {offsets = [0, 0], sizes = [64, 118], strides = [1, 1]} : vector<64x128xbf16> to vector<64x118xbf16>
    %397 = tpu.concatenate %395, %396 in 1 : vector<64x10xbf16>, vector<64x118xbf16> -> vector<64x128xbf16>
    %cst_161 = arith.constant dense<0.000000e+00> : vector<32x128xf32>
    %398 = tpu.matmul %394, %397, %cst_161 {dimension_numbers = #tpu.dot_dimension_numbers<[1], [0], [0], [1], [0, 0, 1, 1], [], []>} : vector<32x64xbf16>, vector<64x128xbf16>, vector<32x128xf32> -> vector<32x128xf32>
    %399 = arith.addf %392, %398 : vector<32x128xf32>
    %c0_162 = arith.constant 0 : index
    %c11_163 = arith.constant 11 : index
    %c0_164 = arith.constant 0 : index
    %c0_165 = arith.constant 0 : index
    %400 = vector.load %arg7[%c0_162, %c11_163, %c0_164, %c0_165] : memref<1x20x32x64xbf16, #tpu.memory_space<vmem>>, vector<1x1x32x64xbf16>
    %401 = vector.shape_cast %400 : vector<1x1x32x64xbf16> to vector<32x64xbf16>
    %402 = vector.extract_strided_slice %324 {offsets = [0, 117], sizes = [64, 11], strides = [1, 1]} : vector<64x128xbf16> to vector<64x11xbf16>
    %403 = vector.extract_strided_slice %324 {offsets = [0, 0], sizes = [64, 117], strides = [1, 1]} : vector<64x128xbf16> to vector<64x117xbf16>
    %404 = tpu.concatenate %402, %403 in 1 : vector<64x11xbf16>, vector<64x117xbf16> -> vector<64x128xbf16>
    %cst_166 = arith.constant dense<0.000000e+00> : vector<32x128xf32>
    %405 = tpu.matmul %401, %404, %cst_166 {dimension_numbers = #tpu.dot_dimension_numbers<[1], [0], [0], [1], [0, 0, 1, 1], [], []>} : vector<32x64xbf16>, vector<64x128xbf16>, vector<32x128xf32> -> vector<32x128xf32>
    %406 = arith.addf %399, %405 : vector<32x128xf32>
    %c0_167 = arith.constant 0 : index
    %c12_168 = arith.constant 12 : index
    %c0_169 = arith.constant 0 : index
    %c0_170 = arith.constant 0 : index
    %407 = vector.load %arg7[%c0_167, %c12_168, %c0_169, %c0_170] : memref<1x20x32x64xbf16, #tpu.memory_space<vmem>>, vector<1x1x32x64xbf16>
    %408 = vector.shape_cast %407 : vector<1x1x32x64xbf16> to vector<32x64xbf16>
    %409 = vector.extract_strided_slice %324 {offsets = [0, 116], sizes = [64, 12], strides = [1, 1]} : vector<64x128xbf16> to vector<64x12xbf16>
    %410 = vector.extract_strided_slice %324 {offsets = [0, 0], sizes = [64, 116], strides = [1, 1]} : vector<64x128xbf16> to vector<64x116xbf16>
    %411 = tpu.concatenate %409, %410 in 1 : vector<64x12xbf16>, vector<64x116xbf16> -> vector<64x128xbf16>
    %cst_171 = arith.constant dense<0.000000e+00> : vector<32x128xf32>
    %412 = tpu.matmul %408, %411, %cst_171 {dimension_numbers = #tpu.dot_dimension_numbers<[1], [0], [0], [1], [0, 0, 1, 1], [], []>} : vector<32x64xbf16>, vector<64x128xbf16>, vector<32x128xf32> -> vector<32x128xf32>
    %413 = arith.addf %406, %412 : vector<32x128xf32>
    %c0_172 = arith.constant 0 : index
    %c13_173 = arith.constant 13 : index
    %c0_174 = arith.constant 0 : index
    %c0_175 = arith.constant 0 : index
    %414 = vector.load %arg7[%c0_172, %c13_173, %c0_174, %c0_175] : memref<1x20x32x64xbf16, #tpu.memory_space<vmem>>, vector<1x1x32x64xbf16>
    %415 = vector.shape_cast %414 : vector<1x1x32x64xbf16> to vector<32x64xbf16>
    %416 = vector.extract_strided_slice %324 {offsets = [0, 115], sizes = [64, 13], strides = [1, 1]} : vector<64x128xbf16> to vector<64x13xbf16>
    %417 = vector.extract_strided_slice %324 {offsets = [0, 0], sizes = [64, 115], strides = [1, 1]} : vector<64x128xbf16> to vector<64x115xbf16>
    %418 = tpu.concatenate %416, %417 in 1 : vector<64x13xbf16>, vector<64x115xbf16> -> vector<64x128xbf16>
    %cst_176 = arith.constant dense<0.000000e+00> : vector<32x128xf32>
    %419 = tpu.matmul %415, %418, %cst_176 {dimension_numbers = #tpu.dot_dimension_numbers<[1], [0], [0], [1], [0, 0, 1, 1], [], []>} : vector<32x64xbf16>, vector<64x128xbf16>, vector<32x128xf32> -> vector<32x128xf32>
    %420 = arith.addf %413, %419 : vector<32x128xf32>
    %c0_177 = arith.constant 0 : index
    %c14_178 = arith.constant 14 : index
    %c0_179 = arith.constant 0 : index
    %c0_180 = arith.constant 0 : index
    %421 = vector.load %arg7[%c0_177, %c14_178, %c0_179, %c0_180] : memref<1x20x32x64xbf16, #tpu.memory_space<vmem>>, vector<1x1x32x64xbf16>
    %422 = vector.shape_cast %421 : vector<1x1x32x64xbf16> to vector<32x64xbf16>
    %423 = vector.extract_strided_slice %324 {offsets = [0, 114], sizes = [64, 14], strides = [1, 1]} : vector<64x128xbf16> to vector<64x14xbf16>
    %424 = vector.extract_strided_slice %324 {offsets = [0, 0], sizes = [64, 114], strides = [1, 1]} : vector<64x128xbf16> to vector<64x114xbf16>
    %425 = tpu.concatenate %423, %424 in 1 : vector<64x14xbf16>, vector<64x114xbf16> -> vector<64x128xbf16>
    %cst_181 = arith.constant dense<0.000000e+00> : vector<32x128xf32>
    %426 = tpu.matmul %422, %425, %cst_181 {dimension_numbers = #tpu.dot_dimension_numbers<[1], [0], [0], [1], [0, 0, 1, 1], [], []>} : vector<32x64xbf16>, vector<64x128xbf16>, vector<32x128xf32> -> vector<32x128xf32>
    %427 = arith.addf %420, %426 : vector<32x128xf32>
    %c0_182 = arith.constant 0 : index
    %c15_183 = arith.constant 15 : index
    %c0_184 = arith.constant 0 : index
    %c0_185 = arith.constant 0 : index
    %428 = vector.load %arg7[%c0_182, %c15_183, %c0_184, %c0_185] : memref<1x20x32x64xbf16, #tpu.memory_space<vmem>>, vector<1x1x32x64xbf16>
    %429 = vector.shape_cast %428 : vector<1x1x32x64xbf16> to vector<32x64xbf16>
    %430 = vector.extract_strided_slice %324 {offsets = [0, 113], sizes = [64, 15], strides = [1, 1]} : vector<64x128xbf16> to vector<64x15xbf16>
    %431 = vector.extract_strided_slice %324 {offsets = [0, 0], sizes = [64, 113], strides = [1, 1]} : vector<64x128xbf16> to vector<64x113xbf16>
    %432 = tpu.concatenate %430, %431 in 1 : vector<64x15xbf16>, vector<64x113xbf16> -> vector<64x128xbf16>
    %cst_186 = arith.constant dense<0.000000e+00> : vector<32x128xf32>
    %433 = tpu.matmul %429, %432, %cst_186 {dimension_numbers = #tpu.dot_dimension_numbers<[1], [0], [0], [1], [0, 0, 1, 1], [], []>} : vector<32x64xbf16>, vector<64x128xbf16>, vector<32x128xf32> -> vector<32x128xf32>
    %434 = arith.addf %427, %433 : vector<32x128xf32>
    %c0_187 = arith.constant 0 : index
    %c16_188 = arith.constant 16 : index
    %c0_189 = arith.constant 0 : index
    %c0_190 = arith.constant 0 : index
    %435 = vector.load %arg7[%c0_187, %c16_188, %c0_189, %c0_190] : memref<1x20x32x64xbf16, #tpu.memory_space<vmem>>, vector<1x1x32x64xbf16>
    %436 = vector.shape_cast %435 : vector<1x1x32x64xbf16> to vector<32x64xbf16>
    %437 = vector.extract_strided_slice %324 {offsets = [0, 112], sizes = [64, 16], strides = [1, 1]} : vector<64x128xbf16> to vector<64x16xbf16>
    %438 = vector.extract_strided_slice %324 {offsets = [0, 0], sizes = [64, 112], strides = [1, 1]} : vector<64x128xbf16> to vector<64x112xbf16>
    %439 = tpu.concatenate %437, %438 in 1 : vector<64x16xbf16>, vector<64x112xbf16> -> vector<64x128xbf16>
    %cst_191 = arith.constant dense<0.000000e+00> : vector<32x128xf32>
    %440 = tpu.matmul %436, %439, %cst_191 {dimension_numbers = #tpu.dot_dimension_numbers<[1], [0], [0], [1], [0, 0, 1, 1], [], []>} : vector<32x64xbf16>, vector<64x128xbf16>, vector<32x128xf32> -> vector<32x128xf32>
    %441 = arith.addf %434, %440 : vector<32x128xf32>
    %c0_192 = arith.constant 0 : index
    %c17_193 = arith.constant 17 : index
    %c0_194 = arith.constant 0 : index
    %c0_195 = arith.constant 0 : index
    %442 = vector.load %arg7[%c0_192, %c17_193, %c0_194, %c0_195] : memref<1x20x32x64xbf16, #tpu.memory_space<vmem>>, vector<1x1x32x64xbf16>
    %443 = vector.shape_cast %442 : vector<1x1x32x64xbf16> to vector<32x64xbf16>
    %444 = vector.extract_strided_slice %324 {offsets = [0, 111], sizes = [64, 17], strides = [1, 1]} : vector<64x128xbf16> to vector<64x17xbf16>
    %445 = vector.extract_strided_slice %324 {offsets = [0, 0], sizes = [64, 111], strides = [1, 1]} : vector<64x128xbf16> to vector<64x111xbf16>
    %446 = tpu.concatenate %444, %445 in 1 : vector<64x17xbf16>, vector<64x111xbf16> -> vector<64x128xbf16>
    %cst_196 = arith.constant dense<0.000000e+00> : vector<32x128xf32>
    %447 = tpu.matmul %443, %446, %cst_196 {dimension_numbers = #tpu.dot_dimension_numbers<[1], [0], [0], [1], [0, 0, 1, 1], [], []>} : vector<32x64xbf16>, vector<64x128xbf16>, vector<32x128xf32> -> vector<32x128xf32>
    %448 = arith.addf %441, %447 : vector<32x128xf32>
    %c0_197 = arith.constant 0 : index
    %c18_198 = arith.constant 18 : index
    %c0_199 = arith.constant 0 : index
    %c0_200 = arith.constant 0 : index
    %449 = vector.load %arg7[%c0_197, %c18_198, %c0_199, %c0_200] : memref<1x20x32x64xbf16, #tpu.memory_space<vmem>>, vector<1x1x32x64xbf16>
    %450 = vector.shape_cast %449 : vector<1x1x32x64xbf16> to vector<32x64xbf16>
    %451 = vector.extract_strided_slice %324 {offsets = [0, 110], sizes = [64, 18], strides = [1, 1]} : vector<64x128xbf16> to vector<64x18xbf16>
    %452 = vector.extract_strided_slice %324 {offsets = [0, 0], sizes = [64, 110], strides = [1, 1]} : vector<64x128xbf16> to vector<64x110xbf16>
    %453 = tpu.concatenate %451, %452 in 1 : vector<64x18xbf16>, vector<64x110xbf16> -> vector<64x128xbf16>
    %cst_201 = arith.constant dense<0.000000e+00> : vector<32x128xf32>
    %454 = tpu.matmul %450, %453, %cst_201 {dimension_numbers = #tpu.dot_dimension_numbers<[1], [0], [0], [1], [0, 0, 1, 1], [], []>} : vector<32x64xbf16>, vector<64x128xbf16>, vector<32x128xf32> -> vector<32x128xf32>
    %455 = arith.addf %448, %454 : vector<32x128xf32>
    %c0_202 = arith.constant 0 : index
    %c19_203 = arith.constant 19 : index
    %c0_204 = arith.constant 0 : index
    %c0_205 = arith.constant 0 : index
    %456 = vector.load %arg7[%c0_202, %c19_203, %c0_204, %c0_205] : memref<1x20x32x64xbf16, #tpu.memory_space<vmem>>, vector<1x1x32x64xbf16>
    %457 = vector.shape_cast %456 : vector<1x1x32x64xbf16> to vector<32x64xbf16>
    %458 = vector.extract_strided_slice %324 {offsets = [0, 109], sizes = [64, 19], strides = [1, 1]} : vector<64x128xbf16> to vector<64x19xbf16>
    %459 = vector.extract_strided_slice %324 {offsets = [0, 0], sizes = [64, 109], strides = [1, 1]} : vector<64x128xbf16> to vector<64x109xbf16>
    %460 = tpu.concatenate %458, %459 in 1 : vector<64x19xbf16>, vector<64x109xbf16> -> vector<64x128xbf16>
    %cst_206 = arith.constant dense<0.000000e+00> : vector<32x128xf32>
    %461 = tpu.matmul %457, %460, %cst_206 {dimension_numbers = #tpu.dot_dimension_numbers<[1], [0], [0], [1], [0, 0, 1, 1], [], []>} : vector<32x64xbf16>, vector<64x128xbf16>, vector<32x128xf32> -> vector<32x128xf32>
    %462 = arith.addf %455, %461 : vector<32x128xf32>
    %463 = vector.broadcast %12 : vector<32x1xf32> to vector<32x128xf32>
    %464 = arith.addf %462, %463 : vector<32x128xf32>
    %cst_207 = arith.constant 0.000000e+00 : f32
    %465 = vector.broadcast %cst_207 : f32 to vector<32x128xf32>
    %466 = arith.maximumf %464, %465 : vector<32x128xf32>
    %467 = vector.broadcast %4 : vector<1x128xf32> to vector<32x128xf32>
    %468 = arith.mulf %466, %467 : vector<32x128xf32>
    %cst_208 = arith.constant 0.000000e+00 : f32
    %469 = vector.broadcast %cst_208 : f32 to vector<32x128xf32>
    %470 = vector.extract_strided_slice %14 {offsets = [0, 0], sizes = [32, 1], strides = [1, 1]} : vector<32x20xf32> to vector<32x1xf32>
    %471 = vector.broadcast %470 : vector<32x1xf32> to vector<32x128xf32>
    %472 = arith.mulf %471, %468 : vector<32x128xf32>
    %473 = arith.addf %469, %472 : vector<32x128xf32>
    %474 = vector.extract_strided_slice %14 {offsets = [0, 1], sizes = [32, 1], strides = [1, 1]} : vector<32x20xf32> to vector<32x1xf32>
    %475 = vector.extract_strided_slice %468 {offsets = [0, 127], sizes = [32, 1], strides = [1, 1]} : vector<32x128xf32> to vector<32x1xf32>
    %476 = vector.extract_strided_slice %468 {offsets = [0, 0], sizes = [32, 127], strides = [1, 1]} : vector<32x128xf32> to vector<32x127xf32>
    %477 = tpu.concatenate %475, %476 in 1 : vector<32x1xf32>, vector<32x127xf32> -> vector<32x128xf32>
    %478 = vector.broadcast %474 : vector<32x1xf32> to vector<32x128xf32>
    %479 = arith.mulf %478, %477 : vector<32x128xf32>
    %480 = arith.addf %473, %479 : vector<32x128xf32>
    %481 = vector.extract_strided_slice %14 {offsets = [0, 2], sizes = [32, 1], strides = [1, 1]} : vector<32x20xf32> to vector<32x1xf32>
    %482 = vector.extract_strided_slice %468 {offsets = [0, 126], sizes = [32, 2], strides = [1, 1]} : vector<32x128xf32> to vector<32x2xf32>
    %483 = vector.extract_strided_slice %468 {offsets = [0, 0], sizes = [32, 126], strides = [1, 1]} : vector<32x128xf32> to vector<32x126xf32>
    %484 = tpu.concatenate %482, %483 in 1 : vector<32x2xf32>, vector<32x126xf32> -> vector<32x128xf32>
    %485 = vector.broadcast %481 : vector<32x1xf32> to vector<32x128xf32>
    %486 = arith.mulf %485, %484 : vector<32x128xf32>
    %487 = arith.addf %480, %486 : vector<32x128xf32>
    %488 = vector.extract_strided_slice %14 {offsets = [0, 3], sizes = [32, 1], strides = [1, 1]} : vector<32x20xf32> to vector<32x1xf32>
    %489 = vector.extract_strided_slice %468 {offsets = [0, 125], sizes = [32, 3], strides = [1, 1]} : vector<32x128xf32> to vector<32x3xf32>
    %490 = vector.extract_strided_slice %468 {offsets = [0, 0], sizes = [32, 125], strides = [1, 1]} : vector<32x128xf32> to vector<32x125xf32>
    %491 = tpu.concatenate %489, %490 in 1 : vector<32x3xf32>, vector<32x125xf32> -> vector<32x128xf32>
    %492 = vector.broadcast %488 : vector<32x1xf32> to vector<32x128xf32>
    %493 = arith.mulf %492, %491 : vector<32x128xf32>
    %494 = arith.addf %487, %493 : vector<32x128xf32>
    %495 = vector.extract_strided_slice %14 {offsets = [0, 4], sizes = [32, 1], strides = [1, 1]} : vector<32x20xf32> to vector<32x1xf32>
    %496 = vector.extract_strided_slice %468 {offsets = [0, 124], sizes = [32, 4], strides = [1, 1]} : vector<32x128xf32> to vector<32x4xf32>
    %497 = vector.extract_strided_slice %468 {offsets = [0, 0], sizes = [32, 124], strides = [1, 1]} : vector<32x128xf32> to vector<32x124xf32>
    %498 = tpu.concatenate %496, %497 in 1 : vector<32x4xf32>, vector<32x124xf32> -> vector<32x128xf32>
    %499 = vector.broadcast %495 : vector<32x1xf32> to vector<32x128xf32>
    %500 = arith.mulf %499, %498 : vector<32x128xf32>
    %501 = arith.addf %494, %500 : vector<32x128xf32>
    %502 = vector.extract_strided_slice %14 {offsets = [0, 5], sizes = [32, 1], strides = [1, 1]} : vector<32x20xf32> to vector<32x1xf32>
    %503 = vector.extract_strided_slice %468 {offsets = [0, 123], sizes = [32, 5], strides = [1, 1]} : vector<32x128xf32> to vector<32x5xf32>
    %504 = vector.extract_strided_slice %468 {offsets = [0, 0], sizes = [32, 123], strides = [1, 1]} : vector<32x128xf32> to vector<32x123xf32>
    %505 = tpu.concatenate %503, %504 in 1 : vector<32x5xf32>, vector<32x123xf32> -> vector<32x128xf32>
    %506 = vector.broadcast %502 : vector<32x1xf32> to vector<32x128xf32>
    %507 = arith.mulf %506, %505 : vector<32x128xf32>
    %508 = arith.addf %501, %507 : vector<32x128xf32>
    %509 = vector.extract_strided_slice %14 {offsets = [0, 6], sizes = [32, 1], strides = [1, 1]} : vector<32x20xf32> to vector<32x1xf32>
    %510 = vector.extract_strided_slice %468 {offsets = [0, 122], sizes = [32, 6], strides = [1, 1]} : vector<32x128xf32> to vector<32x6xf32>
    %511 = vector.extract_strided_slice %468 {offsets = [0, 0], sizes = [32, 122], strides = [1, 1]} : vector<32x128xf32> to vector<32x122xf32>
    %512 = tpu.concatenate %510, %511 in 1 : vector<32x6xf32>, vector<32x122xf32> -> vector<32x128xf32>
    %513 = vector.broadcast %509 : vector<32x1xf32> to vector<32x128xf32>
    %514 = arith.mulf %513, %512 : vector<32x128xf32>
    %515 = arith.addf %508, %514 : vector<32x128xf32>
    %516 = vector.extract_strided_slice %14 {offsets = [0, 7], sizes = [32, 1], strides = [1, 1]} : vector<32x20xf32> to vector<32x1xf32>
    %517 = vector.extract_strided_slice %468 {offsets = [0, 121], sizes = [32, 7], strides = [1, 1]} : vector<32x128xf32> to vector<32x7xf32>
    %518 = vector.extract_strided_slice %468 {offsets = [0, 0], sizes = [32, 121], strides = [1, 1]} : vector<32x128xf32> to vector<32x121xf32>
    %519 = tpu.concatenate %517, %518 in 1 : vector<32x7xf32>, vector<32x121xf32> -> vector<32x128xf32>
    %520 = vector.broadcast %516 : vector<32x1xf32> to vector<32x128xf32>
    %521 = arith.mulf %520, %519 : vector<32x128xf32>
    %522 = arith.addf %515, %521 : vector<32x128xf32>
    %523 = vector.extract_strided_slice %14 {offsets = [0, 8], sizes = [32, 1], strides = [1, 1]} : vector<32x20xf32> to vector<32x1xf32>
    %524 = vector.extract_strided_slice %468 {offsets = [0, 120], sizes = [32, 8], strides = [1, 1]} : vector<32x128xf32> to vector<32x8xf32>
    %525 = vector.extract_strided_slice %468 {offsets = [0, 0], sizes = [32, 120], strides = [1, 1]} : vector<32x128xf32> to vector<32x120xf32>
    %526 = tpu.concatenate %524, %525 in 1 : vector<32x8xf32>, vector<32x120xf32> -> vector<32x128xf32>
    %527 = vector.broadcast %523 : vector<32x1xf32> to vector<32x128xf32>
    %528 = arith.mulf %527, %526 : vector<32x128xf32>
    %529 = arith.addf %522, %528 : vector<32x128xf32>
    %530 = vector.extract_strided_slice %14 {offsets = [0, 9], sizes = [32, 1], strides = [1, 1]} : vector<32x20xf32> to vector<32x1xf32>
    %531 = vector.extract_strided_slice %468 {offsets = [0, 119], sizes = [32, 9], strides = [1, 1]} : vector<32x128xf32> to vector<32x9xf32>
    %532 = vector.extract_strided_slice %468 {offsets = [0, 0], sizes = [32, 119], strides = [1, 1]} : vector<32x128xf32> to vector<32x119xf32>
    %533 = tpu.concatenate %531, %532 in 1 : vector<32x9xf32>, vector<32x119xf32> -> vector<32x128xf32>
    %534 = vector.broadcast %530 : vector<32x1xf32> to vector<32x128xf32>
    %535 = arith.mulf %534, %533 : vector<32x128xf32>
    %536 = arith.addf %529, %535 : vector<32x128xf32>
    %537 = vector.extract_strided_slice %14 {offsets = [0, 10], sizes = [32, 1], strides = [1, 1]} : vector<32x20xf32> to vector<32x1xf32>
    %538 = vector.extract_strided_slice %468 {offsets = [0, 118], sizes = [32, 10], strides = [1, 1]} : vector<32x128xf32> to vector<32x10xf32>
    %539 = vector.extract_strided_slice %468 {offsets = [0, 0], sizes = [32, 118], strides = [1, 1]} : vector<32x128xf32> to vector<32x118xf32>
    %540 = tpu.concatenate %538, %539 in 1 : vector<32x10xf32>, vector<32x118xf32> -> vector<32x128xf32>
    %541 = vector.broadcast %537 : vector<32x1xf32> to vector<32x128xf32>
    %542 = arith.mulf %541, %540 : vector<32x128xf32>
    %543 = arith.addf %536, %542 : vector<32x128xf32>
    %544 = vector.extract_strided_slice %14 {offsets = [0, 11], sizes = [32, 1], strides = [1, 1]} : vector<32x20xf32> to vector<32x1xf32>
    %545 = vector.extract_strided_slice %468 {offsets = [0, 117], sizes = [32, 11], strides = [1, 1]} : vector<32x128xf32> to vector<32x11xf32>
    %546 = vector.extract_strided_slice %468 {offsets = [0, 0], sizes = [32, 117], strides = [1, 1]} : vector<32x128xf32> to vector<32x117xf32>
    %547 = tpu.concatenate %545, %546 in 1 : vector<32x11xf32>, vector<32x117xf32> -> vector<32x128xf32>
    %548 = vector.broadcast %544 : vector<32x1xf32> to vector<32x128xf32>
    %549 = arith.mulf %548, %547 : vector<32x128xf32>
    %550 = arith.addf %543, %549 : vector<32x128xf32>
    %551 = vector.extract_strided_slice %14 {offsets = [0, 12], sizes = [32, 1], strides = [1, 1]} : vector<32x20xf32> to vector<32x1xf32>
    %552 = vector.extract_strided_slice %468 {offsets = [0, 116], sizes = [32, 12], strides = [1, 1]} : vector<32x128xf32> to vector<32x12xf32>
    %553 = vector.extract_strided_slice %468 {offsets = [0, 0], sizes = [32, 116], strides = [1, 1]} : vector<32x128xf32> to vector<32x116xf32>
    %554 = tpu.concatenate %552, %553 in 1 : vector<32x12xf32>, vector<32x116xf32> -> vector<32x128xf32>
    %555 = vector.broadcast %551 : vector<32x1xf32> to vector<32x128xf32>
    %556 = arith.mulf %555, %554 : vector<32x128xf32>
    %557 = arith.addf %550, %556 : vector<32x128xf32>
    %558 = vector.extract_strided_slice %14 {offsets = [0, 13], sizes = [32, 1], strides = [1, 1]} : vector<32x20xf32> to vector<32x1xf32>
    %559 = vector.extract_strided_slice %468 {offsets = [0, 115], sizes = [32, 13], strides = [1, 1]} : vector<32x128xf32> to vector<32x13xf32>
    %560 = vector.extract_strided_slice %468 {offsets = [0, 0], sizes = [32, 115], strides = [1, 1]} : vector<32x128xf32> to vector<32x115xf32>
    %561 = tpu.concatenate %559, %560 in 1 : vector<32x13xf32>, vector<32x115xf32> -> vector<32x128xf32>
    %562 = vector.broadcast %558 : vector<32x1xf32> to vector<32x128xf32>
    %563 = arith.mulf %562, %561 : vector<32x128xf32>
    %564 = arith.addf %557, %563 : vector<32x128xf32>
    %565 = vector.extract_strided_slice %14 {offsets = [0, 14], sizes = [32, 1], strides = [1, 1]} : vector<32x20xf32> to vector<32x1xf32>
    %566 = vector.extract_strided_slice %468 {offsets = [0, 114], sizes = [32, 14], strides = [1, 1]} : vector<32x128xf32> to vector<32x14xf32>
    %567 = vector.extract_strided_slice %468 {offsets = [0, 0], sizes = [32, 114], strides = [1, 1]} : vector<32x128xf32> to vector<32x114xf32>
    %568 = tpu.concatenate %566, %567 in 1 : vector<32x14xf32>, vector<32x114xf32> -> vector<32x128xf32>
    %569 = vector.broadcast %565 : vector<32x1xf32> to vector<32x128xf32>
    %570 = arith.mulf %569, %568 : vector<32x128xf32>
    %571 = arith.addf %564, %570 : vector<32x128xf32>
    %572 = vector.extract_strided_slice %14 {offsets = [0, 15], sizes = [32, 1], strides = [1, 1]} : vector<32x20xf32> to vector<32x1xf32>
    %573 = vector.extract_strided_slice %468 {offsets = [0, 113], sizes = [32, 15], strides = [1, 1]} : vector<32x128xf32> to vector<32x15xf32>
    %574 = vector.extract_strided_slice %468 {offsets = [0, 0], sizes = [32, 113], strides = [1, 1]} : vector<32x128xf32> to vector<32x113xf32>
    %575 = tpu.concatenate %573, %574 in 1 : vector<32x15xf32>, vector<32x113xf32> -> vector<32x128xf32>
    %576 = vector.broadcast %572 : vector<32x1xf32> to vector<32x128xf32>
    %577 = arith.mulf %576, %575 : vector<32x128xf32>
    %578 = arith.addf %571, %577 : vector<32x128xf32>
    %579 = vector.extract_strided_slice %14 {offsets = [0, 16], sizes = [32, 1], strides = [1, 1]} : vector<32x20xf32> to vector<32x1xf32>
    %580 = vector.extract_strided_slice %468 {offsets = [0, 112], sizes = [32, 16], strides = [1, 1]} : vector<32x128xf32> to vector<32x16xf32>
    %581 = vector.extract_strided_slice %468 {offsets = [0, 0], sizes = [32, 112], strides = [1, 1]} : vector<32x128xf32> to vector<32x112xf32>
    %582 = tpu.concatenate %580, %581 in 1 : vector<32x16xf32>, vector<32x112xf32> -> vector<32x128xf32>
    %583 = vector.broadcast %579 : vector<32x1xf32> to vector<32x128xf32>
    %584 = arith.mulf %583, %582 : vector<32x128xf32>
    %585 = arith.addf %578, %584 : vector<32x128xf32>
    %586 = vector.extract_strided_slice %14 {offsets = [0, 17], sizes = [32, 1], strides = [1, 1]} : vector<32x20xf32> to vector<32x1xf32>
    %587 = vector.extract_strided_slice %468 {offsets = [0, 111], sizes = [32, 17], strides = [1, 1]} : vector<32x128xf32> to vector<32x17xf32>
    %588 = vector.extract_strided_slice %468 {offsets = [0, 0], sizes = [32, 111], strides = [1, 1]} : vector<32x128xf32> to vector<32x111xf32>
    %589 = tpu.concatenate %587, %588 in 1 : vector<32x17xf32>, vector<32x111xf32> -> vector<32x128xf32>
    %590 = vector.broadcast %586 : vector<32x1xf32> to vector<32x128xf32>
    %591 = arith.mulf %590, %589 : vector<32x128xf32>
    %592 = arith.addf %585, %591 : vector<32x128xf32>
    %593 = vector.extract_strided_slice %14 {offsets = [0, 18], sizes = [32, 1], strides = [1, 1]} : vector<32x20xf32> to vector<32x1xf32>
    %594 = vector.extract_strided_slice %468 {offsets = [0, 110], sizes = [32, 18], strides = [1, 1]} : vector<32x128xf32> to vector<32x18xf32>
    %595 = vector.extract_strided_slice %468 {offsets = [0, 0], sizes = [32, 110], strides = [1, 1]} : vector<32x128xf32> to vector<32x110xf32>
    %596 = tpu.concatenate %594, %595 in 1 : vector<32x18xf32>, vector<32x110xf32> -> vector<32x128xf32>
    %597 = vector.broadcast %593 : vector<32x1xf32> to vector<32x128xf32>
    %598 = arith.mulf %597, %596 : vector<32x128xf32>
    %599 = arith.addf %592, %598 : vector<32x128xf32>
    %600 = vector.extract_strided_slice %14 {offsets = [0, 19], sizes = [32, 1], strides = [1, 1]} : vector<32x20xf32> to vector<32x1xf32>
    %601 = vector.extract_strided_slice %468 {offsets = [0, 109], sizes = [32, 19], strides = [1, 1]} : vector<32x128xf32> to vector<32x19xf32>
    %602 = vector.extract_strided_slice %468 {offsets = [0, 0], sizes = [32, 109], strides = [1, 1]} : vector<32x128xf32> to vector<32x109xf32>
    %603 = tpu.concatenate %601, %602 in 1 : vector<32x19xf32>, vector<32x109xf32> -> vector<32x128xf32>
    %604 = vector.broadcast %600 : vector<32x1xf32> to vector<32x128xf32>
    %605 = arith.mulf %604, %603 : vector<32x128xf32>
    %606 = arith.addf %599, %605 : vector<32x128xf32>
    %cst_209 = arith.constant dense<0.000000e+00> : vector<128xf32>
    %607 = vector.multi_reduction <add>, %606, %cst_209 [0] : vector<32x128xf32> to vector<128xf32>
    %608 = vector.shape_cast %607 : vector<128xf32> to vector<1x128xf32>
    %609 = vector.broadcast %16 : vector<1x1xf32> to vector<1x128xf32>
    %610 = arith.addf %608, %609 : vector<1x128xf32>
    %c0_210 = arith.constant 0 : index
    %c0_211 = arith.constant 0 : index
    %c0_212 = arith.constant 0 : index
    %611 = vector.load %arg11[%c0_210, %c0_211, %c0_212] : memref<1x1x128xf32, #tpu.memory_space<vmem>>, vector<1x1x128xf32>
    %612 = vector.shape_cast %611 : vector<1x1x128xf32> to vector<1x128xf32>
    %613 = vector.shape_cast %610 : vector<1x128xf32> to vector<1x1x128xf32>
    tpu.vector_store %arg11[%c0_210, %c0_211, %c0_212], %613 {strides = array<i32>} : memref<1x1x128xf32, #tpu.memory_space<vmem>>, vector<1x1x128xf32>,
    return
  }
  func.func @transform_0(%arg0: i32) -> (i32, i32, i32) {
    %c0_i32 = arith.constant 0 : i32
    %c0_i32_0 = arith.constant 0 : i32
    %c0_i32_1 = arith.constant 0 : i32
    return %arg0, %c0_i32, %c0_i32_0 : i32, i32, i32
  }
  func.func @transform_1(%arg0: i32) -> (i32, i32) {
    %c0_i32 = arith.constant 0 : i32
    %c0_i32_0 = arith.constant 0 : i32
    %c0_i32_1 = arith.constant 0 : i32
    return %c0_i32, %c0_i32_0 : i32, i32
  }
  func.func @transform_2(%arg0: i32) -> (i32, i32, i32) {
    %c0_i32 = arith.constant 0 : i32
    %c0_i32_0 = arith.constant 0 : i32
    %c0_i32_1 = arith.constant 0 : i32
    return %arg0, %c0_i32, %c0_i32_0 : i32, i32, i32
  }
  func.func @transform_3(%arg0: i32) -> (i32, i32, i32) {
    %c0_i32 = arith.constant 0 : i32
    %c0_i32_0 = arith.constant 0 : i32
    %c0_i32_1 = arith.constant 0 : i32
    return %arg0, %c0_i32, %c0_i32_0 : i32, i32, i32
  }
  func.func @transform_4(%arg0: i32) -> (i32, i32, i32, i32) {
    %c0_i32 = arith.constant 0 : i32
    %c0_i32_0 = arith.constant 0 : i32
    %c0_i32_1 = arith.constant 0 : i32
    %c0_i32_2 = arith.constant 0 : i32
    return %arg0, %c0_i32, %c0_i32_0, %c0_i32_1 : i32, i32, i32, i32
  }
  func.func @transform_5(%arg0: i32) -> (i32, i32, i32) {
    %c0_i32 = arith.constant 0 : i32
    %c0_i32_0 = arith.constant 0 : i32
    %c0_i32_1 = arith.constant 0 : i32
    return %arg0, %c0_i32, %c0_i32_0 : i32, i32, i32
  }
  func.func @transform_6(%arg0: i32) -> (i32, i32, i32, i32) {
    %c0_i32 = arith.constant 0 : i32
    %c0_i32_0 = arith.constant 0 : i32
    %c0_i32_1 = arith.constant 0 : i32
    %c0_i32_2 = arith.constant 0 : i32
    return %arg0, %c0_i32, %c0_i32_0, %c0_i32_1 : i32, i32, i32, i32
  }
  func.func @transform_7(%arg0: i32) -> (i32, i32, i32) {
    %c0_i32 = arith.constant 0 : i32
    %c0_i32_0 = arith.constant 0 : i32
    %c0_i32_1 = arith.constant 0 : i32
    return %arg0, %c0_i32, %c0_i32_0 : i32, i32, i32
  }
  func.func @transform_8(%arg0: i32) -> (i32, i32, i32) {
    %c0_i32 = arith.constant 0 : i32
    %c0_i32_0 = arith.constant 0 : i32
    %c0_i32_1 = arith.constant 0 : i32
    return %arg0, %c0_i32, %c0_i32_0 : i32, i32, i32
  }
  func.func @transform_9(%arg0: i32) -> (i32, i32, i32) {
    %c0_i32 = arith.constant 0 : i32
    %c0_i32_0 = arith.constant 0 : i32
    %c0_i32_1 = arith.constant 0 : i32
    return %arg0, %c0_i32, %c0_i32_0 : i32, i32, i32
  }
  func.func @transform_10(%arg0: i32) -> (i32, i32, i32) {
    %c0_i32 = arith.constant 0 : i32
    %c0_i32_0 = arith.constant 0 : i32
    %c0_i32_1 = arith.constant 0 : i32
    return %arg0, %c0_i32, %c0_i32_0 : i32, i32, i32
  }
}

</mosaic_0001>

<llo_original>
// kernel: tile.18
$region0: #{tile.18}
  %s0 = inlined_call_operand.vmem [shape: f32[2,64], index: 0, kind: input, shape index: {}]
  %s1 = inlined_call_operand.vmem [shape: f32[1,128], index: 1, kind: output, shape index: {}]
  $region1: #{tile.18} parent=0
    #allocation0 [shape = 'u8[4096]{0}', space=vmem, size = 0x1000, scoped, tag = 'scoped mem for output reshape']
    #allocation1 [shape = 'u8[4096]{0}', space=vmem, size = 0x1000, scoped, tag = 'scoped mem for input reshape']
    %s3 = ssub.s32 4, 1
    %v4 = vld [vmem:[%s0] sm:%s3]
    %5 = vst [vmem:[#allocation1] sm:%s3] %v4
    %v6 = vld [vmem:[#allocation1] sm:$0x1]
    %vm7 = vcmask 523264
    %8 = vst.msk [vmem:[#allocation0] sm:$0x1] %vm7, %v6
    %s9 = scalar_lea.vmem [#allocation1], 1
    %v10 = vld [vmem:[%s9] sm:$0x1]
    %11 = vrot.lane.b32.xlu0 %v10, 64
    %v12 = vpop.permute.xlu0 %11
    %vm13 = vcmask 1048064
    %14 = vst.msk [vmem:[#allocation0] sm:$0x1] %vm13, %v12
    %s16 = ssub.s32 2, 1
    %v17 = vld [vmem:[#allocation0] sm:%s16]
    %s19 = ssub.s32 2, 1
    %20 = vst [vmem:[%s1] sm:%s19] %v17

// kernel: tile.13
$region0: #{tile.13}
  #allocation0 [shape = 's32[1]{0}', space=sflag, size = 0x4, scoped, tag = 'scoped memory for tile.13']
  %s0 = inlined_call_operand.vmem [shape: f32[64], index: 0, kind: input, shape index: {}]
  %s1 = inlined_call_operand.vmem [shape: f32[2,64], index: 1, kind: output, shape index: {}]
  // Predicated region
  $region2: #{tile.13} parent=0 // pred_check
    _
  $region3: #{tile.13} parent=0 // pred_check_branch
    %3 = sbr.rel (0) target = $region5
  $region4: #{tile.13} parent=0 // pred_region
    _
  $region5: #{tile.13} parent=0 // pred_fallthru
    _
  %v4 = vld [vmem:[%s0] ss:$0 sm:$0xff]
  %5 = vst [vmem:[%s1] sm:$0x3] %v4

// kernel: model_forward.1
$region0: #{model_forward.1}
  #allocation0 [shape = 'u32[]', space=smem, size = 0x4, offset = 0x4, fixed_abs, tag = 'smem constant byte address 0x4 - core index']
  #allocation1 [shape = 'u32[72,128]{1,0:T(1,128)}', space=vmem, size = 0x9000, scoped, tag = 'internal scratch']
  %s0 = inlined_call_operand.vmem [shape: f32[2,1,128], index: 0, kind: input, shape index: {}]
  %s1 = inlined_call_operand.vmem [shape: f32[2,128], index: 1, kind: input, shape index: {}]
  %s2 = inlined_call_operand.vmem [shape: f32[2,32,20], index: 2, kind: input, shape index: {}]
  %s3 = inlined_call_operand.vmem [shape: f32[2,32,1], index: 3, kind: input, shape index: {}]
  %s4 = inlined_call_operand.vmem [shape: bf16[2,20,64,32], index: 4, kind: input, shape index: {}]
  %s5 = inlined_call_operand.vmem [shape: f32[2,64,1], index: 5, kind: input, shape index: {}]
  %s6 = inlined_call_operand.vmem [shape: bf16[2,20,32,64], index: 6, kind: input, shape index: {}]
  %s7 = inlined_call_operand.vmem [shape: f32[2,32,1], index: 7, kind: input, shape index: {}]
  %s8 = inlined_call_operand.vmem [shape: f32[2,32,20], index: 8, kind: input, shape index: {}]
  %s9 = inlined_call_operand.vmem [shape: f32[2,1,1], index: 9, kind: input, shape index: {}]
  %s10 = inlined_call_operand.vmem [shape: f32[2,1,128], index: 10, kind: output, shape index: {}]
  %s11 = sld [smem:[#allocation0]]
  $region73: #{model_forward.1} parent=0
    _
  %s13 = ssub.s32 1, %s11
  %s14 = scalar_select 0, %s13, %s11
  loop: start=0, step=1, limit=4
  $region2: #{model_forward.1} parent=0 // loop_pre_header
    _
  $region3: #{model_forward.1} parent=0 // loop_header
    %s16 = sphi 0, %s20
    %p17 = scmp.ge.s32.totalorder %s16, 4
    %s26 = sphi 0, %s28
    %s29 = sphi 0, %s26
    %s30 = sphi 0, %s29
    %s46 = sphi 0, %s30
    %s50 = sphi 0, %s50
    %s52 = sphi 0, %s50
    %s53 = sphi 0, %s52
    %s67 = sphi 0, %s53
    %s73 = sphi 0, %s75
    %s76 = sphi 0, %s73
    %s77 = sphi 0, %s76
    %s93 = sphi 0, %s77
    %s99 = sphi 0, %s101
    %s102 = sphi 0, %s99
    %s103 = sphi 0, %s102
    %s119 = sphi 0, %s103
    %s125 = sphi 0, %s127
    %s128 = sphi 0, %s125
    %s129 = sphi 0, %s128
    %s145 = sphi 0, %s129
    %s151 = sphi 0, %s153
    %s154 = sphi 0, %s151
    %s155 = sphi 0, %s154
    %s171 = sphi 0, %s155
    %s177 = sphi 0, %s179
    %s180 = sphi 0, %s177
    %s181 = sphi 0, %s180
    %s197 = sphi 0, %s181
    %s203 = sphi 0, %s205
    %s206 = sphi 0, %s203
    %s207 = sphi 0, %s206
    %s223 = sphi 0, %s207
    %s229 = sphi 0, %s231
    %s232 = sphi 0, %s229
    %s233 = sphi 0, %s232
    %s249 = sphi 0, %s233
    %s255 = sphi 0, %s257
    %s258 = sphi 0, %s255
    %s259 = sphi 0, %s258
    %s275 = sphi 0, %s259
    %s281 = sphi 0, %s283
    %s284 = sphi 0, %s281
    %s285 = sphi 0, %s284
    %s301 = sphi 0, %s285
  $region4: #{model_forward.1} parent=0 // loop_header_branch
    %19 = sbr.rel (%p17) target = $region8
  $region5: #{model_forward.1} parent=0 // loop_body
    %s21 = ssub.s32 %s16, 1
    %s22 = ssub.s32 %s16, 2
    %s23 = sadd.s32 %s16, 1
    %s24 = ssub.s32 %s16, %s23
    %p25 = scmp.eq.s32.totalorder %s24, 0
    %s27 = sadd.s32 %s26, 1
    %s28 = scalar_select %p25, %s26, %s27
    %p31 = pneg %p25
    %p32 = scmp.eq.s32.totalorder %s16, 1
    %p33 = por %p31, %p32
    %p34 = scmp.ne.s32.totalorder %s26, %s29
    %p35 = scmp.eq.s32.totalorder %s16, 0
    %p36 = por %p34, %p35
    %p37 = scmp.ne.s32.totalorder %s26, %s29
    %p38 = scmp.eq.s32.totalorder %s21, 1
    %p39 = por %p37, %p38
    %p40 = scmp.ne.s32.totalorder %s29, %s30
    %p41 = scmp.eq.s32.totalorder %s21, 0
    %p42 = por %p40, %p41
    %p43 = scmp.ne.s32.totalorder %s29, %s30
    %p44 = scmp.eq.s32.totalorder %s22, 1
    %p45 = por %p43, %p44
    %p47 = scmp.ne.s32.totalorder %s30, %s46
    %p48 = scmp.eq.s32.totalorder %s22, 0
    %p49 = por %p47, %p48
    %s51 = sadd.s32 %s50, 1
    %p54 = scmp.eq.s32.totalorder %s16, 1
    %p55 = scmp.ne.s32.totalorder %s50, %s52
    %p56 = scmp.eq.s32.totalorder %s16, 0
    %p57 = por %p55, %p56
    %p58 = scmp.ne.s32.totalorder %s50, %s52
    %p59 = scmp.eq.s32.totalorder %s21, 1
    %p60 = por %p58, %p59
    %p61 = scmp.ne.s32.totalorder %s52, %s53
    %p62 = scmp.eq.s32.totalorder %s21, 0
    %p63 = por %p61, %p62
    %p64 = scmp.ne.s32.totalorder %s52, %s53
    %p65 = scmp.eq.s32.totalorder %s22, 1
    %p66 = por %p64, %p65
    %p68 = scmp.ne.s32.totalorder %s53, %s67
    %p69 = scmp.eq.s32.totalorder %s22, 0
    %p70 = por %p68, %p69
    %s71 = ssub.s32 %s16, %s23
    %p72 = scmp.eq.s32.totalorder %s71, 0
    %s74 = sadd.s32 %s73, 1
    %s75 = scalar_select %p72, %s73, %s74
    %p78 = pneg %p72
    %p79 = scmp.eq.s32.totalorder %s16, 1
    %p80 = por %p78, %p79
    %p81 = scmp.ne.s32.totalorder %s73, %s76
    %p82 = scmp.eq.s32.totalorder %s16, 0
    %p83 = por %p81, %p82
    %p84 = scmp.ne.s32.totalorder %s73, %s76
    %p85 = scmp.eq.s32.totalorder %s21, 1
    %p86 = por %p84, %p85
    %p87 = scmp.ne.s32.totalorder %s76, %s77
    %p88 = scmp.eq.s32.totalorder %s21, 0
    %p89 = por %p87, %p88
    %p90 = scmp.ne.s32.totalorder %s76, %s77
    %p91 = scmp.eq.s32.totalorder %s22, 1
    %p92 = por %p90, %p91
    %p94 = scmp.ne.s32.totalorder %s77, %s93
    %p95 = scmp.eq.s32.totalorder %s22, 0
    %p96 = por %p94, %p95
    %s97 = ssub.s32 %s16, %s23
    %p98 = scmp.eq.s32.totalorder %s97, 0
    %s100 = sadd.s32 %s99, 1
    %s101 = scalar_select %p98, %s99, %s100
    %p104 = pneg %p98
    %p105 = scmp.eq.s32.totalorder %s16, 1
    %p106 = por %p104, %p105
    %p107 = scmp.ne.s32.totalorder %s99, %s102
    %p108 = scmp.eq.s32.totalorder %s16, 0
    %p109 = por %p107, %p108
    %p110 = scmp.ne.s32.totalorder %s99, %s102
    %p111 = scmp.eq.s32.totalorder %s21, 1
    %p112 = por %p110, %p111
    %p113 = scmp.ne.s32.totalorder %s102, %s103
    %p114 = scmp.eq.s32.totalorder %s21, 0
    %p115 = por %p113, %p114
    %p116 = scmp.ne.s32.totalorder %s102, %s103
    %p117 = scmp.eq.s32.totalorder %s22, 1
    %p118 = por %p116, %p117
    %p120 = scmp.ne.s32.totalorder %s103, %s119
    %p121 = scmp.eq.s32.totalorder %s22, 0
    %p122 = por %p120, %p121
    %s123 = ssub.s32 %s16, %s23
    %p124 = scmp.eq.s32.totalorder %s123, 0
    %s126 = sadd.s32 %s125, 1
    %s127 = scalar_select %p124, %s125, %s126
    %p130 = pneg %p124
    %p131 = scmp.eq.s32.totalorder %s16, 1
    %p132 = por %p130, %p131
    %p133 = scmp.ne.s32.totalorder %s125, %s128
    %p134 = scmp.eq.s32.totalorder %s16, 0
    %p135 = por %p133, %p134
    %p136 = scmp.ne.s32.totalorder %s125, %s128
    %p137 = scmp.eq.s32.totalorder %s21, 1
    %p138 = por %p136, %p137
    %p139 = scmp.ne.s32.totalorder %s128, %s129
    %p140 = scmp.eq.s32.totalorder %s21, 0
    %p141 = por %p139, %p140
    %p142 = scmp.ne.s32.totalorder %s128, %s129
    %p143 = scmp.eq.s32.totalorder %s22, 1
    %p144 = por %p142, %p143
    %p146 = scmp.ne.s32.totalorder %s129, %s145
    %p147 = scmp.eq.s32.totalorder %s22, 0
    %p148 = por %p146, %p147
    %s149 = ssub.s32 %s16, %s23
    %p150 = scmp.eq.s32.totalorder %s149, 0
    %s152 = sadd.s32 %s151, 1
    %s153 = scalar_select %p150, %s151, %s152
    %p156 = pneg %p150
    %p157 = scmp.eq.s32.totalorder %s16, 1
    %p158 = por %p156, %p157
    %p159 = scmp.ne.s32.totalorder %s151, %s154
    %p160 = scmp.eq.s32.totalorder %s16, 0
    %p161 = por %p159, %p160
    %p162 = scmp.ne.s32.totalorder %s151, %s154
    %p163 = scmp.eq.s32.totalorder %s21, 1
    %p164 = por %p162, %p163
    %p165 = scmp.ne.s32.totalorder %s154, %s155
    %p166 = scmp.eq.s32.totalorder %s21, 0
    %p167 = por %p165, %p166
    %p168 = scmp.ne.s32.totalorder %s154, %s155
    %p169 = scmp.eq.s32.totalorder %s22, 1
    %p170 = por %p168, %p169
    %p172 = scmp.ne.s32.totalorder %s155, %s171
    %p173 = scmp.eq.s32.totalorder %s22, 0
    %p174 = por %p172, %p173
    %s175 = ssub.s32 %s16, %s23
    %p176 = scmp.eq.s32.totalorder %s175, 0
    %s178 = sadd.s32 %s177, 1
    %s179 = scalar_select %p176, %s177, %s178
    %p182 = pneg %p176
    %p183 = scmp.eq.s32.totalorder %s16, 1
    %p184 = por %p182, %p183
    %p185 = scmp.ne.s32.totalorder %s177, %s180
    %p186 = scmp.eq.s32.totalorder %s16, 0
    %p187 = por %p185, %p186
    %p188 = scmp.ne.s32.totalorder %s177, %s180
    %p189 = scmp.eq.s32.totalorder %s21, 1
    %p190 = por %p188, %p189
    %p191 = scmp.ne.s32.totalorder %s180, %s181
    %p192 = scmp.eq.s32.totalorder %s21, 0
    %p193 = por %p191, %p192
    %p194 = scmp.ne.s32.totalorder %s180, %s181
    %p195 = scmp.eq.s32.totalorder %s22, 1
    %p196 = por %p194, %p195
    %p198 = scmp.ne.s32.totalorder %s181, %s197
    %p199 = scmp.eq.s32.totalorder %s22, 0
    %p200 = por %p198, %p199
    %s201 = ssub.s32 %s16, %s23
    %p202 = scmp.eq.s32.totalorder %s201, 0
    %s204 = sadd.s32 %s203, 1
    %s205 = scalar_select %p202, %s203, %s204
    %p208 = pneg %p202
    %p209 = scmp.eq.s32.totalorder %s16, 1
    %p210 = por %p208, %p209
    %p211 = scmp.ne.s32.totalorder %s203, %s206
    %p212 = scmp.eq.s32.totalorder %s16, 0
    %p213 = por %p211, %p212
    %p214 = scmp.ne.s32.totalorder %s203, %s206
    %p215 = scmp.eq.s32.totalorder %s21, 1
    %p216 = por %p214, %p215
    %p217 = scmp.ne.s32.totalorder %s206, %s207
    %p218 = scmp.eq.s32.totalorder %s21, 0
    %p219 = por %p217, %p218
    %p220 = scmp.ne.s32.totalorder %s206, %s207
    %p221 = scmp.eq.s32.totalorder %s22, 1
    %p222 = por %p220, %p221
    %p224 = scmp.ne.s32.totalorder %s207, %s223
    %p225 = scmp.eq.s32.totalorder %s22, 0
    %p226 = por %p224, %p225
    %s227 = ssub.s32 %s16, %s23
    %p228 = scmp.eq.s32.totalorder %s227, 0
    %s230 = sadd.s32 %s229, 1
    %s231 = scalar_select %p228, %s229, %s230
    %p234 = pneg %p228
    %p235 = scmp.eq.s32.totalorder %s16, 1
    %p236 = por %p234, %p235
    %p237 = scmp.ne.s32.totalorder %s229, %s232
    %p238 = scmp.eq.s32.totalorder %s16, 0
    %p239 = por %p237, %p238
    %p240 = scmp.ne.s32.totalorder %s229, %s232
    %p241 = scmp.eq.s32.totalorder %s21, 1
    %p242 = por %p240, %p241
    %p243 = scmp.ne.s32.totalorder %s232, %s233
    %p244 = scmp.eq.s32.totalorder %s21, 0
    %p245 = por %p243, %p244
    %p246 = scmp.ne.s32.totalorder %s232, %s233
    %p247 = scmp.eq.s32.totalorder %s22, 1
    %p248 = por %p246, %p247
    %p250 = scmp.ne.s32.totalorder %s233, %s249
    %p251 = scmp.eq.s32.totalorder %s22, 0
    %p252 = por %p250, %p251
    %s253 = ssub.s32 %s16, %s23
    %p254 = scmp.eq.s32.totalorder %s253, 0
    %s256 = sadd.s32 %s255, 1
    %s257 = scalar_select %p254, %s255, %s256
    %p260 = pneg %p254
    %p261 = scmp.eq.s32.totalorder %s16, 1
    %p262 = por %p260, %p261
    %p263 = scmp.ne.s32.totalorder %s255, %s258
    %p264 = scmp.eq.s32.totalorder %s16, 0
    %p265 = por %p263, %p264
    %p266 = scmp.ne.s32.totalorder %s255, %s258
    %p267 = scmp.eq.s32.totalorder %s21, 1
    %p268 = por %p266, %p267
    %p269 = scmp.ne.s32.totalorder %s258, %s259
    %p270 = scmp.eq.s32.totalorder %s21, 0
    %p271 = por %p269, %p270
    %p272 = scmp.ne.s32.totalorder %s258, %s259
    %p273 = scmp.eq.s32.totalorder %s22, 1
    %p274 = por %p272, %p273
    %p276 = scmp.ne.s32.totalorder %s259, %s275
    %p277 = scmp.eq.s32.totalorder %s22, 0
    %p278 = por %p276, %p277
    %s279 = ssub.s32 %s16, %s23
    %p280 = scmp.eq.s32.totalorder %s279, 0
    %s282 = sadd.s32 %s281, 1
    %s283 = scalar_select %p280, %s281, %s282
    %p286 = pneg %p280
    %p287 = scmp.eq.s32.totalorder %s16, 1
    %p288 = por %p286, %p287
    %p289 = scmp.ne.s32.totalorder %s281, %s284
    %p290 = scmp.eq.s32.totalorder %s16, 0
    %p291 = por %p289, %p290
    %p292 = scmp.ne.s32.totalorder %s281, %s284
    %p293 = scmp.eq.s32.totalorder %s21, 1
    %p294 = por %p292, %p293
    %p295 = scmp.ne.s32.totalorder %s284, %s285
    %p296 = scmp.eq.s32.totalorder %s21, 0
    %p297 = por %p295, %p296
    %p298 = scmp.ne.s32.totalorder %s284, %s285
    %p299 = scmp.eq.s32.totalorder %s22, 1
    %p300 = por %p298, %p299
    %p302 = scmp.ne.s32.totalorder %s285, %s301
    %p303 = scmp.eq.s32.totalorder %s22, 0
    %p304 = por %p302, %p303
    %p305 = scmp.le.s32.totalorder 1, %s16
    %p306 = scmp.lt.s32.totalorder %s16, 3
    %p307 = pnand %p305, %p306
    %p308 = pneg %p307
    // Predicated region
    $region9: #{model_forward.1} parent=5 // pred_check
      _
    $region10: #{model_forward.1} parent=5 // pred_check_branch
      %310 = sbr.rel (%p307) target = $region12
    $region11: #{model_forward.1} parent=5 // pred_region
      %s311 = ssub.s32 %s16, 1
      // Predicated region
      $region13: #{model_forward.1} parent=11 // pred_check
        %p312 = pneg %p63
      $region14: #{model_forward.1} parent=11 // pred_check_branch
        %314 = sbr.rel (%p312) target = $region16
      $region15: #{model_forward.1} parent=11 // pred_region
        _
      $region16: #{model_forward.1} parent=11 // pred_fallthru
        _
    $region12: #{model_forward.1} parent=5 // pred_fallthru
      _
    %p315 = scmp.lt.s32.totalorder %s16, 2
    // Predicated region
    $region17: #{model_forward.1} parent=5 // pred_check
      %p316 = pneg %p315
    $region18: #{model_forward.1} parent=5 // pred_check_branch
      %318 = sbr.rel (%p316) target = $region20
    $region19: #{model_forward.1} parent=5 // pred_region
      // Predicated region
      $region21: #{model_forward.1} parent=19 // pred_check
        %p319 = pneg %p36
      $region22: #{model_forward.1} parent=19 // pred_check_branch
        %321 = sbr.rel (%p319) target = $region24
      $region23: #{model_forward.1} parent=19 // pred_region
        %p322 = scmp.lt.s32.totalorder %s16, 1
        %s323 = scalar_select %p322, %s16, 1
        %s324 = scalar_lea.vmem %s0, %s323
      $region24: #{model_forward.1} parent=19 // pred_fallthru
        _
      // Predicated region
      $region25: #{model_forward.1} parent=19 // pred_check
        %p325 = pneg %p83
      $region26: #{model_forward.1} parent=19 // pred_check_branch
        %327 = sbr.rel (%p325) target = $region28
      $region27: #{model_forward.1} parent=19 // pred_region
        %p328 = scmp.lt.s32.totalorder %s16, 1
        %s329 = scalar_select %p328, %s16, 1
        %s330 = smul.addr %s329, 4
        %s331 = smul.addr %s330, 8
        %s332 = scalar_lea.vmem %s2, %s331
      $region28: #{model_forward.1} parent=19 // pred_fallthru
        _
      // Predicated region
      $region29: #{model_forward.1} parent=19 // pred_check
        %p333 = pneg %p109
      $region30: #{model_forward.1} parent=19 // pred_check_branch
        %335 = sbr.rel (%p333) target = $region32
      $region31: #{model_forward.1} parent=19 // pred_region
        %p336 = scmp.lt.s32.totalorder %s16, 1
        %s337 = scalar_select %p336, %s16, 1
        %s338 = smul.addr %s337, 4
        %s339 = smul.addr %s338, 8
        %s340 = scalar_lea.vmem %s3, %s339
      $region32: #{model_forward.1} parent=19 // pred_fallthru
        _
      // Predicated region
      $region33: #{model_forward.1} parent=19 // pred_check
        %p341 = pneg %p135
      $region34: #{model_forward.1} parent=19 // pred_check_branch
        %343 = sbr.rel (%p341) target = $region36
      $region35: #{model_forward.1} parent=19 // pred_region
        %p344 = scmp.lt.s32.totalorder %s16, 1
        %s345 = scalar_select %p344, %s16, 1
        %s346 = smul.addr %s345, 160
        %s347 = smul.addr %s346, 4
        %s348 = scalar_lea.vmem %s4, %s347
      $region36: #{model_forward.1} parent=19 // pred_fallthru
        _
      // Predicated region
      $region37: #{model_forward.1} parent=19 // pred_check
        %p349 = pneg %p161
      $region38: #{model_forward.1} parent=19 // pred_check_branch
        %351 = sbr.rel (%p349) target = $region40
      $region39: #{model_forward.1} parent=19 // pred_region
        %p352 = scmp.lt.s32.totalorder %s16, 1
        %s353 = scalar_select %p352, %s16, 1
        %s354 = smul.addr %s353, 8
        %s355 = smul.addr %s354, 8
        %s356 = scalar_lea.vmem %s5, %s355
      $region40: #{model_forward.1} parent=19 // pred_fallthru
        _
      // Predicated region
      $region41: #{model_forward.1} parent=19 // pred_check
        %p357 = pneg %p187
      $region42: #{model_forward.1} parent=19 // pred_check_branch
        %359 = sbr.rel (%p357) target = $region44
      $region43: #{model_forward.1} parent=19 // pred_region
        %p360 = scmp.lt.s32.totalorder %s16, 1
        %s361 = scalar_select %p360, %s16, 1
        %s362 = smul.addr %s361, 80
        %s363 = smul.addr %s362, 4
        %s364 = scalar_lea.vmem %s6, %s363
      $region44: #{model_forward.1} parent=19 // pred_fallthru
        _
      // Predicated region
      $region45: #{model_forward.1} parent=19 // pred_check
        %p365 = pneg %p213
      $region46: #{model_forward.1} parent=19 // pred_check_branch
        %367 = sbr.rel (%p365) target = $region48
      $region47: #{model_forward.1} parent=19 // pred_region
        %p368 = scmp.lt.s32.totalorder %s16, 1
        %s369 = scalar_select %p368, %s16, 1
        %s370 = smul.addr %s369, 4
        %s371 = smul.addr %s370, 8
        %s372 = scalar_lea.vmem %s7, %s371
      $region48: #{model_forward.1} parent=19 // pred_fallthru
        _
      // Predicated region
      $region49: #{model_forward.1} parent=19 // pred_check
        %p373 = pneg %p239
      $region50: #{model_forward.1} parent=19 // pred_check_branch
        %375 = sbr.rel (%p373) target = $region52
      $region51: #{model_forward.1} parent=19 // pred_region
        %p376 = scmp.lt.s32.totalorder %s16, 1
        %s377 = scalar_select %p376, %s16, 1
        %s378 = smul.addr %s377, 4
        %s379 = smul.addr %s378, 8
        %s380 = scalar_lea.vmem %s8, %s379
      $region52: #{model_forward.1} parent=19 // pred_fallthru
        _
      // Predicated region
      $region53: #{model_forward.1} parent=19 // pred_check
        %p381 = pneg %p265
      $region54: #{model_forward.1} parent=19 // pred_check_branch
        %383 = sbr.rel (%p381) target = $region56
      $region55: #{model_forward.1} parent=19 // pred_region
        %p384 = scmp.lt.s32.totalorder %s16, 1
        %s385 = scalar_select %p384, %s16, 1
        %s386 = scalar_lea.vmem %s9, %s385
      $region56: #{model_forward.1} parent=19 // pred_fallthru
        _
    $region20: #{model_forward.1} parent=5 // pred_fallthru
      _
    %p387 = scmp.le.s32.totalorder 1, %s16
    %p388 = scmp.lt.s32.totalorder %s16, 3
    %p389 = pnand %p387, %p388
    %p390 = pneg %p389
    // Predicated region
    $region57: #{model_forward.1} parent=5 // pred_check
      _
    $region58: #{model_forward.1} parent=5 // pred_check_branch
      %392 = sbr.rel (%p389) target = $region60
    $region59: #{model_forward.1} parent=5 // pred_region
      %s393 = ssub.s32 %s16, 1
      %p394 = scmp.lt.s32.totalorder %s21, 1
      %s395 = scalar_select %p394, %s21, 1
      %s396 = scalar_lea.vmem %s0, %s395
      %p397 = pneg %p42
      %p398 = pneg %p39
      %p399 = pneg %p63
      %p400 = pneg %p60
      %p401 = scmp.lt.s32.totalorder %s21, 1
      %s402 = scalar_select %p401, %s21, 1
      %s403 = smul.addr %s402, 4
      %s404 = smul.addr %s403, 8
      %s405 = scalar_lea.vmem %s2, %s404
      %p406 = pneg %p89
      %p407 = pneg %p86
      %p408 = scmp.lt.s32.totalorder %s21, 1
      %s409 = scalar_select %p408, %s21, 1
      %s410 = smul.addr %s409, 4
      %s411 = smul.addr %s410, 8
      %s412 = scalar_lea.vmem %s3, %s411
      %p413 = pneg %p115
      %p414 = pneg %p112
      %p415 = scmp.lt.s32.totalorder %s21, 1
      %s416 = scalar_select %p415, %s21, 1
      %s417 = smul.addr %s416, 160
      %s418 = smul.addr %s417, 4
      %s419 = scalar_lea.vmem %s4, %s418
      %p420 = pneg %p141
      %p421 = pneg %p138
      %p422 = scmp.lt.s32.totalorder %s21, 1
      %s423 = scalar_select %p422, %s21, 1
      %s424 = smul.addr %s423, 8
      %s425 = smul.addr %s424, 8
      %s426 = scalar_lea.vmem %s5, %s425
      %p427 = pneg %p167
      %p428 = pneg %p164
      %p429 = scmp.lt.s32.totalorder %s21, 1
      %s430 = scalar_select %p429, %s21, 1
      %s431 = smul.addr %s430, 80
      %s432 = smul.addr %s431, 4
      %s433 = scalar_lea.vmem %s6, %s432
      %p434 = pneg %p193
      %p435 = pneg %p190
      %p436 = scmp.lt.s32.totalorder %s21, 1
      %s437 = scalar_select %p436, %s21, 1
      %s438 = smul.addr %s437, 4
      %s439 = smul.addr %s438, 8
      %s440 = scalar_lea.vmem %s7, %s439
      %p441 = pneg %p219
      %p442 = pneg %p216
      %p443 = scmp.lt.s32.totalorder %s21, 1
      %s444 = scalar_select %p443, %s21, 1
      %s445 = smul.addr %s444, 4
      %s446 = smul.addr %s445, 8
      %s447 = scalar_lea.vmem %s8, %s446
      %p448 = pneg %p245
      %p449 = pneg %p242
      %p450 = scmp.lt.s32.totalorder %s21, 1
      %s451 = scalar_select %p450, %s21, 1
      %s452 = scalar_lea.vmem %s9, %s451
      %p453 = pneg %p271
      %p454 = pneg %p268
      %p455 = pneg %p297
      %p456 = pneg %p294
      %p457 = scmp.lt.s32.totalorder %s21, 1
      %s458 = scalar_select %p457, %s21, 1
      %s459 = scalar_lea.vmem %s10, %s458
      %p460 = scmp.lt.s32.totalorder %s21, 1
      %s461 = scalar_select %p460, %s21, 1
      %s462 = scalar_lea.vmem %s0, %s461
      %p463 = scmp.lt.s32.totalorder %s21, 1
      %s464 = scalar_select %p463, %s21, 1
      %s465 = smul.addr %s464, 4
      %s466 = smul.addr %s465, 8
      %s467 = scalar_lea.vmem %s2, %s466
      %p468 = scmp.lt.s32.totalorder %s21, 1
      %s469 = scalar_select %p468, %s21, 1
      %s470 = smul.addr %s469, 4
      %s471 = smul.addr %s470, 8
      %s472 = scalar_lea.vmem %s3, %s471
      %p473 = scmp.lt.s32.totalorder %s21, 1
      %s474 = scalar_select %p473, %s21, 1
      %s475 = smul.addr %s474, 160
      %s476 = smul.addr %s475, 4
      %s477 = scalar_lea.vmem %s4, %s476
      %p478 = scmp.lt.s32.totalorder %s21, 1
      %s479 = scalar_select %p478, %s21, 1
      %s480 = smul.addr %s479, 8
      %s481 = smul.addr %s480, 8
      %s482 = scalar_lea.vmem %s5, %s481
      %p483 = scmp.lt.s32.totalorder %s21, 1
      %s484 = scalar_select %p483, %s21, 1
      %s485 = smul.addr %s484, 80
      %s486 = smul.addr %s485, 4
      %s487 = scalar_lea.vmem %s6, %s486
      %p488 = scmp.lt.s32.totalorder %s21, 1
      %s489 = scalar_select %p488, %s21, 1
      %s490 = smul.addr %s489, 4
      %s491 = smul.addr %s490, 8
      %s492 = scalar_lea.vmem %s7, %s491
      %p493 = scmp.lt.s32.totalorder %s21, 1
      %s494 = scalar_select %p493, %s21, 1
      %s495 = smul.addr %s494, 4
      %s496 = smul.addr %s495, 8
      %s497 = scalar_lea.vmem %s8, %s496
      %p498 = scmp.lt.s32.totalorder %s21, 1
      %s499 = scalar_select %p498, %s21, 1
      %s500 = scalar_lea.vmem %s9, %s499
      %p501 = scmp.lt.s32.totalorder %s21, 1
      %s502 = scalar_select %p501, %s21, 1
      %s503 = scalar_lea.vmem %s10, %s502
      %v505 = vld [vmem:[%s462] sm:$0x1]
      %v506 = vld [vmem:[%s1] sm:$0x3]
      %v507 = vld [vmem:[%s467] sm:$0xff]
      %v508 = vld [vmem:[%s467 + $0x8] sm:$0xff]
      %v509 = vld [vmem:[%s467 + $0x10] sm:$0xff]
      %v510 = vld [vmem:[%s467 + $0x18] sm:$0xff]
      %v511 = vld [vmem:[%s472] sm:$0xff]
      %v512 = vld [vmem:[%s472 + $0x8] sm:$0xff]
      %v513 = vld [vmem:[%s472 + $0x10] sm:$0xff]
      %v514 = vld [vmem:[%s472 + $0x18] sm:$0xff]
      %v515 = vld [vmem:[%s482] sm:$0xff]
      %v516 = vld [vmem:[%s482 + $0x8] sm:$0xff]
      %v517 = vld [vmem:[%s482 + $0x10] sm:$0xff]
      %v518 = vld [vmem:[%s482 + $0x18] sm:$0xff]
      %v519 = vld [vmem:[%s482 + $0x20] sm:$0xff]
      %v520 = vld [vmem:[%s482 + $0x28] sm:$0xff]
      %v521 = vld [vmem:[%s482 + $0x30] sm:$0xff]
      %v522 = vld [vmem:[%s482 + $0x38] sm:$0xff]
      %v523 = vld [vmem:[%s492] sm:$0xff]
      %v524 = vld [vmem:[%s492 + $0x8] sm:$0xff]
      %v525 = vld [vmem:[%s492 + $0x10] sm:$0xff]
      %v526 = vld [vmem:[%s492 + $0x18] sm:$0xff]
      %v527 = vld [vmem:[%s497] sm:$0xff]
      %v528 = vld [vmem:[%s497 + $0x8] sm:$0xff]
      %v529 = vld [vmem:[%s497 + $0x10] sm:$0xff]
      %v530 = vld [vmem:[%s497 + $0x18] sm:$0xff]
      %v531 = vld [vmem:[%s500] sm:$0x1]
      %533 = vset.pattern.permute.xlu0 0
      %534 = vperm.xlu0 %533, %v507
      %v535 = vpop.permute.xlu0 %534
      %538 = vset.pattern.permute.xlu0 0
      %539 = vperm.xlu0 %538, %v508
      %v540 = vpop.permute.xlu0 %539
      %543 = vset.pattern.permute.xlu0 0
      %544 = vperm.xlu0 %543, %v509
      %v545 = vpop.permute.xlu0 %544
      %548 = vset.pattern.permute.xlu0 0
      %549 = vperm.xlu0 %548, %v510
      %v550 = vpop.permute.xlu0 %549
      %v553 = vperm.slane %v505, 0
      %v555 = vmul.f32 %v535, %v553
      %v556 = vmul.f32 %v540, %v553
      %v557 = vmul.f32 %v545, %v553
      %v558 = vmul.f32 %v550, %v553
      %v559 = vadd.f32 %v555, 0.0
      %v560 = vadd.f32 %v556, 0.0
      %v561 = vadd.f32 %v557, 0.0
      %v562 = vadd.f32 %v558, 0.0
      %563 = vrot.lane.b32.xlu0 %v553, 127
      %v564 = vpop.permute.xlu0 %563
      %566 = vset.pattern.permute.xlu0 1
      %567 = vperm.xlu0 %566, %v507
      %v568 = vpop.permute.xlu0 %567
      %570 = vset.pattern.permute.xlu0 1
      %571 = vperm.xlu0 %570, %v508
      %v572 = vpop.permute.xlu0 %571
      %574 = vset.pattern.permute.xlu0 1
      %575 = vperm.xlu0 %574, %v509
      %v576 = vpop.permute.xlu0 %575
      %578 = vset.pattern.permute.xlu0 1
      %579 = vperm.xlu0 %578, %v510
      %v580 = vpop.permute.xlu0 %579
      %v582 = vperm.slane %v564, 0
      %v583 = vmul.f32 %v568, %v582
      %v584 = vmul.f32 %v572, %v582
      %v585 = vmul.f32 %v576, %v582
      %v586 = vmul.f32 %v580, %v582
      %v587 = vadd.f32 %v559, %v583
      %v588 = vadd.f32 %v560, %v584
      %v589 = vadd.f32 %v561, %v585
      %v590 = vadd.f32 %v562, %v586
      %591 = vrot.lane.b32.xlu0 %v553, 126
      %v592 = vpop.permute.xlu0 %591
      %594 = vset.pattern.permute.xlu0 2
      %595 = vperm.xlu0 %594, %v507
      %v596 = vpop.permute.xlu0 %595
      %598 = vset.pattern.permute.xlu0 2
      %599 = vperm.xlu0 %598, %v508
      %v600 = vpop.permute.xlu0 %599
      %602 = vset.pattern.permute.xlu0 2
      %603 = vperm.xlu0 %602, %v509
      %v604 = vpop.permute.xlu0 %603
      %606 = vset.pattern.permute.xlu0 2
      %607 = vperm.xlu0 %606, %v510
      %v608 = vpop.permute.xlu0 %607
      %v610 = vperm.slane %v592, 0
      %v611 = vmul.f32 %v596, %v610
      %v612 = vmul.f32 %v600, %v610
      %v613 = vmul.f32 %v604, %v610
      %v614 = vmul.f32 %v608, %v610
      %v615 = vadd.f32 %v587, %v611
      %v616 = vadd.f32 %v588, %v612
      %v617 = vadd.f32 %v589, %v613
      %v618 = vadd.f32 %v590, %v614
      %619 = vrot.lane.b32.xlu0 %v553, 125
      %v620 = vpop.permute.xlu0 %619
      %622 = vset.pattern.permute.xlu0 3
      %623 = vperm.xlu0 %622, %v507
      %v624 = vpop.permute.xlu0 %623
      %626 = vset.pattern.permute.xlu0 3
      %627 = vperm.xlu0 %626, %v508
      %v628 = vpop.permute.xlu0 %627
      %630 = vset.pattern.permute.xlu0 3
      %631 = vperm.xlu0 %630, %v509
      %v632 = vpop.permute.xlu0 %631
      %634 = vset.pattern.permute.xlu0 3
      %635 = vperm.xlu0 %634, %v510
      %v636 = vpop.permute.xlu0 %635
      %v638 = vperm.slane %v620, 0
      %v639 = vmul.f32 %v624, %v638
      %v640 = vmul.f32 %v628, %v638
      %v641 = vmul.f32 %v632, %v638
      %v642 = vmul.f32 %v636, %v638
      %v643 = vadd.f32 %v615, %v639
      %v644 = vadd.f32 %v616, %v640
      %v645 = vadd.f32 %v617, %v641
      %v646 = vadd.f32 %v618, %v642
      %647 = vrot.lane.b32.xlu0 %v553, 124
      %v648 = vpop.permute.xlu0 %647
      %650 = vset.pattern.permute.xlu0 4
      %651 = vperm.xlu0 %650, %v507
      %v652 = vpop.permute.xlu0 %651
      %654 = vset.pattern.permute.xlu0 4
      %655 = vperm.xlu0 %654, %v508
      %v656 = vpop.permute.xlu0 %655
      %658 = vset.pattern.permute.xlu0 4
      %659 = vperm.xlu0 %658, %v509
      %v660 = vpop.permute.xlu0 %659
      %662 = vset.pattern.permute.xlu0 4
      %663 = vperm.xlu0 %662, %v510
      %v664 = vpop.permute.xlu0 %663
      %v666 = vperm.slane %v648, 0
      %v667 = vmul.f32 %v652, %v666
      %v668 = vmul.f32 %v656, %v666
      %v669 = vmul.f32 %v660, %v666
      %v670 = vmul.f32 %v664, %v666
      %v671 = vadd.f32 %v643, %v667
      %v672 = vadd.f32 %v644, %v668
      %v673 = vadd.f32 %v645, %v669
      %v674 = vadd.f32 %v646, %v670
      %675 = vrot.lane.b32.xlu0 %v553, 123
      %v676 = vpop.permute.xlu0 %675
      %678 = vset.pattern.permute.xlu0 5
      %679 = vperm.xlu0 %678, %v507
      %v680 = vpop.permute.xlu0 %679
      %682 = vset.pattern.permute.xlu0 5
      %683 = vperm.xlu0 %682, %v508
      %v684 = vpop.permute.xlu0 %683
      %686 = vset.pattern.permute.xlu0 5
      %687 = vperm.xlu0 %686, %v509
      %v688 = vpop.permute.xlu0 %687
      %690 = vset.pattern.permute.xlu0 5
      %691 = vperm.xlu0 %690, %v510
      %v692 = vpop.permute.xlu0 %691
      %v694 = vperm.slane %v676, 0
      %v695 = vmul.f32 %v680, %v694
      %v696 = vmul.f32 %v684, %v694
      %v697 = vmul.f32 %v688, %v694
      %v698 = vmul.f32 %v692, %v694
      %v699 = vadd.f32 %v671, %v695
      %v700 = vadd.f32 %v672, %v696
      %v701 = vadd.f32 %v673, %v697
      %v702 = vadd.f32 %v674, %v698
      %703 = vrot.lane.b32.xlu0 %v553, 122
      %v704 = vpop.permute.xlu0 %703
      %706 = vset.pattern.permute.xlu0 6
      %707 = vperm.xlu0 %706, %v507
      %v708 = vpop.permute.xlu0 %707
      %710 = vset.pattern.permute.xlu0 6
      %711 = vperm.xlu0 %710, %v508
      %v712 = vpop.permute.xlu0 %711
      %714 = vset.pattern.permute.xlu0 6
      %715 = vperm.xlu0 %714, %v509
      %v716 = vpop.permute.xlu0 %715
      %718 = vset.pattern.permute.xlu0 6
      %719 = vperm.xlu0 %718, %v510
      %v720 = vpop.permute.xlu0 %719
      %v722 = vperm.slane %v704, 0
      %v723 = vmul.f32 %v708, %v722
      %v724 = vmul.f32 %v712, %v722
      %v725 = vmul.f32 %v716, %v722
      %v726 = vmul.f32 %v720, %v722
      %v727 = vadd.f32 %v699, %v723
      %v728 = vadd.f32 %v700, %v724
      %v729 = vadd.f32 %v701, %v725
      %v730 = vadd.f32 %v702, %v726
      %731 = vrot.lane.b32.xlu0 %v553, 121
      %v732 = vpop.permute.xlu0 %731
      %734 = vset.pattern.permute.xlu0 7
      %735 = vperm.xlu0 %734, %v507
      %v736 = vpop.permute.xlu0 %735
      %738 = vset.pattern.permute.xlu0 7
      %739 = vperm.xlu0 %738, %v508
      %v740 = vpop.permute.xlu0 %739
      %742 = vset.pattern.permute.xlu0 7
      %743 = vperm.xlu0 %742, %v509
      %v744 = vpop.permute.xlu0 %743
      %746 = vset.pattern.permute.xlu0 7
      %747 = vperm.xlu0 %746, %v510
      %v748 = vpop.permute.xlu0 %747
      %v750 = vperm.slane %v732, 0
      %v751 = vmul.f32 %v736, %v750
      %v752 = vmul.f32 %v740, %v750
      %v753 = vmul.f32 %v744, %v750
      %v754 = vmul.f32 %v748, %v750
      %v755 = vadd.f32 %v727, %v751
      %v756 = vadd.f32 %v728, %v752
      %v757 = vadd.f32 %v729, %v753
      %v758 = vadd.f32 %v730, %v754
      %759 = vrot.lane.b32.xlu0 %v553, 120
      %v760 = vpop.permute.xlu0 %759
      %762 = vset.pattern.permute.xlu0 8
      %763 = vperm.xlu0 %762, %v507
      %v764 = vpop.permute.xlu0 %763
      %766 = vset.pattern.permute.xlu0 8
      %767 = vperm.xlu0 %766, %v508
      %v768 = vpop.permute.xlu0 %767
      %770 = vset.pattern.permute.xlu0 8
      %771 = vperm.xlu0 %770, %v509
      %v772 = vpop.permute.xlu0 %771
      %774 = vset.pattern.permute.xlu0 8
      %775 = vperm.xlu0 %774, %v510
      %v776 = vpop.permute.xlu0 %775
      %v778 = vperm.slane %v760, 0
      %v779 = vmul.f32 %v764, %v778
      %v780 = vmul.f32 %v768, %v778
      %v781 = vmul.f32 %v772, %v778
      %v782 = vmul.f32 %v776, %v778
      %v783 = vadd.f32 %v755, %v779
      %v784 = vadd.f32 %v756, %v780
      %v785 = vadd.f32 %v757, %v781
      %v786 = vadd.f32 %v758, %v782
      %787 = vrot.lane.b32.xlu0 %v553, 119
      %v788 = vpop.permute.xlu0 %787
      %790 = vset.pattern.permute.xlu0 9
      %791 = vperm.xlu0 %790, %v507
      %v792 = vpop.permute.xlu0 %791
      %794 = vset.pattern.permute.xlu0 9
      %795 = vperm.xlu0 %794, %v508
      %v796 = vpop.permute.xlu0 %795
      %798 = vset.pattern.permute.xlu0 9
      %799 = vperm.xlu0 %798, %v509
      %v800 = vpop.permute.xlu0 %799
      %802 = vset.pattern.permute.xlu0 9
      %803 = vperm.xlu0 %802, %v510
      %v804 = vpop.permute.xlu0 %803
      %v806 = vperm.slane %v788, 0
      %v807 = vmul.f32 %v792, %v806
      %v808 = vmul.f32 %v796, %v806
      %v809 = vmul.f32 %v800, %v806
      %v810 = vmul.f32 %v804, %v806
      %v811 = vadd.f32 %v783, %v807
      %v812 = vadd.f32 %v784, %v808
      %v813 = vadd.f32 %v785, %v809
      %v814 = vadd.f32 %v786, %v810
      %815 = vrot.lane.b32.xlu0 %v553, 118
      %v816 = vpop.permute.xlu0 %815
      %818 = vset.pattern.permute.xlu0 10
      %819 = vperm.xlu0 %818, %v507
      %v820 = vpop.permute.xlu0 %819
      %822 = vset.pattern.permute.xlu0 10
      %823 = vperm.xlu0 %822, %v508
      %v824 = vpop.permute.xlu0 %823
      %826 = vset.pattern.permute.xlu0 10
      %827 = vperm.xlu0 %826, %v509
      %v828 = vpop.permute.xlu0 %827
      %830 = vset.pattern.permute.xlu0 10
      %831 = vperm.xlu0 %830, %v510
      %v832 = vpop.permute.xlu0 %831
      %v834 = vperm.slane %v816, 0
      %v835 = vmul.f32 %v820, %v834
      %v836 = vmul.f32 %v824, %v834
      %v837 = vmul.f32 %v828, %v834
      %v838 = vmul.f32 %v832, %v834
      %v839 = vadd.f32 %v811, %v835
      %v840 = vadd.f32 %v812, %v836
      %v841 = vadd.f32 %v813, %v837
      %v842 = vadd.f32 %v814, %v838
      %843 = vrot.lane.b32.xlu0 %v553, 117
      %v844 = vpop.permute.xlu0 %843
      %846 = vset.pattern.permute.xlu0 11
      %847 = vperm.xlu0 %846, %v507
      %v848 = vpop.permute.xlu0 %847
      %850 = vset.pattern.permute.xlu0 11
      %851 = vperm.xlu0 %850, %v508
      %v852 = vpop.permute.xlu0 %851
      %854 = vset.pattern.permute.xlu0 11
      %855 = vperm.xlu0 %854, %v509
      %v856 = vpop.permute.xlu0 %855
      %858 = vset.pattern.permute.xlu0 11
      %859 = vperm.xlu0 %858, %v510
      %v860 = vpop.permute.xlu0 %859
      %v862 = vperm.slane %v844, 0
      %v863 = vmul.f32 %v848, %v862
      %v864 = vmul.f32 %v852, %v862
      %v865 = vmul.f32 %v856, %v862
      %v866 = vmul.f32 %v860, %v862
      %v867 = vadd.f32 %v839, %v863
      %v868 = vadd.f32 %v840, %v864
      %v869 = vadd.f32 %v841, %v865
      %v870 = vadd.f32 %v842, %v866
      %871 = vrot.lane.b32.xlu0 %v553, 116
      %v872 = vpop.permute.xlu0 %871
      %874 = vset.pattern.permute.xlu0 12
      %875 = vperm.xlu0 %874, %v507
      %v876 = vpop.permute.xlu0 %875
      %878 = vset.pattern.permute.xlu0 12
      %879 = vperm.xlu0 %878, %v508
      %v880 = vpop.permute.xlu0 %879
      %882 = vset.pattern.permute.xlu0 12
      %883 = vperm.xlu0 %882, %v509
      %v884 = vpop.permute.xlu0 %883
      %886 = vset.pattern.permute.xlu0 12
      %887 = vperm.xlu0 %886, %v510
      %v888 = vpop.permute.xlu0 %887
      %v890 = vperm.slane %v872, 0
      %v891 = vmul.f32 %v876, %v890
      %v892 = vmul.f32 %v880, %v890
      %v893 = vmul.f32 %v884, %v890
      %v894 = vmul.f32 %v888, %v890
      %v895 = vadd.f32 %v867, %v891
      %v896 = vadd.f32 %v868, %v892
      %v897 = vadd.f32 %v869, %v893
      %v898 = vadd.f32 %v870, %v894
      %899 = vrot.lane.b32.xlu0 %v553, 115
      %v900 = vpop.permute.xlu0 %899
      %902 = vset.pattern.permute.xlu0 13
      %903 = vperm.xlu0 %902, %v507
      %v904 = vpop.permute.xlu0 %903
      %906 = vset.pattern.permute.xlu0 13
      %907 = vperm.xlu0 %906, %v508
      %v908 = vpop.permute.xlu0 %907
      %910 = vset.pattern.permute.xlu0 13
      %911 = vperm.xlu0 %910, %v509
      %v912 = vpop.permute.xlu0 %911
      %914 = vset.pattern.permute.xlu0 13
      %915 = vperm.xlu0 %914, %v510
      %v916 = vpop.permute.xlu0 %915
      %v918 = vperm.slane %v900, 0
      %v919 = vmul.f32 %v904, %v918
      %v920 = vmul.f32 %v908, %v918
      %v921 = vmul.f32 %v912, %v918
      %v922 = vmul.f32 %v916, %v918
      %v923 = vadd.f32 %v895, %v919
      %v924 = vadd.f32 %v896, %v920
      %v925 = vadd.f32 %v897, %v921
      %v926 = vadd.f32 %v898, %v922
      %927 = vrot.lane.b32.xlu0 %v553, 114
      %v928 = vpop.permute.xlu0 %927
      %930 = vset.pattern.permute.xlu0 14
      %931 = vperm.xlu0 %930, %v507
      %v932 = vpop.permute.xlu0 %931
      %934 = vset.pattern.permute.xlu0 14
      %935 = vperm.xlu0 %934, %v508
      %v936 = vpop.permute.xlu0 %935
      %938 = vset.pattern.permute.xlu0 14
      %939 = vperm.xlu0 %938, %v509
      %v940 = vpop.permute.xlu0 %939
      %942 = vset.pattern.permute.xlu0 14
      %943 = vperm.xlu0 %942, %v510
      %v944 = vpop.permute.xlu0 %943
      %v946 = vperm.slane %v928, 0
      %v947 = vmul.f32 %v932, %v946
      %v948 = vmul.f32 %v936, %v946
      %v949 = vmul.f32 %v940, %v946
      %v950 = vmul.f32 %v944, %v946
      %v951 = vadd.f32 %v923, %v947
      %v952 = vadd.f32 %v924, %v948
      %v953 = vadd.f32 %v925, %v949
      %v954 = vadd.f32 %v926, %v950
      %955 = vrot.lane.b32.xlu0 %v553, 113
      %v956 = vpop.permute.xlu0 %955
      %958 = vset.pattern.permute.xlu0 15
      %959 = vperm.xlu0 %958, %v507
      %v960 = vpop.permute.xlu0 %959
      %962 = vset.pattern.permute.xlu0 15
      %963 = vperm.xlu0 %962, %v508
      %v964 = vpop.permute.xlu0 %963
      %966 = vset.pattern.permute.xlu0 15
      %967 = vperm.xlu0 %966, %v509
      %v968 = vpop.permute.xlu0 %967
      %970 = vset.pattern.permute.xlu0 15
      %971 = vperm.xlu0 %970, %v510
      %v972 = vpop.permute.xlu0 %971
      %v974 = vperm.slane %v956, 0
      %v975 = vmul.f32 %v960, %v974
      %v976 = vmul.f32 %v964, %v974
      %v977 = vmul.f32 %v968, %v974
      %v978 = vmul.f32 %v972, %v974
      %v979 = vadd.f32 %v951, %v975
      %v980 = vadd.f32 %v952, %v976
      %v981 = vadd.f32 %v953, %v977
      %v982 = vadd.f32 %v954, %v978
      %983 = vrot.lane.b32.xlu0 %v553, 112
      %v984 = vpop.permute.xlu0 %983
      %986 = vset.pattern.permute.xlu0 16
      %987 = vperm.xlu0 %986, %v507
      %v988 = vpop.permute.xlu0 %987
      %990 = vset.pattern.permute.xlu0 16
      %991 = vperm.xlu0 %990, %v508
      %v992 = vpop.permute.xlu0 %991
      %994 = vset.pattern.permute.xlu0 16
      %995 = vperm.xlu0 %994, %v509
      %v996 = vpop.permute.xlu0 %995
      %998 = vset.pattern.permute.xlu0 16
      %999 = vperm.xlu0 %998, %v510
      %v1000 = vpop.permute.xlu0 %999
      %v1002 = vperm.slane %v984, 0
      %v1003 = vmul.f32 %v988, %v1002
      %v1004 = vmul.f32 %v992, %v1002
      %v1005 = vmul.f32 %v996, %v1002
      %v1006 = vmul.f32 %v1000, %v1002
      %v1007 = vadd.f32 %v979, %v1003
      %v1008 = vadd.f32 %v980, %v1004
      %v1009 = vadd.f32 %v981, %v1005
      %v1010 = vadd.f32 %v982, %v1006
      %1011 = vrot.lane.b32.xlu0 %v553, 111
      %v1012 = vpop.permute.xlu0 %1011
      %1014 = vset.pattern.permute.xlu0 17
      %1015 = vperm.xlu0 %1014, %v507
      %v1016 = vpop.permute.xlu0 %1015
      %1018 = vset.pattern.permute.xlu0 17
      %1019 = vperm.xlu0 %1018, %v508
      %v1020 = vpop.permute.xlu0 %1019
      %1022 = vset.pattern.permute.xlu0 17
      %1023 = vperm.xlu0 %1022, %v509
      %v1024 = vpop.permute.xlu0 %1023
      %1026 = vset.pattern.permute.xlu0 17
      %1027 = vperm.xlu0 %1026, %v510
      %v1028 = vpop.permute.xlu0 %1027
      %v1030 = vperm.slane %v1012, 0
      %v1031 = vmul.f32 %v1016, %v1030
      %v1032 = vmul.f32 %v1020, %v1030
      %v1033 = vmul.f32 %v1024, %v1030
      %v1034 = vmul.f32 %v1028, %v1030
      %v1035 = vadd.f32 %v1007, %v1031
      %v1036 = vadd.f32 %v1008, %v1032
      %v1037 = vadd.f32 %v1009, %v1033
      %v1038 = vadd.f32 %v1010, %v1034
      %1039 = vrot.lane.b32.xlu0 %v553, 110
      %v1040 = vpop.permute.xlu0 %1039
      %1042 = vset.pattern.permute.xlu0 18
      %1043 = vperm.xlu0 %1042, %v507
      %v1044 = vpop.permute.xlu0 %1043
      %1046 = vset.pattern.permute.xlu0 18
      %1047 = vperm.xlu0 %1046, %v508
      %v1048 = vpop.permute.xlu0 %1047
      %1050 = vset.pattern.permute.xlu0 18
      %1051 = vperm.xlu0 %1050, %v509
      %v1052 = vpop.permute.xlu0 %1051
      %1054 = vset.pattern.permute.xlu0 18
      %1055 = vperm.xlu0 %1054, %v510
      %v1056 = vpop.permute.xlu0 %1055
      %v1058 = vperm.slane %v1040, 0
      %v1059 = vmul.f32 %v1044, %v1058
      %v1060 = vmul.f32 %v1048, %v1058
      %v1061 = vmul.f32 %v1052, %v1058
      %v1062 = vmul.f32 %v1056, %v1058
      %v1063 = vadd.f32 %v1035, %v1059
      %v1064 = vadd.f32 %v1036, %v1060
      %v1065 = vadd.f32 %v1037, %v1061
      %v1066 = vadd.f32 %v1038, %v1062
      %1067 = vrot.lane.b32.xlu0 %v553, 109
      %v1068 = vpop.permute.xlu0 %1067
      %1070 = vset.pattern.permute.xlu0 19
      %1071 = vperm.xlu0 %1070, %v507
      %v1072 = vpop.permute.xlu0 %1071
      %1074 = vset.pattern.permute.xlu0 19
      %1075 = vperm.xlu0 %1074, %v508
      %v1076 = vpop.permute.xlu0 %1075
      %1078 = vset.pattern.permute.xlu0 19
      %1079 = vperm.xlu0 %1078, %v509
      %v1080 = vpop.permute.xlu0 %1079
      %1082 = vset.pattern.permute.xlu0 19
      %1083 = vperm.xlu0 %1082, %v510
      %v1084 = vpop.permute.xlu0 %1083
      %v1086 = vperm.slane %v1068, 0
      %v1087 = vmul.f32 %v1072, %v1086
      %v1088 = vmul.f32 %v1076, %v1086
      %v1089 = vmul.f32 %v1080, %v1086
      %v1090 = vmul.f32 %v1084, %v1086
      %v1091 = vadd.f32 %v1063, %v1087
      %v1092 = vadd.f32 %v1064, %v1088
      %v1093 = vadd.f32 %v1065, %v1089
      %v1094 = vadd.f32 %v1066, %v1090
      %1096 = vset.pattern.permute.xlu0 0
      %1097 = vperm.xlu0 %1096, %v511
      %v1098 = vpop.permute.xlu0 %1097
      %1101 = vset.pattern.permute.xlu0 0
      %1102 = vperm.xlu0 %1101, %v512
      %v1103 = vpop.permute.xlu0 %1102
      %1106 = vset.pattern.permute.xlu0 0
      %1107 = vperm.xlu0 %1106, %v513
      %v1108 = vpop.permute.xlu0 %1107
      %1111 = vset.pattern.permute.xlu0 0
      %1112 = vperm.xlu0 %1111, %v514
      %v1113 = vpop.permute.xlu0 %1112
      %v1115 = vadd.f32 %v1091, %v1098
      %v1116 = vadd.f32 %v1092, %v1103
      %v1117 = vadd.f32 %v1093, %v1108
      %v1118 = vadd.f32 %v1094, %v1113
      %v1119 = vmax.f32 %v1115, 0.0
      %v1120 = vmax.f32 %v1116, 0.0
      %v1121 = vmax.f32 %v1117, 0.0
      %v1122 = vmax.f32 %v1118, 0.0
      %v1123 = vpack.c.bf16 %v1119, %v1119
      %v1124 = vpack.c.bf16 %v1120, %v1120
      %v1125 = vpack.c.bf16 %v1121, %v1121
      %v1126 = vpack.c.bf16 %v1122, %v1122
      %v1127 = vld [vmem:[%s477] sm:$0xf]
      %v1128 = vld [vmem:[%s477 + $0x4] sm:$0xf]
      %v1129 = vld [vmem:[%s477 + $0x8] sm:$0xf]
      %v1130 = vld [vmem:[%s477 + $0xc] sm:$0xf]
      %v1131 = vld [vmem:[%s477 + $0x10] sm:$0xf]
      %v1132 = vld [vmem:[%s477 + $0x14] sm:$0xf]
      %v1133 = vld [vmem:[%s477 + $0x18] sm:$0xf]
      %v1134 = vld [vmem:[%s477 + $0x1c] sm:$0xf]
      %s1135 = scalar_lea.vmem %s477, 32
      %v1136 = vld [vmem:[%s1135] sm:$0xf]
      %v1137 = vld [vmem:[%s1135 + $0x4] sm:$0xf]
      %v1138 = vld [vmem:[%s1135 + $0x8] sm:$0xf]
      %v1139 = vld [vmem:[%s1135 + $0xc] sm:$0xf]
      %v1140 = vld [vmem:[%s1135 + $0x10] sm:$0xf]
      %v1141 = vld [vmem:[%s1135 + $0x14] sm:$0xf]
      %v1142 = vld [vmem:[%s1135 + $0x18] sm:$0xf]
      %v1143 = vld [vmem:[%s1135 + $0x1c] sm:$0xf]
      %v1148 = vunpack.c.l.b16 %v1123
      %v1149 = vunpack.c.l.b16 %v1124
      %v1150 = vunpack.c.l.b16 %v1125
      %v1151 = vunpack.c.l.b16 %v1126
      %v1152 = vpack.c.b16 %v1149, %v1148
      %v1153 = vpack.c.b16 %v1151, %v1150
      %1154 = vrot.lane.b32.xlu0 %v1152, 127
      %v1155 = vpop.permute.xlu0 %1154
      %1156 = vrot.lane.b32.xlu0 %v1153, 127
      %v1157 = vpop.permute.xlu0 %1156
      %v1170 = vunpack.c.l.b16 %v1136
      %v1171 = vunpack.c.l.b16 %v1137
      %v1172 = vunpack.c.l.b16 %v1138
      %v1173 = vunpack.c.l.b16 %v1139
      %v1174 = vunpack.c.l.b16 %v1140
      %v1175 = vunpack.c.l.b16 %v1141
      %v1176 = vunpack.c.l.b16 %v1142
      %v1177 = vunpack.c.l.b16 %v1143
      %v1178 = vpack.c.b16 %v1171, %v1170
      %v1179 = vpack.c.b16 %v1173, %v1172
      %v1180 = vpack.c.b16 %v1175, %v1174
      %v1181 = vpack.c.b16 %v1177, %v1176
      %vm1182 = vcmask 261120
      %v1184 = vsel %vm1182, %v1178, 0
      %v1187 = vsel %vm1182, %v1179, 0
      %v1190 = vsel %vm1182, %v1180, 0
      %v1193 = vsel %vm1182, %v1181, 0
      %1195 = vmatpush.bf16.msra.mxu0 0
      %1196 = vmatpush.bf16.msra.mxu0 0
      %1197 = vmatpush.bf16.msra.mxu0 0
      %1198 = vmatpush.bf16.msra.mxu0 0
      %1199 = vmatpush.bf16.msra.mxu0 0
      %1200 = vmatpush.bf16.msra.mxu0 0
      %1201 = vmatpush.bf16.msra.mxu0 %v1157
      %1202 = vmatpush.bf16.msra.mxu0 %v1155
      %1203 = vmatmul.bf16.gmra.mxu0 %v1184
      %v1204 = vpop.f32.mrf.mxu0
      %v1205 = vadd.f32 0.0, %v1204
      %v1206 = vpop.f32.mrf.mxu0
      %v1207 = vadd.f32 0.0, %v1206
      %1208 = vmatmul.bf16.gmra.mxu0 %v1187
      %v1209 = vpop.f32.mrf.mxu0
      %v1210 = vadd.f32 0.0, %v1209
      %v1211 = vpop.f32.mrf.mxu0
      %v1212 = vadd.f32 0.0, %v1211
      %1213 = vmatmul.bf16.gmra.mxu0 %v1190
      %v1214 = vpop.f32.mrf.mxu0
      %v1215 = vadd.f32 0.0, %v1214
      %v1216 = vpop.f32.mrf.mxu0
      %v1217 = vadd.f32 0.0, %v1216
      %1218 = vmatmul.bf16.gmra.mxu0 %v1193
      %v1219 = vpop.f32.mrf.mxu0
      %v1220 = vadd.f32 0.0, %v1219
      %v1221 = vpop.f32.mrf.mxu0
      %v1222 = vadd.f32 0.0, %v1221
      %1223 = vdwg.mxu0
      %v1232 = vunpack.c.l.b16 %v1127
      %v1233 = vunpack.c.l.b16 %v1128
      %v1234 = vunpack.c.l.b16 %v1129
      %v1235 = vunpack.c.l.b16 %v1130
      %v1236 = vunpack.c.l.b16 %v1131
      %v1237 = vunpack.c.l.b16 %v1132
      %v1238 = vunpack.c.l.b16 %v1133
      %v1239 = vunpack.c.l.b16 %v1134
      %v1240 = vpack.c.b16 %v1233, %v1232
      %v1241 = vpack.c.b16 %v1235, %v1234
      %v1242 = vpack.c.b16 %v1237, %v1236
      %v1243 = vpack.c.b16 %v1239, %v1238
      %v1247 = vsel %vm1182, %v1240, 0
      %v1250 = vsel %vm1182, %v1241, 0
      %v1253 = vsel %vm1182, %v1242, 0
      %v1256 = vsel %vm1182, %v1243, 0
      %1258 = vmatpush.bf16.msra.mxu0 0
      %1259 = vmatpush.bf16.msra.mxu0 0
      %1260 = vmatpush.bf16.msra.mxu0 0
      %1261 = vmatpush.bf16.msra.mxu0 0
      %1262 = vmatpush.bf16.msra.mxu0 0
      %1263 = vmatpush.bf16.msra.mxu0 0
      %1264 = vmatpush.bf16.msra.mxu0 %v1153
      %1265 = vmatpush.bf16.msra.mxu0 %v1152
      %1266 = vmatmul.bf16.gmra.mxu0 %v1247
      %v1267 = vpop.f32.mrf.mxu0
      %v1268 = vadd.f32 %v1205, %v1267
      %v1269 = vpop.f32.mrf.mxu0
      %v1270 = vadd.f32 %v1207, %v1269
      %1271 = vmatmul.bf16.gmra.mxu0 %v1250
      %v1272 = vpop.f32.mrf.mxu0
      %v1273 = vadd.f32 %v1210, %v1272
      %v1274 = vpop.f32.mrf.mxu0
      %v1275 = vadd.f32 %v1212, %v1274
      %1276 = vmatmul.bf16.gmra.mxu0 %v1253
      %v1277 = vpop.f32.mrf.mxu0
      %v1278 = vadd.f32 %v1215, %v1277
      %v1279 = vpop.f32.mrf.mxu0
      %v1280 = vadd.f32 %v1217, %v1279
      %1281 = vmatmul.bf16.gmra.mxu0 %v1256
      %v1282 = vpop.f32.mrf.mxu0
      %v1283 = vadd.f32 %v1220, %v1282
      %v1284 = vpop.f32.mrf.mxu0
      %v1285 = vadd.f32 %v1222, %v1284
      %1286 = vdwg.mxu0
      %s1287 = scalar_lea.vmem %s477, 64
      %v1288 = vld [vmem:[%s1287] sm:$0xf]
      %v1289 = vld [vmem:[%s1287 + $0x4] sm:$0xf]
      %v1290 = vld [vmem:[%s1287 + $0x8] sm:$0xf]
      %v1291 = vld [vmem:[%s1287 + $0xc] sm:$0xf]
      %v1292 = vld [vmem:[%s1287 + $0x10] sm:$0xf]
      %v1293 = vld [vmem:[%s1287 + $0x14] sm:$0xf]
      %v1294 = vld [vmem:[%s1287 + $0x18] sm:$0xf]
      %v1295 = vld [vmem:[%s1287 + $0x1c] sm:$0xf]
      %1296 = vrot.lane.b32.xlu0 %v1152, 126
      %v1297 = vpop.permute.xlu0 %1296
      %1298 = vrot.lane.b32.xlu0 %v1153, 126
      %v1299 = vpop.permute.xlu0 %1298
      %v1312 = vunpack.c.l.b16 %v1288
      %v1313 = vunpack.c.l.b16 %v1289
      %v1314 = vunpack.c.l.b16 %v1290
      %v1315 = vunpack.c.l.b16 %v1291
      %v1316 = vunpack.c.l.b16 %v1292
      %v1317 = vunpack.c.l.b16 %v1293
      %v1318 = vunpack.c.l.b16 %v1294
      %v1319 = vunpack.c.l.b16 %v1295
      %v1320 = vpack.c.b16 %v1313, %v1312
      %v1321 = vpack.c.b16 %v1315, %v1314
      %v1322 = vpack.c.b16 %v1317, %v1316
      %v1323 = vpack.c.b16 %v1319, %v1318
      %v1325 = vsel %vm1182, %v1320, 0
      %v1328 = vsel %vm1182, %v1321, 0
      %v1331 = vsel %vm1182, %v1322, 0
      %v1334 = vsel %vm1182, %v1323, 0
      %1336 = vmatpush.bf16.msra.mxu0 0
      %1337 = vmatpush.bf16.msra.mxu0 0
      %1338 = vmatpush.bf16.msra.mxu0 0
      %1339 = vmatpush.bf16.msra.mxu0 0
      %1340 = vmatpush.bf16.msra.mxu0 0
      %1341 = vmatpush.bf16.msra.mxu0 0
      %1342 = vmatpush.bf16.msra.mxu0 %v1299
      %1343 = vmatpush.bf16.msra.mxu0 %v1297
      %1344 = vmatmul.bf16.gmra.mxu0 %v1325
      %v1345 = vpop.f32.mrf.mxu0
      %v1346 = vadd.f32 0.0, %v1345
      %v1347 = vpop.f32.mrf.mxu0
      %v1348 = vadd.f32 0.0, %v1347
      %1349 = vmatmul.bf16.gmra.mxu0 %v1328
      %v1350 = vpop.f32.mrf.mxu0
      %v1351 = vadd.f32 0.0, %v1350
      %v1352 = vpop.f32.mrf.mxu0
      %v1353 = vadd.f32 0.0, %v1352
      %1354 = vmatmul.bf16.gmra.mxu0 %v1331
      %v1355 = vpop.f32.mrf.mxu0
      %v1356 = vadd.f32 0.0, %v1355
      %v1357 = vpop.f32.mrf.mxu0
      %v1358 = vadd.f32 0.0, %v1357
      %1359 = vmatmul.bf16.gmra.mxu0 %v1334
      %v1360 = vpop.f32.mrf.mxu0
      %v1361 = vadd.f32 0.0, %v1360
      %v1362 = vpop.f32.mrf.mxu0
      %v1363 = vadd.f32 0.0, %v1362
      %1364 = vdwg.mxu0
      %v1365 = vadd.f32 %v1268, %v1346
      %v1366 = vadd.f32 %v1270, %v1348
      %v1367 = vadd.f32 %v1273, %v1351
      %v1368 = vadd.f32 %v1275, %v1353
      %v1369 = vadd.f32 %v1278, %v1356
      %v1370 = vadd.f32 %v1280, %v1358
      %v1371 = vadd.f32 %v1283, %v1361
      %v1372 = vadd.f32 %v1285, %v1363
      %s1373 = scalar_lea.vmem %s477, 96
      %v1374 = vld [vmem:[%s1373] sm:$0xf]
      %v1375 = vld [vmem:[%s1373 + $0x4] sm:$0xf]
      %v1376 = vld [vmem:[%s1373 + $0x8] sm:$0xf]
      %v1377 = vld [vmem:[%s1373 + $0xc] sm:$0xf]
      %v1378 = vld [vmem:[%s1373 + $0x10] sm:$0xf]
      %v1379 = vld [vmem:[%s1373 + $0x14] sm:$0xf]
      %v1380 = vld [vmem:[%s1373 + $0x18] sm:$0xf]
      %v1381 = vld [vmem:[%s1373 + $0x1c] sm:$0xf]
      %1382 = vrot.lane.b32.xlu0 %v1152, 125
      %v1383 = vpop.permute.xlu0 %1382
      %1384 = vrot.lane.b32.xlu0 %v1153, 125
      %v1385 = vpop.permute.xlu0 %1384
      %v1398 = vunpack.c.l.b16 %v1374
      %v1399 = vunpack.c.l.b16 %v1375
      %v1400 = vunpack.c.l.b16 %v1376
      %v1401 = vunpack.c.l.b16 %v1377
      %v1402 = vunpack.c.l.b16 %v1378
      %v1403 = vunpack.c.l.b16 %v1379
      %v1404 = vunpack.c.l.b16 %v1380
      %v1405 = vunpack.c.l.b16 %v1381
      %v1406 = vpack.c.b16 %v1399, %v1398
      %v1407 = vpack.c.b16 %v1401, %v1400
      %v1408 = vpack.c.b16 %v1403, %v1402
      %v1409 = vpack.c.b16 %v1405, %v1404
      %v1411 = vsel %vm1182, %v1406, 0
      %v1414 = vsel %vm1182, %v1407, 0
      %v1417 = vsel %vm1182, %v1408, 0
      %v1420 = vsel %vm1182, %v1409, 0
      %1422 = vmatpush.bf16.msra.mxu0 0
      %1423 = vmatpush.bf16.msra.mxu0 0
      %1424 = vmatpush.bf16.msra.mxu0 0
      %1425 = vmatpush.bf16.msra.mxu0 0
      %1426 = vmatpush.bf16.msra.mxu0 0
      %1427 = vmatpush.bf16.msra.mxu0 0
      %1428 = vmatpush.bf16.msra.mxu0 %v1385
      %1429 = vmatpush.bf16.msra.mxu0 %v1383
      %1430 = vmatmul.bf16.gmra.mxu0 %v1411
      %v1431 = vpop.f32.mrf.mxu0
      %v1432 = vadd.f32 0.0, %v1431
      %v1433 = vpop.f32.mrf.mxu0
      %v1434 = vadd.f32 0.0, %v1433
      %1435 = vmatmul.bf16.gmra.mxu0 %v1414
      %v1436 = vpop.f32.mrf.mxu0
      %v1437 = vadd.f32 0.0, %v1436
      %v1438 = vpop.f32.mrf.mxu0
      %v1439 = vadd.f32 0.0, %v1438
      %1440 = vmatmul.bf16.gmra.mxu0 %v1417
      %v1441 = vpop.f32.mrf.mxu0
      %v1442 = vadd.f32 0.0, %v1441
      %v1443 = vpop.f32.mrf.mxu0
      %v1444 = vadd.f32 0.0, %v1443
      %1445 = vmatmul.bf16.gmra.mxu0 %v1420
      %v1446 = vpop.f32.mrf.mxu0
      %v1447 = vadd.f32 0.0, %v1446
      %v1448 = vpop.f32.mrf.mxu0
      %v1449 = vadd.f32 0.0, %v1448
      %1450 = vdwg.mxu0
      %v1451 = vadd.f32 %v1365, %v1432
      %v1452 = vadd.f32 %v1366, %v1434
      %v1453 = vadd.f32 %v1367, %v1437
      %v1454 = vadd.f32 %v1368, %v1439
      %v1455 = vadd.f32 %v1369, %v1442
      %v1456 = vadd.f32 %v1370, %v1444
      %v1457 = vadd.f32 %v1371, %v1447
      %v1458 = vadd.f32 %v1372, %v1449
      %s1459 = scalar_lea.vmem %s477, 128
      %v1460 = vld [vmem:[%s1459] sm:$0xf]
      %v1461 = vld [vmem:[%s1459 + $0x4] sm:$0xf]
      %v1462 = vld [vmem:[%s1459 + $0x8] sm:$0xf]
      %v1463 = vld [vmem:[%s1459 + $0xc] sm:$0xf]
      %v1464 = vld [vmem:[%s1459 + $0x10] sm:$0xf]
      %v1465 = vld [vmem:[%s1459 + $0x14] sm:$0xf]
      %v1466 = vld [vmem:[%s1459 + $0x18] sm:$0xf]
      %v1467 = vld [vmem:[%s1459 + $0x1c] sm:$0xf]
      %1468 = vrot.lane.b32.xlu0 %v1152, 124
      %v1469 = vpop.permute.xlu0 %1468
      %1470 = vrot.lane.b32.xlu0 %v1153, 124
      %v1471 = vpop.permute.xlu0 %1470
      %v1484 = vunpack.c.l.b16 %v1460
      %v1485 = vunpack.c.l.b16 %v1461
      %v1486 = vunpack.c.l.b16 %v1462
      %v1487 = vunpack.c.l.b16 %v1463
      %v1488 = vunpack.c.l.b16 %v1464
      %v1489 = vunpack.c.l.b16 %v1465
      %v1490 = vunpack.c.l.b16 %v1466
      %v1491 = vunpack.c.l.b16 %v1467
      %v1492 = vpack.c.b16 %v1485, %v1484
      %v1493 = vpack.c.b16 %v1487, %v1486
      %v1494 = vpack.c.b16 %v1489, %v1488
      %v1495 = vpack.c.b16 %v1491, %v1490
      %v1497 = vsel %vm1182, %v1492, 0
      %v1500 = vsel %vm1182, %v1493, 0
      %v1503 = vsel %vm1182, %v1494, 0
      %v1506 = vsel %vm1182, %v1495, 0
      %1508 = vmatpush.bf16.msra.mxu0 0
      %1509 = vmatpush.bf16.msra.mxu0 0
      %1510 = vmatpush.bf16.msra.mxu0 0
      %1511 = vmatpush.bf16.msra.mxu0 0
      %1512 = vmatpush.bf16.msra.mxu0 0
      %1513 = vmatpush.bf16.msra.mxu0 0
      %1514 = vmatpush.bf16.msra.mxu0 %v1471
      %1515 = vmatpush.bf16.msra.mxu0 %v1469
      %1516 = vmatmul.bf16.gmra.mxu0 %v1497
      %v1517 = vpop.f32.mrf.mxu0
      %v1518 = vadd.f32 0.0, %v1517
      %v1519 = vpop.f32.mrf.mxu0
      %v1520 = vadd.f32 0.0, %v1519
      %1521 = vmatmul.bf16.gmra.mxu0 %v1500
      %v1522 = vpop.f32.mrf.mxu0
      %v1523 = vadd.f32 0.0, %v1522
      %v1524 = vpop.f32.mrf.mxu0
      %v1525 = vadd.f32 0.0, %v1524
      %1526 = vmatmul.bf16.gmra.mxu0 %v1503
      %v1527 = vpop.f32.mrf.mxu0
      %v1528 = vadd.f32 0.0, %v1527
      %v1529 = vpop.f32.mrf.mxu0
      %v1530 = vadd.f32 0.0, %v1529
      %1531 = vmatmul.bf16.gmra.mxu0 %v1506
      %v1532 = vpop.f32.mrf.mxu0
      %v1533 = vadd.f32 0.0, %v1532
      %v1534 = vpop.f32.mrf.mxu0
      %v1535 = vadd.f32 0.0, %v1534
      %1536 = vdwg.mxu0
      %v1537 = vadd.f32 %v1451, %v1518
      %v1538 = vadd.f32 %v1452, %v1520
      %v1539 = vadd.f32 %v1453, %v1523
      %v1540 = vadd.f32 %v1454, %v1525
      %v1541 = vadd.f32 %v1455, %v1528
      %v1542 = vadd.f32 %v1456, %v1530
      %v1543 = vadd.f32 %v1457, %v1533
      %v1544 = vadd.f32 %v1458, %v1535
      %s1545 = scalar_lea.vmem %s477, 160
      %v1546 = vld [vmem:[%s1545] sm:$0xf]
      %v1547 = vld [vmem:[%s1545 + $0x4] sm:$0xf]
      %v1548 = vld [vmem:[%s1545 + $0x8] sm:$0xf]
      %v1549 = vld [vmem:[%s1545 + $0xc] sm:$0xf]
      %v1550 = vld [vmem:[%s1545 + $0x10] sm:$0xf]
      %v1551 = vld [vmem:[%s1545 + $0x14] sm:$0xf]
      %v1552 = vld [vmem:[%s1545 + $0x18] sm:$0xf]
      %v1553 = vld [vmem:[%s1545 + $0x1c] sm:$0xf]
      %1554 = vrot.lane.b32.xlu0 %v1152, 123
      %v1555 = vpop.permute.xlu0 %1554
      %1556 = vrot.lane.b32.xlu0 %v1153, 123
      %v1557 = vpop.permute.xlu0 %1556
      %v1570 = vunpack.c.l.b16 %v1546
      %v1571 = vunpack.c.l.b16 %v1547
      %v1572 = vunpack.c.l.b16 %v1548
      %v1573 = vunpack.c.l.b16 %v1549
      %v1574 = vunpack.c.l.b16 %v1550
      %v1575 = vunpack.c.l.b16 %v1551
      %v1576 = vunpack.c.l.b16 %v1552
      %v1577 = vunpack.c.l.b16 %v1553
      %v1578 = vpack.c.b16 %v1571, %v1570
      %v1579 = vpack.c.b16 %v1573, %v1572
      %v1580 = vpack.c.b16 %v1575, %v1574
      %v1581 = vpack.c.b16 %v1577, %v1576
      %v1583 = vsel %vm1182, %v1578, 0
      %v1586 = vsel %vm1182, %v1579, 0
      %v1589 = vsel %vm1182, %v1580, 0
      %v1592 = vsel %vm1182, %v1581, 0
      %1594 = vmatpush.bf16.msra.mxu0 0
      %1595 = vmatpush.bf16.msra.mxu0 0
      %1596 = vmatpush.bf16.msra.mxu0 0
      %1597 = vmatpush.bf16.msra.mxu0 0
      %1598 = vmatpush.bf16.msra.mxu0 0
      %1599 = vmatpush.bf16.msra.mxu0 0
      %1600 = vmatpush.bf16.msra.mxu0 %v1557
      %1601 = vmatpush.bf16.msra.mxu0 %v1555
      %1602 = vmatmul.bf16.gmra.mxu0 %v1583
      %v1603 = vpop.f32.mrf.mxu0
      %v1604 = vadd.f32 0.0, %v1603
      %v1605 = vpop.f32.mrf.mxu0
      %v1606 = vadd.f32 0.0, %v1605
      %1607 = vmatmul.bf16.gmra.mxu0 %v1586
      %v1608 = vpop.f32.mrf.mxu0
      %v1609 = vadd.f32 0.0, %v1608
      %v1610 = vpop.f32.mrf.mxu0
      %v1611 = vadd.f32 0.0, %v1610
      %1612 = vmatmul.bf16.gmra.mxu0 %v1589
      %v1613 = vpop.f32.mrf.mxu0
      %v1614 = vadd.f32 0.0, %v1613
      %v1615 = vpop.f32.mrf.mxu0
      %v1616 = vadd.f32 0.0, %v1615
      %1617 = vmatmul.bf16.gmra.mxu0 %v1592
      %v1618 = vpop.f32.mrf.mxu0
      %v1619 = vadd.f32 0.0, %v1618
      %v1620 = vpop.f32.mrf.mxu0
      %v1621 = vadd.f32 0.0, %v1620
      %1622 = vdwg.mxu0
      %v1623 = vadd.f32 %v1537, %v1604
      %v1624 = vadd.f32 %v1538, %v1606
      %v1625 = vadd.f32 %v1539, %v1609
      %v1626 = vadd.f32 %v1540, %v1611
      %v1627 = vadd.f32 %v1541, %v1614
      %v1628 = vadd.f32 %v1542, %v1616
      %v1629 = vadd.f32 %v1543, %v1619
      %v1630 = vadd.f32 %v1544, %v1621
      %s1631 = scalar_lea.vmem %s477, 192
      %v1632 = vld [vmem:[%s1631] sm:$0xf]
      %v1633 = vld [vmem:[%s1631 + $0x4] sm:$0xf]
      %v1634 = vld [vmem:[%s1631 + $0x8] sm:$0xf]
      %v1635 = vld [vmem:[%s1631 + $0xc] sm:$0xf]
      %v1636 = vld [vmem:[%s1631 + $0x10] sm:$0xf]
      %v1637 = vld [vmem:[%s1631 + $0x14] sm:$0xf]
      %v1638 = vld [vmem:[%s1631 + $0x18] sm:$0xf]
      %v1639 = vld [vmem:[%s1631 + $0x1c] sm:$0xf]
      %1640 = vrot.lane.b32.xlu0 %v1152, 122
      %v1641 = vpop.permute.xlu0 %1640
      %1642 = vrot.lane.b32.xlu0 %v1153, 122
      %v1643 = vpop.permute.xlu0 %1642
      %v1656 = vunpack.c.l.b16 %v1632
      %v1657 = vunpack.c.l.b16 %v1633
      %v1658 = vunpack.c.l.b16 %v1634
      %v1659 = vunpack.c.l.b16 %v1635
      %v1660 = vunpack.c.l.b16 %v1636
      %v1661 = vunpack.c.l.b16 %v1637
      %v1662 = vunpack.c.l.b16 %v1638
      %v1663 = vunpack.c.l.b16 %v1639
      %v1664 = vpack.c.b16 %v1657, %v1656
      %v1665 = vpack.c.b16 %v1659, %v1658
      %v1666 = vpack.c.b16 %v1661, %v1660
      %v1667 = vpack.c.b16 %v1663, %v1662
      %v1669 = vsel %vm1182, %v1664, 0
      %v1672 = vsel %vm1182, %v1665, 0
      %v1675 = vsel %vm1182, %v1666, 0
      %v1678 = vsel %vm1182, %v1667, 0
      %1680 = vmatpush.bf16.msra.mxu0 0
      %1681 = vmatpush.bf16.msra.mxu0 0
      %1682 = vmatpush.bf16.msra.mxu0 0
      %1683 = vmatpush.bf16.msra.mxu0 0
      %1684 = vmatpush.bf16.msra.mxu0 0
      %1685 = vmatpush.bf16.msra.mxu0 0
      %1686 = vmatpush.bf16.msra.mxu0 %v1643
      %1687 = vmatpush.bf16.msra.mxu0 %v1641
      %1688 = vmatmul.bf16.gmra.mxu0 %v1669
      %v1689 = vpop.f32.mrf.mxu0
      %v1690 = vadd.f32 0.0, %v1689
      %v1691 = vpop.f32.mrf.mxu0
      %v1692 = vadd.f32 0.0, %v1691
      %1693 = vmatmul.bf16.gmra.mxu0 %v1672
      %v1694 = vpop.f32.mrf.mxu0
      %v1695 = vadd.f32 0.0, %v1694
      %v1696 = vpop.f32.mrf.mxu0
      %v1697 = vadd.f32 0.0, %v1696
      %1698 = vmatmul.bf16.gmra.mxu0 %v1675
      %v1699 = vpop.f32.mrf.mxu0
      %v1700 = vadd.f32 0.0, %v1699
      %v1701 = vpop.f32.mrf.mxu0
      %v1702 = vadd.f32 0.0, %v1701
      %1703 = vmatmul.bf16.gmra.mxu0 %v1678
      %v1704 = vpop.f32.mrf.mxu0
      %v1705 = vadd.f32 0.0, %v1704
      %v1706 = vpop.f32.mrf.mxu0
      %v1707 = vadd.f32 0.0, %v1706
      %1708 = vdwg.mxu0
      %v1709 = vadd.f32 %v1623, %v1690
      %v1710 = vadd.f32 %v1624, %v1692
      %v1711 = vadd.f32 %v1625, %v1695
      %v1712 = vadd.f32 %v1626, %v1697
      %v1713 = vadd.f32 %v1627, %v1700
      %v1714 = vadd.f32 %v1628, %v1702
      %v1715 = vadd.f32 %v1629, %v1705
      %v1716 = vadd.f32 %v1630, %v1707
      %s1717 = scalar_lea.vmem %s477, 224
      %v1718 = vld [vmem:[%s1717] sm:$0xf]
      %v1719 = vld [vmem:[%s1717 + $0x4] sm:$0xf]
      %v1720 = vld [vmem:[%s1717 + $0x8] sm:$0xf]
      %v1721 = vld [vmem:[%s1717 + $0xc] sm:$0xf]
      %v1722 = vld [vmem:[%s1717 + $0x10] sm:$0xf]
      %v1723 = vld [vmem:[%s1717 + $0x14] sm:$0xf]
      %v1724 = vld [vmem:[%s1717 + $0x18] sm:$0xf]
      %v1725 = vld [vmem:[%s1717 + $0x1c] sm:$0xf]
      %1726 = vrot.lane.b32.xlu0 %v1152, 121
      %v1727 = vpop.permute.xlu0 %1726
      %1728 = vrot.lane.b32.xlu0 %v1153, 121
      %v1729 = vpop.permute.xlu0 %1728
      %v1742 = vunpack.c.l.b16 %v1718
      %v1743 = vunpack.c.l.b16 %v1719
      %v1744 = vunpack.c.l.b16 %v1720
      %v1745 = vunpack.c.l.b16 %v1721
      %v1746 = vunpack.c.l.b16 %v1722
      %v1747 = vunpack.c.l.b16 %v1723
      %v1748 = vunpack.c.l.b16 %v1724
      %v1749 = vunpack.c.l.b16 %v1725
      %v1750 = vpack.c.b16 %v1743, %v1742
      %v1751 = vpack.c.b16 %v1745, %v1744
      %v1752 = vpack.c.b16 %v1747, %v1746
      %v1753 = vpack.c.b16 %v1749, %v1748
      %v1755 = vsel %vm1182, %v1750, 0
      %v1758 = vsel %vm1182, %v1751, 0
      %v1761 = vsel %vm1182, %v1752, 0
      %v1764 = vsel %vm1182, %v1753, 0
      %1766 = vmatpush.bf16.msra.mxu0 0
      %1767 = vmatpush.bf16.msra.mxu0 0
      %1768 = vmatpush.bf16.msra.mxu0 0
      %1769 = vmatpush.bf16.msra.mxu0 0
      %1770 = vmatpush.bf16.msra.mxu0 0
      %1771 = vmatpush.bf16.msra.mxu0 0
      %1772 = vmatpush.bf16.msra.mxu0 %v1729
      %1773 = vmatpush.bf16.msra.mxu0 %v1727
      %1774 = vmatmul.bf16.gmra.mxu0 %v1755
      %v1775 = vpop.f32.mrf.mxu0
      %v1776 = vadd.f32 0.0, %v1775
      %v1777 = vpop.f32.mrf.mxu0
      %v1778 = vadd.f32 0.0, %v1777
      %1779 = vmatmul.bf16.gmra.mxu0 %v1758
      %v1780 = vpop.f32.mrf.mxu0
      %v1781 = vadd.f32 0.0, %v1780
      %v1782 = vpop.f32.mrf.mxu0
      %v1783 = vadd.f32 0.0, %v1782
      %1784 = vmatmul.bf16.gmra.mxu0 %v1761
      %v1785 = vpop.f32.mrf.mxu0
      %v1786 = vadd.f32 0.0, %v1785
      %v1787 = vpop.f32.mrf.mxu0
      %v1788 = vadd.f32 0.0, %v1787
      %1789 = vmatmul.bf16.gmra.mxu0 %v1764
      %v1790 = vpop.f32.mrf.mxu0
      %v1791 = vadd.f32 0.0, %v1790
      %v1792 = vpop.f32.mrf.mxu0
      %v1793 = vadd.f32 0.0, %v1792
      %1794 = vdwg.mxu0
      %v1795 = vadd.f32 %v1709, %v1776
      %v1796 = vadd.f32 %v1710, %v1778
      %v1797 = vadd.f32 %v1711, %v1781
      %v1798 = vadd.f32 %v1712, %v1783
      %v1799 = vadd.f32 %v1713, %v1786
      %v1800 = vadd.f32 %v1714, %v1788
      %v1801 = vadd.f32 %v1715, %v1791
      %v1802 = vadd.f32 %v1716, %v1793
      %s1803 = scalar_lea.vmem %s477, 256
      %v1804 = vld [vmem:[%s1803] sm:$0xf]
      %v1805 = vld [vmem:[%s1803 + $0x4] sm:$0xf]
      %v1806 = vld [vmem:[%s1803 + $0x8] sm:$0xf]
      %v1807 = vld [vmem:[%s1803 + $0xc] sm:$0xf]
      %v1808 = vld [vmem:[%s1803 + $0x10] sm:$0xf]
      %v1809 = vld [vmem:[%s1803 + $0x14] sm:$0xf]
      %v1810 = vld [vmem:[%s1803 + $0x18] sm:$0xf]
      %v1811 = vld [vmem:[%s1803 + $0x1c] sm:$0xf]
      %1812 = vrot.lane.b32.xlu0 %v1152, 120
      %v1813 = vpop.permute.xlu0 %1812
      %1814 = vrot.lane.b32.xlu0 %v1153, 120
      %v1815 = vpop.permute.xlu0 %1814
      %v1828 = vunpack.c.l.b16 %v1804
      %v1829 = vunpack.c.l.b16 %v1805
      %v1830 = vunpack.c.l.b16 %v1806
      %v1831 = vunpack.c.l.b16 %v1807
      %v1832 = vunpack.c.l.b16 %v1808
      %v1833 = vunpack.c.l.b16 %v1809
      %v1834 = vunpack.c.l.b16 %v1810
      %v1835 = vunpack.c.l.b16 %v1811
      %v1836 = vpack.c.b16 %v1829, %v1828
      %v1837 = vpack.c.b16 %v1831, %v1830
      %v1838 = vpack.c.b16 %v1833, %v1832
      %v1839 = vpack.c.b16 %v1835, %v1834
      %v1841 = vsel %vm1182, %v1836, 0
      %v1844 = vsel %vm1182, %v1837, 0
      %v1847 = vsel %vm1182, %v1838, 0
      %v1850 = vsel %vm1182, %v1839, 0
      %1852 = vmatpush.bf16.msra.mxu0 0
      %1853 = vmatpush.bf16.msra.mxu0 0
      %1854 = vmatpush.bf16.msra.mxu0 0
      %1855 = vmatpush.bf16.msra.mxu0 0
      %1856 = vmatpush.bf16.msra.mxu0 0
      %1857 = vmatpush.bf16.msra.mxu0 0
      %1858 = vmatpush.bf16.msra.mxu0 %v1815
      %1859 = vmatpush.bf16.msra.mxu0 %v1813
      %1860 = vmatmul.bf16.gmra.mxu0 %v1841
      %v1861 = vpop.f32.mrf.mxu0
      %v1862 = vadd.f32 0.0, %v1861
      %v1863 = vpop.f32.mrf.mxu0
      %v1864 = vadd.f32 0.0, %v1863
      %1865 = vmatmul.bf16.gmra.mxu0 %v1844
      %v1866 = vpop.f32.mrf.mxu0
      %v1867 = vadd.f32 0.0, %v1866
      %v1868 = vpop.f32.mrf.mxu0
      %v1869 = vadd.f32 0.0, %v1868
      %1870 = vmatmul.bf16.gmra.mxu0 %v1847
      %v1871 = vpop.f32.mrf.mxu0
      %v1872 = vadd.f32 0.0, %v1871
      %v1873 = vpop.f32.mrf.mxu0
      %v1874 = vadd.f32 0.0, %v1873
      %1875 = vmatmul.bf16.gmra.mxu0 %v1850
      %v1876 = vpop.f32.mrf.mxu0
      %v1877 = vadd.f32 0.0, %v1876
      %v1878 = vpop.f32.mrf.mxu0
      %v1879 = vadd.f32 0.0, %v1878
      %1880 = vdwg.mxu0
      %v1881 = vadd.f32 %v1795, %v1862
      %v1882 = vadd.f32 %v1796, %v1864
      %v1883 = vadd.f32 %v1797, %v1867
      %v1884 = vadd.f32 %v1798, %v1869
      %v1885 = vadd.f32 %v1799, %v1872
      %v1886 = vadd.f32 %v1800, %v1874
      %v1887 = vadd.f32 %v1801, %v1877
      %v1888 = vadd.f32 %v1802, %v1879
      %s1889 = scalar_lea.vmem %s477, 288
      %v1890 = vld [vmem:[%s1889] sm:$0xf]
      %v1891 = vld [vmem:[%s1889 + $0x4] sm:$0xf]
      %v1892 = vld [vmem:[%s1889 + $0x8] sm:$0xf]
      %v1893 = vld [vmem:[%s1889 + $0xc] sm:$0xf]
      %v1894 = vld [vmem:[%s1889 + $0x10] sm:$0xf]
      %v1895 = vld [vmem:[%s1889 + $0x14] sm:$0xf]
      %v1896 = vld [vmem:[%s1889 + $0x18] sm:$0xf]
      %v1897 = vld [vmem:[%s1889 + $0x1c] sm:$0xf]
      %1898 = vrot.lane.b32.xlu0 %v1152, 119
      %v1899 = vpop.permute.xlu0 %1898
      %1900 = vrot.lane.b32.xlu0 %v1153, 119
      %v1901 = vpop.permute.xlu0 %1900
      %v1914 = vunpack.c.l.b16 %v1890
      %v1915 = vunpack.c.l.b16 %v1891
      %v1916 = vunpack.c.l.b16 %v1892
      %v1917 = vunpack.c.l.b16 %v1893
      %v1918 = vunpack.c.l.b16 %v1894
      %v1919 = vunpack.c.l.b16 %v1895
      %v1920 = vunpack.c.l.b16 %v1896
      %v1921 = vunpack.c.l.b16 %v1897
      %v1922 = vpack.c.b16 %v1915, %v1914
      %v1923 = vpack.c.b16 %v1917, %v1916
      %v1924 = vpack.c.b16 %v1919, %v1918
      %v1925 = vpack.c.b16 %v1921, %v1920
      %v1927 = vsel %vm1182, %v1922, 0
      %v1930 = vsel %vm1182, %v1923, 0
      %v1933 = vsel %vm1182, %v1924, 0
      %v1936 = vsel %vm1182, %v1925, 0
      %1938 = vmatpush.bf16.msra.mxu0 0
      %1939 = vmatpush.bf16.msra.mxu0 0
      %1940 = vmatpush.bf16.msra.mxu0 0
      %1941 = vmatpush.bf16.msra.mxu0 0
      %1942 = vmatpush.bf16.msra.mxu0 0
      %1943 = vmatpush.bf16.msra.mxu0 0
      %1944 = vmatpush.bf16.msra.mxu0 %v1901
      %1945 = vmatpush.bf16.msra.mxu0 %v1899
      %1946 = vmatmul.bf16.gmra.mxu0 %v1927
      %v1947 = vpop.f32.mrf.mxu0
      %v1948 = vadd.f32 0.0, %v1947
      %v1949 = vpop.f32.mrf.mxu0
      %v1950 = vadd.f32 0.0, %v1949
      %1951 = vmatmul.bf16.gmra.mxu0 %v1930
      %v1952 = vpop.f32.mrf.mxu0
      %v1953 = vadd.f32 0.0, %v1952
      %v1954 = vpop.f32.mrf.mxu0
      %v1955 = vadd.f32 0.0, %v1954
      %1956 = vmatmul.bf16.gmra.mxu0 %v1933
      %v1957 = vpop.f32.mrf.mxu0
      %v1958 = vadd.f32 0.0, %v1957
      %v1959 = vpop.f32.mrf.mxu0
      %v1960 = vadd.f32 0.0, %v1959
      %1961 = vmatmul.bf16.gmra.mxu0 %v1936
      %v1962 = vpop.f32.mrf.mxu0
      %v1963 = vadd.f32 0.0, %v1962
      %v1964 = vpop.f32.mrf.mxu0
      %v1965 = vadd.f32 0.0, %v1964
      %1966 = vdwg.mxu0
      %v1967 = vadd.f32 %v1881, %v1948
      %v1968 = vadd.f32 %v1882, %v1950
      %v1969 = vadd.f32 %v1883, %v1953
      %v1970 = vadd.f32 %v1884, %v1955
      %v1971 = vadd.f32 %v1885, %v1958
      %v1972 = vadd.f32 %v1886, %v1960
      %v1973 = vadd.f32 %v1887, %v1963
      %v1974 = vadd.f32 %v1888, %v1965
      %s1975 = scalar_lea.vmem %s477, 320
      %v1976 = vld [vmem:[%s1975] sm:$0xf]
      %v1977 = vld [vmem:[%s1975 + $0x4] sm:$0xf]
      %v1978 = vld [vmem:[%s1975 + $0x8] sm:$0xf]
      %v1979 = vld [vmem:[%s1975 + $0xc] sm:$0xf]
      %v1980 = vld [vmem:[%s1975 + $0x10] sm:$0xf]
      %v1981 = vld [vmem:[%s1975 + $0x14] sm:$0xf]
      %v1982 = vld [vmem:[%s1975 + $0x18] sm:$0xf]
      %v1983 = vld [vmem:[%s1975 + $0x1c] sm:$0xf]
      %1984 = vrot.lane.b32.xlu0 %v1152, 118
      %v1985 = vpop.permute.xlu0 %1984
      %1986 = vrot.lane.b32.xlu0 %v1153, 118
      %v1987 = vpop.permute.xlu0 %1986
      %v2000 = vunpack.c.l.b16 %v1976
      %v2001 = vunpack.c.l.b16 %v1977
      %v2002 = vunpack.c.l.b16 %v1978
      %v2003 = vunpack.c.l.b16 %v1979
      %v2004 = vunpack.c.l.b16 %v1980
      %v2005 = vunpack.c.l.b16 %v1981
      %v2006 = vunpack.c.l.b16 %v1982
      %v2007 = vunpack.c.l.b16 %v1983
      %v2008 = vpack.c.b16 %v2001, %v2000
      %v2009 = vpack.c.b16 %v2003, %v2002
      %v2010 = vpack.c.b16 %v2005, %v2004
      %v2011 = vpack.c.b16 %v2007, %v2006
      %v2013 = vsel %vm1182, %v2008, 0
      %v2016 = vsel %vm1182, %v2009, 0
      %v2019 = vsel %vm1182, %v2010, 0
      %v2022 = vsel %vm1182, %v2011, 0
      %2024 = vmatpush.bf16.msra.mxu0 0
      %2025 = vmatpush.bf16.msra.mxu0 0
      %2026 = vmatpush.bf16.msra.mxu0 0
      %2027 = vmatpush.bf16.msra.mxu0 0
      %2028 = vmatpush.bf16.msra.mxu0 0
      %2029 = vmatpush.bf16.msra.mxu0 0
      %2030 = vmatpush.bf16.msra.mxu0 %v1987
      %2031 = vmatpush.bf16.msra.mxu0 %v1985
      %2032 = vmatmul.bf16.gmra.mxu0 %v2013
      %v2033 = vpop.f32.mrf.mxu0
      %v2034 = vadd.f32 0.0, %v2033
      %v2035 = vpop.f32.mrf.mxu0
      %v2036 = vadd.f32 0.0, %v2035
      %2037 = vmatmul.bf16.gmra.mxu0 %v2016
      %v2038 = vpop.f32.mrf.mxu0
      %v2039 = vadd.f32 0.0, %v2038
      %v2040 = vpop.f32.mrf.mxu0
      %v2041 = vadd.f32 0.0, %v2040
      %2042 = vmatmul.bf16.gmra.mxu0 %v2019
      %v2043 = vpop.f32.mrf.mxu0
      %v2044 = vadd.f32 0.0, %v2043
      %v2045 = vpop.f32.mrf.mxu0
      %v2046 = vadd.f32 0.0, %v2045
      %2047 = vmatmul.bf16.gmra.mxu0 %v2022
      %v2048 = vpop.f32.mrf.mxu0
      %v2049 = vadd.f32 0.0, %v2048
      %v2050 = vpop.f32.mrf.mxu0
      %v2051 = vadd.f32 0.0, %v2050
      %2052 = vdwg.mxu0
      %v2053 = vadd.f32 %v1967, %v2034
      %v2054 = vadd.f32 %v1968, %v2036
      %v2055 = vadd.f32 %v1969, %v2039
      %v2056 = vadd.f32 %v1970, %v2041
      %v2057 = vadd.f32 %v1971, %v2044
      %v2058 = vadd.f32 %v1972, %v2046
      %v2059 = vadd.f32 %v1973, %v2049
      %v2060 = vadd.f32 %v1974, %v2051
      %s2061 = scalar_lea.vmem %s477, 352
      %v2062 = vld [vmem:[%s2061] sm:$0xf]
      %v2063 = vld [vmem:[%s2061 + $0x4] sm:$0xf]
      %v2064 = vld [vmem:[%s2061 + $0x8] sm:$0xf]
      %v2065 = vld [vmem:[%s2061 + $0xc] sm:$0xf]
      %v2066 = vld [vmem:[%s2061 + $0x10] sm:$0xf]
      %v2067 = vld [vmem:[%s2061 + $0x14] sm:$0xf]
      %v2068 = vld [vmem:[%s2061 + $0x18] sm:$0xf]
      %v2069 = vld [vmem:[%s2061 + $0x1c] sm:$0xf]
      %2070 = vrot.lane.b32.xlu0 %v1152, 117
      %v2071 = vpop.permute.xlu0 %2070
      %2072 = vrot.lane.b32.xlu0 %v1153, 117
      %v2073 = vpop.permute.xlu0 %2072
      %v2086 = vunpack.c.l.b16 %v2062
      %v2087 = vunpack.c.l.b16 %v2063
      %v2088 = vunpack.c.l.b16 %v2064
      %v2089 = vunpack.c.l.b16 %v2065
      %v2090 = vunpack.c.l.b16 %v2066
      %v2091 = vunpack.c.l.b16 %v2067
      %v2092 = vunpack.c.l.b16 %v2068
      %v2093 = vunpack.c.l.b16 %v2069
      %v2094 = vpack.c.b16 %v2087, %v2086
      %v2095 = vpack.c.b16 %v2089, %v2088
      %v2096 = vpack.c.b16 %v2091, %v2090
      %v2097 = vpack.c.b16 %v2093, %v2092
      %v2099 = vsel %vm1182, %v2094, 0
      %v2102 = vsel %vm1182, %v2095, 0
      %v2105 = vsel %vm1182, %v2096, 0
      %v2108 = vsel %vm1182, %v2097, 0
      %2110 = vmatpush.bf16.msra.mxu0 0
      %2111 = vmatpush.bf16.msra.mxu0 0
      %2112 = vmatpush.bf16.msra.mxu0 0
      %2113 = vmatpush.bf16.msra.mxu0 0
      %2114 = vmatpush.bf16.msra.mxu0 0
      %2115 = vmatpush.bf16.msra.mxu0 0
      %2116 = vmatpush.bf16.msra.mxu0 %v2073
      %2117 = vmatpush.bf16.msra.mxu0 %v2071
      %2118 = vmatmul.bf16.gmra.mxu0 %v2099
      %v2119 = vpop.f32.mrf.mxu0
      %v2120 = vadd.f32 0.0, %v2119
      %v2121 = vpop.f32.mrf.mxu0
      %v2122 = vadd.f32 0.0, %v2121
      %2123 = vmatmul.bf16.gmra.mxu0 %v2102
      %v2124 = vpop.f32.mrf.mxu0
      %v2125 = vadd.f32 0.0, %v2124
      %v2126 = vpop.f32.mrf.mxu0
      %v2127 = vadd.f32 0.0, %v2126
      %2128 = vmatmul.bf16.gmra.mxu0 %v2105
      %v2129 = vpop.f32.mrf.mxu0
      %v2130 = vadd.f32 0.0, %v2129
      %v2131 = vpop.f32.mrf.mxu0
      %v2132 = vadd.f32 0.0, %v2131
      %2133 = vmatmul.bf16.gmra.mxu0 %v2108
      %v2134 = vpop.f32.mrf.mxu0
      %v2135 = vadd.f32 0.0, %v2134
      %v2136 = vpop.f32.mrf.mxu0
      %v2137 = vadd.f32 0.0, %v2136
      %2138 = vdwg.mxu0
      %v2139 = vadd.f32 %v2053, %v2120
      %v2140 = vadd.f32 %v2054, %v2122
      %v2141 = vadd.f32 %v2055, %v2125
      %v2142 = vadd.f32 %v2056, %v2127
      %v2143 = vadd.f32 %v2057, %v2130
      %v2144 = vadd.f32 %v2058, %v2132
      %v2145 = vadd.f32 %v2059, %v2135
      %v2146 = vadd.f32 %v2060, %v2137
      %s2147 = scalar_lea.vmem %s477, 384
      %v2148 = vld [vmem:[%s2147] sm:$0xf]
      %v2149 = vld [vmem:[%s2147 + $0x4] sm:$0xf]
      %v2150 = vld [vmem:[%s2147 + $0x8] sm:$0xf]
      %v2151 = vld [vmem:[%s2147 + $0xc] sm:$0xf]
      %v2152 = vld [vmem:[%s2147 + $0x10] sm:$0xf]
      %v2153 = vld [vmem:[%s2147 + $0x14] sm:$0xf]
      %v2154 = vld [vmem:[%s2147 + $0x18] sm:$0xf]
      %v2155 = vld [vmem:[%s2147 + $0x1c] sm:$0xf]
      %2156 = vrot.lane.b32.xlu0 %v1152, 116
      %v2157 = vpop.permute.xlu0 %2156
      %2158 = vrot.lane.b32.xlu0 %v1153, 116
      %v2159 = vpop.permute.xlu0 %2158
      %v2172 = vunpack.c.l.b16 %v2148
      %v2173 = vunpack.c.l.b16 %v2149
      %v2174 = vunpack.c.l.b16 %v2150
      %v2175 = vunpack.c.l.b16 %v2151
      %v2176 = vunpack.c.l.b16 %v2152
      %v2177 = vunpack.c.l.b16 %v2153
      %v2178 = vunpack.c.l.b16 %v2154
      %v2179 = vunpack.c.l.b16 %v2155
      %v2180 = vpack.c.b16 %v2173, %v2172
      %v2181 = vpack.c.b16 %v2175, %v2174
      %v2182 = vpack.c.b16 %v2177, %v2176
      %v2183 = vpack.c.b16 %v2179, %v2178
      %v2185 = vsel %vm1182, %v2180, 0
      %v2188 = vsel %vm1182, %v2181, 0
      %v2191 = vsel %vm1182, %v2182, 0
      %v2194 = vsel %vm1182, %v2183, 0
      %2196 = vmatpush.bf16.msra.mxu0 0
      %2197 = vmatpush.bf16.msra.mxu0 0
      %2198 = vmatpush.bf16.msra.mxu0 0
      %2199 = vmatpush.bf16.msra.mxu0 0
      %2200 = vmatpush.bf16.msra.mxu0 0
      %2201 = vmatpush.bf16.msra.mxu0 0
      %2202 = vmatpush.bf16.msra.mxu0 %v2159
      %2203 = vmatpush.bf16.msra.mxu0 %v2157
      %2204 = vmatmul.bf16.gmra.mxu0 %v2185
      %v2205 = vpop.f32.mrf.mxu0
      %v2206 = vadd.f32 0.0, %v2205
      %v2207 = vpop.f32.mrf.mxu0
      %v2208 = vadd.f32 0.0, %v2207
      %2209 = vmatmul.bf16.gmra.mxu0 %v2188
      %v2210 = vpop.f32.mrf.mxu0
      %v2211 = vadd.f32 0.0, %v2210
      %v2212 = vpop.f32.mrf.mxu0
      %v2213 = vadd.f32 0.0, %v2212
      %2214 = vmatmul.bf16.gmra.mxu0 %v2191
      %v2215 = vpop.f32.mrf.mxu0
      %v2216 = vadd.f32 0.0, %v2215
      %v2217 = vpop.f32.mrf.mxu0
      %v2218 = vadd.f32 0.0, %v2217
      %2219 = vmatmul.bf16.gmra.mxu0 %v2194
      %v2220 = vpop.f32.mrf.mxu0
      %v2221 = vadd.f32 0.0, %v2220
      %v2222 = vpop.f32.mrf.mxu0
      %v2223 = vadd.f32 0.0, %v2222
      %2224 = vdwg.mxu0
      %v2225 = vadd.f32 %v2139, %v2206
      %v2226 = vadd.f32 %v2140, %v2208
      %v2227 = vadd.f32 %v2141, %v2211
      %v2228 = vadd.f32 %v2142, %v2213
      %v2229 = vadd.f32 %v2143, %v2216
      %v2230 = vadd.f32 %v2144, %v2218
      %v2231 = vadd.f32 %v2145, %v2221
      %v2232 = vadd.f32 %v2146, %v2223
      %s2233 = scalar_lea.vmem %s477, 416
      %v2234 = vld [vmem:[%s2233] sm:$0xf]
      %v2235 = vld [vmem:[%s2233 + $0x4] sm:$0xf]
      %v2236 = vld [vmem:[%s2233 + $0x8] sm:$0xf]
      %v2237 = vld [vmem:[%s2233 + $0xc] sm:$0xf]
      %v2238 = vld [vmem:[%s2233 + $0x10] sm:$0xf]
      %v2239 = vld [vmem:[%s2233 + $0x14] sm:$0xf]
      %v2240 = vld [vmem:[%s2233 + $0x18] sm:$0xf]
      %v2241 = vld [vmem:[%s2233 + $0x1c] sm:$0xf]
      %2242 = vrot.lane.b32.xlu0 %v1152, 115
      %v2243 = vpop.permute.xlu0 %2242
      %2244 = vrot.lane.b32.xlu0 %v1153, 115
      %v2245 = vpop.permute.xlu0 %2244
      %v2258 = vunpack.c.l.b16 %v2234
      %v2259 = vunpack.c.l.b16 %v2235
      %v2260 = vunpack.c.l.b16 %v2236
      %v2261 = vunpack.c.l.b16 %v2237
      %v2262 = vunpack.c.l.b16 %v2238
      %v2263 = vunpack.c.l.b16 %v2239
      %v2264 = vunpack.c.l.b16 %v2240
      %v2265 = vunpack.c.l.b16 %v2241
      %v2266 = vpack.c.b16 %v2259, %v2258
      %v2267 = vpack.c.b16 %v2261, %v2260
      %v2268 = vpack.c.b16 %v2263, %v2262
      %v2269 = vpack.c.b16 %v2265, %v2264
      %v2271 = vsel %vm1182, %v2266, 0
      %v2274 = vsel %vm1182, %v2267, 0
      %v2277 = vsel %vm1182, %v2268, 0
      %v2280 = vsel %vm1182, %v2269, 0
      %2282 = vmatpush.bf16.msra.mxu0 0
      %2283 = vmatpush.bf16.msra.mxu0 0
      %2284 = vmatpush.bf16.msra.mxu0 0
      %2285 = vmatpush.bf16.msra.mxu0 0
      %2286 = vmatpush.bf16.msra.mxu0 0
      %2287 = vmatpush.bf16.msra.mxu0 0
      %2288 = vmatpush.bf16.msra.mxu0 %v2245
      %2289 = vmatpush.bf16.msra.mxu0 %v2243
      %2290 = vmatmul.bf16.gmra.mxu0 %v2271
      %v2291 = vpop.f32.mrf.mxu0
      %v2292 = vadd.f32 0.0, %v2291
      %v2293 = vpop.f32.mrf.mxu0
      %v2294 = vadd.f32 0.0, %v2293
      %2295 = vmatmul.bf16.gmra.mxu0 %v2274
      %v2296 = vpop.f32.mrf.mxu0
      %v2297 = vadd.f32 0.0, %v2296
      %v2298 = vpop.f32.mrf.mxu0
      %v2299 = vadd.f32 0.0, %v2298
      %2300 = vmatmul.bf16.gmra.mxu0 %v2277
      %v2301 = vpop.f32.mrf.mxu0
      %v2302 = vadd.f32 0.0, %v2301
      %v2303 = vpop.f32.mrf.mxu0
      %v2304 = vadd.f32 0.0, %v2303
      %2305 = vmatmul.bf16.gmra.mxu0 %v2280
      %v2306 = vpop.f32.mrf.mxu0
      %v2307 = vadd.f32 0.0, %v2306
      %v2308 = vpop.f32.mrf.mxu0
      %v2309 = vadd.f32 0.0, %v2308
      %2310 = vdwg.mxu0
      %v2311 = vadd.f32 %v2225, %v2292
      %v2312 = vadd.f32 %v2226, %v2294
      %v2313 = vadd.f32 %v2227, %v2297
      %v2314 = vadd.f32 %v2228, %v2299
      %v2315 = vadd.f32 %v2229, %v2302
      %v2316 = vadd.f32 %v2230, %v2304
      %v2317 = vadd.f32 %v2231, %v2307
      %v2318 = vadd.f32 %v2232, %v2309
      %s2319 = scalar_lea.vmem %s477, 448
      %v2320 = vld [vmem:[%s2319] sm:$0xf]
      %v2321 = vld [vmem:[%s2319 + $0x4] sm:$0xf]
      %v2322 = vld [vmem:[%s2319 + $0x8] sm:$0xf]
      %v2323 = vld [vmem:[%s2319 + $0xc] sm:$0xf]
      %v2324 = vld [vmem:[%s2319 + $0x10] sm:$0xf]
      %v2325 = vld [vmem:[%s2319 + $0x14] sm:$0xf]
      %v2326 = vld [vmem:[%s2319 + $0x18] sm:$0xf]
      %v2327 = vld [vmem:[%s2319 + $0x1c] sm:$0xf]
      %2328 = vrot.lane.b32.xlu0 %v1152, 114
      %v2329 = vpop.permute.xlu0 %2328
      %2330 = vrot.lane.b32.xlu0 %v1153, 114
      %v2331 = vpop.permute.xlu0 %2330
      %v2344 = vunpack.c.l.b16 %v2320
      %v2345 = vunpack.c.l.b16 %v2321
      %v2346 = vunpack.c.l.b16 %v2322
      %v2347 = vunpack.c.l.b16 %v2323
      %v2348 = vunpack.c.l.b16 %v2324
      %v2349 = vunpack.c.l.b16 %v2325
      %v2350 = vunpack.c.l.b16 %v2326
      %v2351 = vunpack.c.l.b16 %v2327
      %v2352 = vpack.c.b16 %v2345, %v2344
      %v2353 = vpack.c.b16 %v2347, %v2346
      %v2354 = vpack.c.b16 %v2349, %v2348
      %v2355 = vpack.c.b16 %v2351, %v2350
      %v2357 = vsel %vm1182, %v2352, 0
      %v2360 = vsel %vm1182, %v2353, 0
      %v2363 = vsel %vm1182, %v2354, 0
      %v2366 = vsel %vm1182, %v2355, 0
      %2368 = vmatpush.bf16.msra.mxu0 0
      %2369 = vmatpush.bf16.msra.mxu0 0
      %2370 = vmatpush.bf16.msra.mxu0 0
      %2371 = vmatpush.bf16.msra.mxu0 0
      %2372 = vmatpush.bf16.msra.mxu0 0
      %2373 = vmatpush.bf16.msra.mxu0 0
      %2374 = vmatpush.bf16.msra.mxu0 %v2331
      %2375 = vmatpush.bf16.msra.mxu0 %v2329
      %2376 = vmatmul.bf16.gmra.mxu0 %v2357
      %v2377 = vpop.f32.mrf.mxu0
      %v2378 = vadd.f32 0.0, %v2377
      %v2379 = vpop.f32.mrf.mxu0
      %v2380 = vadd.f32 0.0, %v2379
      %2381 = vmatmul.bf16.gmra.mxu0 %v2360
      %v2382 = vpop.f32.mrf.mxu0
      %v2383 = vadd.f32 0.0, %v2382
      %v2384 = vpop.f32.mrf.mxu0
      %v2385 = vadd.f32 0.0, %v2384
      %2386 = vmatmul.bf16.gmra.mxu0 %v2363
      %v2387 = vpop.f32.mrf.mxu0
      %v2388 = vadd.f32 0.0, %v2387
      %v2389 = vpop.f32.mrf.mxu0
      %v2390 = vadd.f32 0.0, %v2389
      %2391 = vmatmul.bf16.gmra.mxu0 %v2366
      %v2392 = vpop.f32.mrf.mxu0
      %v2393 = vadd.f32 0.0, %v2392
      %v2394 = vpop.f32.mrf.mxu0
      %v2395 = vadd.f32 0.0, %v2394
      %2396 = vdwg.mxu0
      %v2397 = vadd.f32 %v2311, %v2378
      %v2398 = vadd.f32 %v2312, %v2380
      %v2399 = vadd.f32 %v2313, %v2383
      %v2400 = vadd.f32 %v2314, %v2385
      %v2401 = vadd.f32 %v2315, %v2388
      %v2402 = vadd.f32 %v2316, %v2390
      %v2403 = vadd.f32 %v2317, %v2393
      %v2404 = vadd.f32 %v2318, %v2395
      %s2405 = scalar_lea.vmem %s477, 480
      %v2406 = vld [vmem:[%s2405] sm:$0xf]
      %v2407 = vld [vmem:[%s2405 + $0x4] sm:$0xf]
      %v2408 = vld [vmem:[%s2405 + $0x8] sm:$0xf]
      %v2409 = vld [vmem:[%s2405 + $0xc] sm:$0xf]
      %v2410 = vld [vmem:[%s2405 + $0x10] sm:$0xf]
      %v2411 = vld [vmem:[%s2405 + $0x14] sm:$0xf]
      %v2412 = vld [vmem:[%s2405 + $0x18] sm:$0xf]
      %v2413 = vld [vmem:[%s2405 + $0x1c] sm:$0xf]
      %2414 = vrot.lane.b32.xlu0 %v1152, 113
      %v2415 = vpop.permute.xlu0 %2414
      %2416 = vrot.lane.b32.xlu0 %v1153, 113
      %v2417 = vpop.permute.xlu0 %2416
      %v2430 = vunpack.c.l.b16 %v2406
      %v2431 = vunpack.c.l.b16 %v2407
      %v2432 = vunpack.c.l.b16 %v2408
      %v2433 = vunpack.c.l.b16 %v2409
      %v2434 = vunpack.c.l.b16 %v2410
      %v2435 = vunpack.c.l.b16 %v2411
      %v2436 = vunpack.c.l.b16 %v2412
      %v2437 = vunpack.c.l.b16 %v2413
      %v2438 = vpack.c.b16 %v2431, %v2430
      %v2439 = vpack.c.b16 %v2433, %v2432
      %v2440 = vpack.c.b16 %v2435, %v2434
      %v2441 = vpack.c.b16 %v2437, %v2436
      %v2443 = vsel %vm1182, %v2438, 0
      %v2446 = vsel %vm1182, %v2439, 0
      %v2449 = vsel %vm1182, %v2440, 0
      %v2452 = vsel %vm1182, %v2441, 0
      %2454 = vmatpush.bf16.msra.mxu0 0
      %2455 = vmatpush.bf16.msra.mxu0 0
      %2456 = vmatpush.bf16.msra.mxu0 0
      %2457 = vmatpush.bf16.msra.mxu0 0
      %2458 = vmatpush.bf16.msra.mxu0 0
      %2459 = vmatpush.bf16.msra.mxu0 0
      %2460 = vmatpush.bf16.msra.mxu0 %v2417
      %2461 = vmatpush.bf16.msra.mxu0 %v2415
      %2462 = vmatmul.bf16.gmra.mxu0 %v2443
      %v2463 = vpop.f32.mrf.mxu0
      %v2464 = vadd.f32 0.0, %v2463
      %v2465 = vpop.f32.mrf.mxu0
      %v2466 = vadd.f32 0.0, %v2465
      %2467 = vmatmul.bf16.gmra.mxu0 %v2446
      %v2468 = vpop.f32.mrf.mxu0
      %v2469 = vadd.f32 0.0, %v2468
      %v2470 = vpop.f32.mrf.mxu0
      %v2471 = vadd.f32 0.0, %v2470
      %2472 = vmatmul.bf16.gmra.mxu0 %v2449
      %v2473 = vpop.f32.mrf.mxu0
      %v2474 = vadd.f32 0.0, %v2473
      %v2475 = vpop.f32.mrf.mxu0
      %v2476 = vadd.f32 0.0, %v2475
      %2477 = vmatmul.bf16.gmra.mxu0 %v2452
      %v2478 = vpop.f32.mrf.mxu0
      %v2479 = vadd.f32 0.0, %v2478
      %v2480 = vpop.f32.mrf.mxu0
      %v2481 = vadd.f32 0.0, %v2480
      %2482 = vdwg.mxu0
      %v2483 = vadd.f32 %v2397, %v2464
      %v2484 = vadd.f32 %v2398, %v2466
      %v2485 = vadd.f32 %v2399, %v2469
      %v2486 = vadd.f32 %v2400, %v2471
      %v2487 = vadd.f32 %v2401, %v2474
      %v2488 = vadd.f32 %v2402, %v2476
      %v2489 = vadd.f32 %v2403, %v2479
      %v2490 = vadd.f32 %v2404, %v2481
      %s2491 = scalar_lea.vmem %s477, 512
      %v2492 = vld [vmem:[%s2491] sm:$0xf]
      %v2493 = vld [vmem:[%s2491 + $0x4] sm:$0xf]
      %v2494 = vld [vmem:[%s2491 + $0x8] sm:$0xf]
      %v2495 = vld [vmem:[%s2491 + $0xc] sm:$0xf]
      %v2496 = vld [vmem:[%s2491 + $0x10] sm:$0xf]
      %v2497 = vld [vmem:[%s2491 + $0x14] sm:$0xf]
      %v2498 = vld [vmem:[%s2491 + $0x18] sm:$0xf]
      %v2499 = vld [vmem:[%s2491 + $0x1c] sm:$0xf]
      %2500 = vrot.lane.b32.xlu0 %v1152, 112
      %v2501 = vpop.permute.xlu0 %2500
      %2502 = vrot.lane.b32.xlu0 %v1153, 112
      %v2503 = vpop.permute.xlu0 %2502
      %v2516 = vunpack.c.l.b16 %v2492
      %v2517 = vunpack.c.l.b16 %v2493
      %v2518 = vunpack.c.l.b16 %v2494
      %v2519 = vunpack.c.l.b16 %v2495
      %v2520 = vunpack.c.l.b16 %v2496
      %v2521 = vunpack.c.l.b16 %v2497
      %v2522 = vunpack.c.l.b16 %v2498
      %v2523 = vunpack.c.l.b16 %v2499
      %v2524 = vpack.c.b16 %v2517, %v2516
      %v2525 = vpack.c.b16 %v2519, %v2518
      %v2526 = vpack.c.b16 %v2521, %v2520
      %v2527 = vpack.c.b16 %v2523, %v2522
      %v2529 = vsel %vm1182, %v2524, 0
      %v2532 = vsel %vm1182, %v2525, 0
      %v2535 = vsel %vm1182, %v2526, 0
      %v2538 = vsel %vm1182, %v2527, 0
      %2540 = vmatpush.bf16.msra.mxu0 0
      %2541 = vmatpush.bf16.msra.mxu0 0
      %2542 = vmatpush.bf16.msra.mxu0 0
      %2543 = vmatpush.bf16.msra.mxu0 0
      %2544 = vmatpush.bf16.msra.mxu0 0
      %2545 = vmatpush.bf16.msra.mxu0 0
      %2546 = vmatpush.bf16.msra.mxu0 %v2503
      %2547 = vmatpush.bf16.msra.mxu0 %v2501
      %2548 = vmatmul.bf16.gmra.mxu0 %v2529
      %v2549 = vpop.f32.mrf.mxu0
      %v2550 = vadd.f32 0.0, %v2549
      %v2551 = vpop.f32.mrf.mxu0
      %v2552 = vadd.f32 0.0, %v2551
      %2553 = vmatmul.bf16.gmra.mxu0 %v2532
      %v2554 = vpop.f32.mrf.mxu0
      %v2555 = vadd.f32 0.0, %v2554
      %v2556 = vpop.f32.mrf.mxu0
      %v2557 = vadd.f32 0.0, %v2556
      %2558 = vmatmul.bf16.gmra.mxu0 %v2535
      %v2559 = vpop.f32.mrf.mxu0
      %v2560 = vadd.f32 0.0, %v2559
      %v2561 = vpop.f32.mrf.mxu0
      %v2562 = vadd.f32 0.0, %v2561
      %2563 = vmatmul.bf16.gmra.mxu0 %v2538
      %v2564 = vpop.f32.mrf.mxu0
      %v2565 = vadd.f32 0.0, %v2564
      %v2566 = vpop.f32.mrf.mxu0
      %v2567 = vadd.f32 0.0, %v2566
      %2568 = vdwg.mxu0
      %v2569 = vadd.f32 %v2483, %v2550
      %v2570 = vadd.f32 %v2484, %v2552
      %v2571 = vadd.f32 %v2485, %v2555
      %v2572 = vadd.f32 %v2486, %v2557
      %v2573 = vadd.f32 %v2487, %v2560
      %v2574 = vadd.f32 %v2488, %v2562
      %v2575 = vadd.f32 %v2489, %v2565
      %v2576 = vadd.f32 %v2490, %v2567
      %s2577 = scalar_lea.vmem %s477, 544
      %v2578 = vld [vmem:[%s2577] sm:$0xf]
      %v2579 = vld [vmem:[%s2577 + $0x4] sm:$0xf]
      %v2580 = vld [vmem:[%s2577 + $0x8] sm:$0xf]
      %v2581 = vld [vmem:[%s2577 + $0xc] sm:$0xf]
      %v2582 = vld [vmem:[%s2577 + $0x10] sm:$0xf]
      %v2583 = vld [vmem:[%s2577 + $0x14] sm:$0xf]
      %v2584 = vld [vmem:[%s2577 + $0x18] sm:$0xf]
      %v2585 = vld [vmem:[%s2577 + $0x1c] sm:$0xf]
      %2586 = vrot.lane.b32.xlu0 %v1152, 111
      %v2587 = vpop.permute.xlu0 %2586
      %2588 = vrot.lane.b32.xlu0 %v1153, 111
      %v2589 = vpop.permute.xlu0 %2588
      %v2602 = vunpack.c.l.b16 %v2578
      %v2603 = vunpack.c.l.b16 %v2579
      %v2604 = vunpack.c.l.b16 %v2580
      %v2605 = vunpack.c.l.b16 %v2581
      %v2606 = vunpack.c.l.b16 %v2582
      %v2607 = vunpack.c.l.b16 %v2583
      %v2608 = vunpack.c.l.b16 %v2584
      %v2609 = vunpack.c.l.b16 %v2585
      %v2610 = vpack.c.b16 %v2603, %v2602
      %v2611 = vpack.c.b16 %v2605, %v2604
      %v2612 = vpack.c.b16 %v2607, %v2606
      %v2613 = vpack.c.b16 %v2609, %v2608
      %v2615 = vsel %vm1182, %v2610, 0
      %v2618 = vsel %vm1182, %v2611, 0
      %v2621 = vsel %vm1182, %v2612, 0
      %v2624 = vsel %vm1182, %v2613, 0
      %2626 = vmatpush.bf16.msra.mxu0 0
      %2627 = vmatpush.bf16.msra.mxu0 0
      %2628 = vmatpush.bf16.msra.mxu0 0
      %2629 = vmatpush.bf16.msra.mxu0 0
      %2630 = vmatpush.bf16.msra.mxu0 0
      %2631 = vmatpush.bf16.msra.mxu0 0
      %2632 = vmatpush.bf16.msra.mxu0 %v2589
      %2633 = vmatpush.bf16.msra.mxu0 %v2587
      %2634 = vmatmul.bf16.gmra.mxu0 %v2615
      %v2635 = vpop.f32.mrf.mxu0
      %v2636 = vadd.f32 0.0, %v2635
      %v2637 = vpop.f32.mrf.mxu0
      %v2638 = vadd.f32 0.0, %v2637
      %2639 = vmatmul.bf16.gmra.mxu0 %v2618
      %v2640 = vpop.f32.mrf.mxu0
      %v2641 = vadd.f32 0.0, %v2640
      %v2642 = vpop.f32.mrf.mxu0
      %v2643 = vadd.f32 0.0, %v2642
      %2644 = vmatmul.bf16.gmra.mxu0 %v2621
      %v2645 = vpop.f32.mrf.mxu0
      %v2646 = vadd.f32 0.0, %v2645
      %v2647 = vpop.f32.mrf.mxu0
      %v2648 = vadd.f32 0.0, %v2647
      %2649 = vmatmul.bf16.gmra.mxu0 %v2624
      %v2650 = vpop.f32.mrf.mxu0
      %v2651 = vadd.f32 0.0, %v2650
      %v2652 = vpop.f32.mrf.mxu0
      %v2653 = vadd.f32 0.0, %v2652
      %2654 = vdwg.mxu0
      %v2655 = vadd.f32 %v2569, %v2636
      %v2656 = vadd.f32 %v2570, %v2638
      %v2657 = vadd.f32 %v2571, %v2641
      %v2658 = vadd.f32 %v2572, %v2643
      %v2659 = vadd.f32 %v2573, %v2646
      %v2660 = vadd.f32 %v2574, %v2648
      %v2661 = vadd.f32 %v2575, %v2651
      %v2662 = vadd.f32 %v2576, %v2653
      %s2663 = scalar_lea.vmem %s477, 576
      %v2664 = vld [vmem:[%s2663] sm:$0xf]
      %v2665 = vld [vmem:[%s2663 + $0x4] sm:$0xf]
      %v2666 = vld [vmem:[%s2663 + $0x8] sm:$0xf]
      %v2667 = vld [vmem:[%s2663 + $0xc] sm:$0xf]
      %v2668 = vld [vmem:[%s2663 + $0x10] sm:$0xf]
      %v2669 = vld [vmem:[%s2663 + $0x14] sm:$0xf]
      %v2670 = vld [vmem:[%s2663 + $0x18] sm:$0xf]
      %v2671 = vld [vmem:[%s2663 + $0x1c] sm:$0xf]
      %2672 = vrot.lane.b32.xlu0 %v1152, 110
      %v2673 = vpop.permute.xlu0 %2672
      %2674 = vrot.lane.b32.xlu0 %v1153, 110
      %v2675 = vpop.permute.xlu0 %2674
      %v2688 = vunpack.c.l.b16 %v2664
      %v2689 = vunpack.c.l.b16 %v2665
      %v2690 = vunpack.c.l.b16 %v2666
      %v2691 = vunpack.c.l.b16 %v2667
      %v2692 = vunpack.c.l.b16 %v2668
      %v2693 = vunpack.c.l.b16 %v2669
      %v2694 = vunpack.c.l.b16 %v2670
      %v2695 = vunpack.c.l.b16 %v2671
      %v2696 = vpack.c.b16 %v2689, %v2688
      %v2697 = vpack.c.b16 %v2691, %v2690
      %v2698 = vpack.c.b16 %v2693, %v2692
      %v2699 = vpack.c.b16 %v2695, %v2694
      %v2701 = vsel %vm1182, %v2696, 0
      %v2704 = vsel %vm1182, %v2697, 0
      %v2707 = vsel %vm1182, %v2698, 0
      %v2710 = vsel %vm1182, %v2699, 0
      %2712 = vmatpush.bf16.msra.mxu0 0
      %2713 = vmatpush.bf16.msra.mxu0 0
      %2714 = vmatpush.bf16.msra.mxu0 0
      %2715 = vmatpush.bf16.msra.mxu0 0
      %2716 = vmatpush.bf16.msra.mxu0 0
      %2717 = vmatpush.bf16.msra.mxu0 0
      %2718 = vmatpush.bf16.msra.mxu0 %v2675
      %2719 = vmatpush.bf16.msra.mxu0 %v2673
      %2720 = vmatmul.bf16.gmra.mxu0 %v2701
      %v2721 = vpop.f32.mrf.mxu0
      %v2722 = vadd.f32 0.0, %v2721
      %v2723 = vpop.f32.mrf.mxu0
      %v2724 = vadd.f32 0.0, %v2723
      %2725 = vmatmul.bf16.gmra.mxu0 %v2704
      %v2726 = vpop.f32.mrf.mxu0
      %v2727 = vadd.f32 0.0, %v2726
      %v2728 = vpop.f32.mrf.mxu0
      %v2729 = vadd.f32 0.0, %v2728
      %2730 = vmatmul.bf16.gmra.mxu0 %v2707
      %v2731 = vpop.f32.mrf.mxu0
      %v2732 = vadd.f32 0.0, %v2731
      %v2733 = vpop.f32.mrf.mxu0
      %v2734 = vadd.f32 0.0, %v2733
      %2735 = vmatmul.bf16.gmra.mxu0 %v2710
      %v2736 = vpop.f32.mrf.mxu0
      %v2737 = vadd.f32 0.0, %v2736
      %v2738 = vpop.f32.mrf.mxu0
      %v2739 = vadd.f32 0.0, %v2738
      %2740 = vdwg.mxu0
      %v2741 = vadd.f32 %v2655, %v2722
      %v2742 = vadd.f32 %v2656, %v2724
      %v2743 = vadd.f32 %v2657, %v2727
      %v2744 = vadd.f32 %v2658, %v2729
      %v2745 = vadd.f32 %v2659, %v2732
      %v2746 = vadd.f32 %v2660, %v2734
      %v2747 = vadd.f32 %v2661, %v2737
      %v2748 = vadd.f32 %v2662, %v2739
      %s2749 = scalar_lea.vmem %s477, 608
      %v2750 = vld [vmem:[%s2749] sm:$0xf]
      %v2751 = vld [vmem:[%s2749 + $0x4] sm:$0xf]
      %v2752 = vld [vmem:[%s2749 + $0x8] sm:$0xf]
      %v2753 = vld [vmem:[%s2749 + $0xc] sm:$0xf]
      %v2754 = vld [vmem:[%s2749 + $0x10] sm:$0xf]
      %v2755 = vld [vmem:[%s2749 + $0x14] sm:$0xf]
      %v2756 = vld [vmem:[%s2749 + $0x18] sm:$0xf]
      %v2757 = vld [vmem:[%s2749 + $0x1c] sm:$0xf]
      %2758 = vrot.lane.b32.xlu0 %v1152, 109
      %v2759 = vpop.permute.xlu0 %2758
      %2760 = vrot.lane.b32.xlu0 %v1153, 109
      %v2761 = vpop.permute.xlu0 %2760
      %v2774 = vunpack.c.l.b16 %v2750
      %v2775 = vunpack.c.l.b16 %v2751
      %v2776 = vunpack.c.l.b16 %v2752
      %v2777 = vunpack.c.l.b16 %v2753
      %v2778 = vunpack.c.l.b16 %v2754
      %v2779 = vunpack.c.l.b16 %v2755
      %v2780 = vunpack.c.l.b16 %v2756
      %v2781 = vunpack.c.l.b16 %v2757
      %v2782 = vpack.c.b16 %v2775, %v2774
      %v2783 = vpack.c.b16 %v2777, %v2776
      %v2784 = vpack.c.b16 %v2779, %v2778
      %v2785 = vpack.c.b16 %v2781, %v2780
      %v2787 = vsel %vm1182, %v2782, 0
      %v2790 = vsel %vm1182, %v2783, 0
      %v2793 = vsel %vm1182, %v2784, 0
      %v2796 = vsel %vm1182, %v2785, 0
      %2798 = vmatpush.bf16.msra.mxu0 0
      %2799 = vmatpush.bf16.msra.mxu0 0
      %2800 = vmatpush.bf16.msra.mxu0 0
      %2801 = vmatpush.bf16.msra.mxu0 0
      %2802 = vmatpush.bf16.msra.mxu0 0
      %2803 = vmatpush.bf16.msra.mxu0 0
      %2804 = vmatpush.bf16.msra.mxu0 %v2761
      %2805 = vmatpush.bf16.msra.mxu0 %v2759
      %2806 = vmatmul.bf16.gmra.mxu0 %v2787
      %v2807 = vpop.f32.mrf.mxu0
      %v2808 = vadd.f32 0.0, %v2807
      %v2809 = vpop.f32.mrf.mxu0
      %v2810 = vadd.f32 0.0, %v2809
      %2811 = vmatmul.bf16.gmra.mxu0 %v2790
      %v2812 = vpop.f32.mrf.mxu0
      %v2813 = vadd.f32 0.0, %v2812
      %v2814 = vpop.f32.mrf.mxu0
      %v2815 = vadd.f32 0.0, %v2814
      %2816 = vmatmul.bf16.gmra.mxu0 %v2793
      %v2817 = vpop.f32.mrf.mxu0
      %v2818 = vadd.f32 0.0, %v2817
      %v2819 = vpop.f32.mrf.mxu0
      %v2820 = vadd.f32 0.0, %v2819
      %2821 = vmatmul.bf16.gmra.mxu0 %v2796
      %v2822 = vpop.f32.mrf.mxu0
      %v2823 = vadd.f32 0.0, %v2822
      %v2824 = vpop.f32.mrf.mxu0
      %v2825 = vadd.f32 0.0, %v2824
      %2826 = vdwg.mxu0
      %v2827 = vadd.f32 %v2741, %v2808
      %v2828 = vadd.f32 %v2742, %v2810
      %v2829 = vadd.f32 %v2743, %v2813
      %v2830 = vadd.f32 %v2744, %v2815
      %v2831 = vadd.f32 %v2745, %v2818
      %v2832 = vadd.f32 %v2746, %v2820
      %v2833 = vadd.f32 %v2747, %v2823
      %v2834 = vadd.f32 %v2748, %v2825
      %2836 = vset.pattern.permute.xlu0 0
      %2837 = vperm.xlu0 %2836, %v515
      %v2838 = vpop.permute.xlu0 %2837
      %2841 = vset.pattern.permute.xlu0 0
      %2842 = vperm.xlu0 %2841, %v516
      %v2843 = vpop.permute.xlu0 %2842
      %2846 = vset.pattern.permute.xlu0 0
      %2847 = vperm.xlu0 %2846, %v517
      %v2848 = vpop.permute.xlu0 %2847
      %2851 = vset.pattern.permute.xlu0 0
      %2852 = vperm.xlu0 %2851, %v518
      %v2853 = vpop.permute.xlu0 %2852
      %2856 = vset.pattern.permute.xlu0 0
      %2857 = vperm.xlu0 %2856, %v519
      %v2858 = vpop.permute.xlu0 %2857
      %2861 = vset.pattern.permute.xlu0 0
      %2862 = vperm.xlu0 %2861, %v520
      %v2863 = vpop.permute.xlu0 %2862
      %2866 = vset.pattern.permute.xlu0 0
      %2867 = vperm.xlu0 %2866, %v521
      %v2868 = vpop.permute.xlu0 %2867
      %2871 = vset.pattern.permute.xlu0 0
      %2872 = vperm.xlu0 %2871, %v522
      %v2873 = vpop.permute.xlu0 %2872
      %v2875 = vadd.f32 %v2827, %v2838
      %v2876 = vadd.f32 %v2828, %v2843
      %v2877 = vadd.f32 %v2829, %v2848
      %v2878 = vadd.f32 %v2830, %v2853
      %v2879 = vadd.f32 %v2831, %v2858
      %v2880 = vadd.f32 %v2832, %v2863
      %v2881 = vadd.f32 %v2833, %v2868
      %v2882 = vadd.f32 %v2834, %v2873
      %v2883 = vmax.f32 %v2875, 0.0
      %v2884 = vmax.f32 %v2876, 0.0
      %v2885 = vmax.f32 %v2877, 0.0
      %v2886 = vmax.f32 %v2878, 0.0
      %v2887 = vmax.f32 %v2879, 0.0
      %v2888 = vmax.f32 %v2880, 0.0
      %v2889 = vmax.f32 %v2881, 0.0
      %v2890 = vmax.f32 %v2882, 0.0
      %v2891 = vperm.slane %v506, 0
      %v2892 = vmul.f32 %v2883, %v2891
      %v2893 = vmul.f32 %v2884, %v2891
      %v2894 = vmul.f32 %v2885, %v2891
      %v2895 = vmul.f32 %v2886, %v2891
      %v2896 = vmul.f32 %v2887, %v2891
      %v2897 = vmul.f32 %v2888, %v2891
      %v2898 = vmul.f32 %v2889, %v2891
      %v2899 = vmul.f32 %v2890, %v2891
      %v2900 = vpack.c.bf16 %v2892, %v2892
      %v2901 = vpack.c.bf16 %v2893, %v2893
      %v2902 = vpack.c.bf16 %v2894, %v2894
      %v2903 = vpack.c.bf16 %v2895, %v2895
      %v2904 = vpack.c.bf16 %v2896, %v2896
      %v2905 = vpack.c.bf16 %v2897, %v2897
      %v2906 = vpack.c.bf16 %v2898, %v2898
      %v2907 = vpack.c.bf16 %v2899, %v2899
      %v2908 = vld [vmem:[%s487] sm:$0xf]
      %v2909 = vld [vmem:[%s487 + $0x4] sm:$0xf]
      %v2910 = vld [vmem:[%s487 + $0x8] sm:$0xf]
      %v2911 = vld [vmem:[%s487 + $0xc] sm:$0xf]
      %s2912 = scalar_lea.vmem %s487, 16
      %v2913 = vld [vmem:[%s2912] sm:$0xf]
      %v2914 = vld [vmem:[%s2912 + $0x4] sm:$0xf]
      %v2915 = vld [vmem:[%s2912 + $0x8] sm:$0xf]
      %v2916 = vld [vmem:[%s2912 + $0xc] sm:$0xf]
      %v2925 = vunpack.c.l.b16 %v2900
      %v2926 = vunpack.c.l.b16 %v2901
      %v2927 = vunpack.c.l.b16 %v2902
      %v2928 = vunpack.c.l.b16 %v2903
      %v2929 = vunpack.c.l.b16 %v2904
      %v2930 = vunpack.c.l.b16 %v2905
      %v2931 = vunpack.c.l.b16 %v2906
      %v2932 = vunpack.c.l.b16 %v2907
      %v2933 = vpack.c.b16 %v2926, %v2925
      %v2934 = vpack.c.b16 %v2928, %v2927
      %v2935 = vpack.c.b16 %v2930, %v2929
      %v2936 = vpack.c.b16 %v2932, %v2931
      %2937 = vrot.lane.b32.xlu0 %v2933, 1
      %v2938 = vpop.permute.xlu0 %2937
      %2939 = vrot.lane.b32.xlu0 %v2934, 1
      %v2940 = vpop.permute.xlu0 %2939
      %2941 = vrot.lane.b32.xlu0 %v2935, 1
      %v2942 = vpop.permute.xlu0 %2941
      %2943 = vrot.lane.b32.xlu0 %v2936, 1
      %v2944 = vpop.permute.xlu0 %2943
      %v2957 = vunpack.c.l.b16 %v2913
      %v2958 = vunpack.c.l.b16 %v2914
      %v2959 = vunpack.c.l.b16 %v2915
      %v2960 = vunpack.c.l.b16 %v2916
      %v2961 = vpack.c.b16 %v2958, %v2957
      %v2962 = vpack.c.b16 %v2960, %v2959
      %vm2963 = vcmask 523264
      %v2965 = vsel %vm2963, %v2961, 0
      %v2968 = vsel %vm2963, %v2962, 0
      %2970 = vmatpush.bf16.msra.mxu0 0
      %2971 = vmatpush.bf16.msra.mxu0 0
      %2972 = vmatpush.bf16.msra.mxu0 0
      %2973 = vmatpush.bf16.msra.mxu0 0
      %2974 = vmatpush.bf16.msra.mxu0 %v2944
      %2975 = vmatpush.bf16.msra.mxu0 %v2942
      %2976 = vmatpush.bf16.msra.mxu0 %v2940
      %2977 = vmatpush.bf16.msra.mxu0 %v2938
      %2978 = vmatmul.bf16.gmra.mxu0 %v2965
      %v2979 = vpop.f32.mrf.mxu0
      %v2980 = vadd.f32 0.0, %v2979
      %v2981 = vpop.f32.mrf.mxu0
      %v2982 = vadd.f32 0.0, %v2981
      %2983 = vmatmul.bf16.gmra.mxu0 %v2968
      %v2984 = vpop.f32.mrf.mxu0
      %v2985 = vadd.f32 0.0, %v2984
      %v2986 = vpop.f32.mrf.mxu0
      %v2987 = vadd.f32 0.0, %v2986
      %2988 = vdwg.mxu0
      %v2993 = vunpack.c.l.b16 %v2908
      %v2994 = vunpack.c.l.b16 %v2909
      %v2995 = vunpack.c.l.b16 %v2910
      %v2996 = vunpack.c.l.b16 %v2911
      %v2997 = vpack.c.b16 %v2994, %v2993
      %v2998 = vpack.c.b16 %v2996, %v2995
      %v3004 = vsel %vm2963, %v2997, 0
      %v3007 = vsel %vm2963, %v2998, 0
      %3009 = vmatpush.bf16.msra.mxu0 0
      %3010 = vmatpush.bf16.msra.mxu0 0
      %3011 = vmatpush.bf16.msra.mxu0 0
      %3012 = vmatpush.bf16.msra.mxu0 0
      %3013 = vmatpush.bf16.msra.mxu0 %v2936
      %3014 = vmatpush.bf16.msra.mxu0 %v2935
      %3015 = vmatpush.bf16.msra.mxu0 %v2934
      %3016 = vmatpush.bf16.msra.mxu0 %v2933
      %3017 = vmatmul.bf16.gmra.mxu0 %v3004
      %v3018 = vpop.f32.mrf.mxu0
      %v3019 = vadd.f32 %v2980, %v3018
      %v3020 = vpop.f32.mrf.mxu0
      %v3021 = vadd.f32 %v2982, %v3020
      %3022 = vmatmul.bf16.gmra.mxu0 %v3007
      %v3023 = vpop.f32.mrf.mxu0
      %v3024 = vadd.f32 %v2985, %v3023
      %v3025 = vpop.f32.mrf.mxu0
      %v3026 = vadd.f32 %v2987, %v3025
      %3027 = vdwg.mxu0
      %s3028 = scalar_lea.vmem %s487, 32
      %v3029 = vld [vmem:[%s3028] sm:$0xf]
      %v3030 = vld [vmem:[%s3028 + $0x4] sm:$0xf]
      %v3031 = vld [vmem:[%s3028 + $0x8] sm:$0xf]
      %v3032 = vld [vmem:[%s3028 + $0xc] sm:$0xf]
      %3033 = vrot.lane.b32.xlu0 %v2933, 2
      %v3034 = vpop.permute.xlu0 %3033
      %3035 = vrot.lane.b32.xlu0 %v2934, 2
      %v3036 = vpop.permute.xlu0 %3035
      %3037 = vrot.lane.b32.xlu0 %v2935, 2
      %v3038 = vpop.permute.xlu0 %3037
      %3039 = vrot.lane.b32.xlu0 %v2936, 2
      %v3040 = vpop.permute.xlu0 %3039
      %v3053 = vunpack.c.l.b16 %v3029
      %v3054 = vunpack.c.l.b16 %v3030
      %v3055 = vunpack.c.l.b16 %v3031
      %v3056 = vunpack.c.l.b16 %v3032
      %v3057 = vpack.c.b16 %v3054, %v3053
      %v3058 = vpack.c.b16 %v3056, %v3055
      %v3060 = vsel %vm2963, %v3057, 0
      %v3063 = vsel %vm2963, %v3058, 0
      %3065 = vmatpush.bf16.msra.mxu0 0
      %3066 = vmatpush.bf16.msra.mxu0 0
      %3067 = vmatpush.bf16.msra.mxu0 0
      %3068 = vmatpush.bf16.msra.mxu0 0
      %3069 = vmatpush.bf16.msra.mxu0 %v3040
      %3070 = vmatpush.bf16.msra.mxu0 %v3038
      %3071 = vmatpush.bf16.msra.mxu0 %v3036
      %3072 = vmatpush.bf16.msra.mxu0 %v3034
      %3073 = vmatmul.bf16.gmra.mxu0 %v3060
      %v3074 = vpop.f32.mrf.mxu0
      %v3075 = vadd.f32 0.0, %v3074
      %v3076 = vpop.f32.mrf.mxu0
      %v3077 = vadd.f32 0.0, %v3076
      %3078 = vmatmul.bf16.gmra.mxu0 %v3063
      %v3079 = vpop.f32.mrf.mxu0
      %v3080 = vadd.f32 0.0, %v3079
      %v3081 = vpop.f32.mrf.mxu0
      %v3082 = vadd.f32 0.0, %v3081
      %3083 = vdwg.mxu0
      %v3084 = vadd.f32 %v3019, %v3075
      %v3085 = vadd.f32 %v3021, %v3077
      %v3086 = vadd.f32 %v3024, %v3080
      %v3087 = vadd.f32 %v3026, %v3082
      %s3088 = scalar_lea.vmem %s487, 48
      %v3089 = vld [vmem:[%s3088] sm:$0xf]
      %v3090 = vld [vmem:[%s3088 + $0x4] sm:$0xf]
      %v3091 = vld [vmem:[%s3088 + $0x8] sm:$0xf]
      %v3092 = vld [vmem:[%s3088 + $0xc] sm:$0xf]
      %3093 = vrot.lane.b32.xlu0 %v2933, 3
      %v3094 = vpop.permute.xlu0 %3093
      %3095 = vrot.lane.b32.xlu0 %v2934, 3
      %v3096 = vpop.permute.xlu0 %3095
      %3097 = vrot.lane.b32.xlu0 %v2935, 3
      %v3098 = vpop.permute.xlu0 %3097
      %3099 = vrot.lane.b32.xlu0 %v2936, 3
      %v3100 = vpop.permute.xlu0 %3099
      %v3113 = vunpack.c.l.b16 %v3089
      %v3114 = vunpack.c.l.b16 %v3090
      %v3115 = vunpack.c.l.b16 %v3091
      %v3116 = vunpack.c.l.b16 %v3092
      %v3117 = vpack.c.b16 %v3114, %v3113
      %v3118 = vpack.c.b16 %v3116, %v3115
      %v3120 = vsel %vm2963, %v3117, 0
      %v3123 = vsel %vm2963, %v3118, 0
      %3125 = vmatpush.bf16.msra.mxu0 0
      %3126 = vmatpush.bf16.msra.mxu0 0
      %3127 = vmatpush.bf16.msra.mxu0 0
      %3128 = vmatpush.bf16.msra.mxu0 0
      %3129 = vmatpush.bf16.msra.mxu0 %v3100
      %3130 = vmatpush.bf16.msra.mxu0 %v3098
      %3131 = vmatpush.bf16.msra.mxu0 %v3096
      %3132 = vmatpush.bf16.msra.mxu0 %v3094
      %3133 = vmatmul.bf16.gmra.mxu0 %v3120
      %v3134 = vpop.f32.mrf.mxu0
      %v3135 = vadd.f32 0.0, %v3134
      %v3136 = vpop.f32.mrf.mxu0
      %v3137 = vadd.f32 0.0, %v3136
      %3138 = vmatmul.bf16.gmra.mxu0 %v3123
      %v3139 = vpop.f32.mrf.mxu0
      %v3140 = vadd.f32 0.0, %v3139
      %v3141 = vpop.f32.mrf.mxu0
      %v3142 = vadd.f32 0.0, %v3141
      %3143 = vdwg.mxu0
      %v3144 = vadd.f32 %v3084, %v3135
      %v3145 = vadd.f32 %v3085, %v3137
      %v3146 = vadd.f32 %v3086, %v3140
      %v3147 = vadd.f32 %v3087, %v3142
      %s3148 = scalar_lea.vmem %s487, 64
      %v3149 = vld [vmem:[%s3148] sm:$0xf]
      %v3150 = vld [vmem:[%s3148 + $0x4] sm:$0xf]
      %v3151 = vld [vmem:[%s3148 + $0x8] sm:$0xf]
      %v3152 = vld [vmem:[%s3148 + $0xc] sm:$0xf]
      %3153 = vrot.lane.b32.xlu0 %v2933, 4
      %v3154 = vpop.permute.xlu0 %3153
      %3155 = vrot.lane.b32.xlu0 %v2934, 4
      %v3156 = vpop.permute.xlu0 %3155
      %3157 = vrot.lane.b32.xlu0 %v2935, 4
      %v3158 = vpop.permute.xlu0 %3157
      %3159 = vrot.lane.b32.xlu0 %v2936, 4
      %v3160 = vpop.permute.xlu0 %3159
      %v3173 = vunpack.c.l.b16 %v3149
      %v3174 = vunpack.c.l.b16 %v3150
      %v3175 = vunpack.c.l.b16 %v3151
      %v3176 = vunpack.c.l.b16 %v3152
      %v3177 = vpack.c.b16 %v3174, %v3173
      %v3178 = vpack.c.b16 %v3176, %v3175
      %v3180 = vsel %vm2963, %v3177, 0
      %v3183 = vsel %vm2963, %v3178, 0
      %3185 = vmatpush.bf16.msra.mxu0 0
      %3186 = vmatpush.bf16.msra.mxu0 0
      %3187 = vmatpush.bf16.msra.mxu0 0
      %3188 = vmatpush.bf16.msra.mxu0 0
      %3189 = vmatpush.bf16.msra.mxu0 %v3160
      %3190 = vmatpush.bf16.msra.mxu0 %v3158
      %3191 = vmatpush.bf16.msra.mxu0 %v3156
      %3192 = vmatpush.bf16.msra.mxu0 %v3154
      %3193 = vmatmul.bf16.gmra.mxu0 %v3180
      %v3194 = vpop.f32.mrf.mxu0
      %v3195 = vadd.f32 0.0, %v3194
      %v3196 = vpop.f32.mrf.mxu0
      %v3197 = vadd.f32 0.0, %v3196
      %3198 = vmatmul.bf16.gmra.mxu0 %v3183
      %v3199 = vpop.f32.mrf.mxu0
      %v3200 = vadd.f32 0.0, %v3199
      %v3201 = vpop.f32.mrf.mxu0
      %v3202 = vadd.f32 0.0, %v3201
      %3203 = vdwg.mxu0
      %v3204 = vadd.f32 %v3144, %v3195
      %v3205 = vadd.f32 %v3145, %v3197
      %v3206 = vadd.f32 %v3146, %v3200
      %v3207 = vadd.f32 %v3147, %v3202
      %s3208 = scalar_lea.vmem %s487, 80
      %v3209 = vld [vmem:[%s3208] sm:$0xf]
      %v3210 = vld [vmem:[%s3208 + $0x4] sm:$0xf]
      %v3211 = vld [vmem:[%s3208 + $0x8] sm:$0xf]
      %v3212 = vld [vmem:[%s3208 + $0xc] sm:$0xf]
      %3213 = vrot.lane.b32.xlu0 %v2933, 5
      %v3214 = vpop.permute.xlu0 %3213
      %3215 = vrot.lane.b32.xlu0 %v2934, 5
      %v3216 = vpop.permute.xlu0 %3215
      %3217 = vrot.lane.b32.xlu0 %v2935, 5
      %v3218 = vpop.permute.xlu0 %3217
      %3219 = vrot.lane.b32.xlu0 %v2936, 5
      %v3220 = vpop.permute.xlu0 %3219
      %v3233 = vunpack.c.l.b16 %v3209
      %v3234 = vunpack.c.l.b16 %v3210
      %v3235 = vunpack.c.l.b16 %v3211
      %v3236 = vunpack.c.l.b16 %v3212
      %v3237 = vpack.c.b16 %v3234, %v3233
      %v3238 = vpack.c.b16 %v3236, %v3235
      %v3240 = vsel %vm2963, %v3237, 0
      %v3243 = vsel %vm2963, %v3238, 0
      %3245 = vmatpush.bf16.msra.mxu0 0
      %3246 = vmatpush.bf16.msra.mxu0 0
      %3247 = vmatpush.bf16.msra.mxu0 0
      %3248 = vmatpush.bf16.msra.mxu0 0
      %3249 = vmatpush.bf16.msra.mxu0 %v3220
      %3250 = vmatpush.bf16.msra.mxu0 %v3218
      %3251 = vmatpush.bf16.msra.mxu0 %v3216
      %3252 = vmatpush.bf16.msra.mxu0 %v3214
      %3253 = vmatmul.bf16.gmra.mxu0 %v3240
      %v3254 = vpop.f32.mrf.mxu0
      %v3255 = vadd.f32 0.0, %v3254
      %v3256 = vpop.f32.mrf.mxu0
      %v3257 = vadd.f32 0.0, %v3256
      %3258 = vmatmul.bf16.gmra.mxu0 %v3243
      %v3259 = vpop.f32.mrf.mxu0
      %v3260 = vadd.f32 0.0, %v3259
      %v3261 = vpop.f32.mrf.mxu0
      %v3262 = vadd.f32 0.0, %v3261
      %3263 = vdwg.mxu0
      %v3264 = vadd.f32 %v3204, %v3255
      %v3265 = vadd.f32 %v3205, %v3257
      %v3266 = vadd.f32 %v3206, %v3260
      %v3267 = vadd.f32 %v3207, %v3262
      %s3268 = scalar_lea.vmem %s487, 96
      %v3269 = vld [vmem:[%s3268] sm:$0xf]
      %v3270 = vld [vmem:[%s3268 + $0x4] sm:$0xf]
      %v3271 = vld [vmem:[%s3268 + $0x8] sm:$0xf]
      %v3272 = vld [vmem:[%s3268 + $0xc] sm:$0xf]
      %3273 = vrot.lane.b32.xlu0 %v2933, 6
      %v3274 = vpop.permute.xlu0 %3273
      %3275 = vrot.lane.b32.xlu0 %v2934, 6
      %v3276 = vpop.permute.xlu0 %3275
      %3277 = vrot.lane.b32.xlu0 %v2935, 6
      %v3278 = vpop.permute.xlu0 %3277
      %3279 = vrot.lane.b32.xlu0 %v2936, 6
      %v3280 = vpop.permute.xlu0 %3279
      %v3293 = vunpack.c.l.b16 %v3269
      %v3294 = vunpack.c.l.b16 %v3270
      %v3295 = vunpack.c.l.b16 %v3271
      %v3296 = vunpack.c.l.b16 %v3272
      %v3297 = vpack.c.b16 %v3294, %v3293
      %v3298 = vpack.c.b16 %v3296, %v3295
      %v3300 = vsel %vm2963, %v3297, 0
      %v3303 = vsel %vm2963, %v3298, 0
      %3305 = vmatpush.bf16.msra.mxu0 0
      %3306 = vmatpush.bf16.msra.mxu0 0
      %3307 = vmatpush.bf16.msra.mxu0 0
      %3308 = vmatpush.bf16.msra.mxu0 0
      %3309 = vmatpush.bf16.msra.mxu0 %v3280
      %3310 = vmatpush.bf16.msra.mxu0 %v3278
      %3311 = vmatpush.bf16.msra.mxu0 %v3276
      %3312 = vmatpush.bf16.msra.mxu0 %v3274
      %3313 = vmatmul.bf16.gmra.mxu0 %v3300
      %v3314 = vpop.f32.mrf.mxu0
      %v3315 = vadd.f32 0.0, %v3314
      %v3316 = vpop.f32.mrf.mxu0
      %v3317 = vadd.f32 0.0, %v3316
      %3318 = vmatmul.bf16.gmra.mxu0 %v3303
      %v3319 = vpop.f32.mrf.mxu0
      %v3320 = vadd.f32 0.0, %v3319
      %v3321 = vpop.f32.mrf.mxu0
      %v3322 = vadd.f32 0.0, %v3321
      %3323 = vdwg.mxu0
      %v3324 = vadd.f32 %v3264, %v3315
      %v3325 = vadd.f32 %v3265, %v3317
      %v3326 = vadd.f32 %v3266, %v3320
      %v3327 = vadd.f32 %v3267, %v3322
      %s3328 = scalar_lea.vmem %s487, 112
      %v3329 = vld [vmem:[%s3328] sm:$0xf]
      %v3330 = vld [vmem:[%s3328 + $0x4] sm:$0xf]
      %v3331 = vld [vmem:[%s3328 + $0x8] sm:$0xf]
      %v3332 = vld [vmem:[%s3328 + $0xc] sm:$0xf]
      %3333 = vrot.lane.b32.xlu0 %v2933, 7
      %v3334 = vpop.permute.xlu0 %3333
      %3335 = vrot.lane.b32.xlu0 %v2934, 7
      %v3336 = vpop.permute.xlu0 %3335
      %3337 = vrot.lane.b32.xlu0 %v2935, 7
      %v3338 = vpop.permute.xlu0 %3337
      %3339 = vrot.lane.b32.xlu0 %v2936, 7
      %v3340 = vpop.permute.xlu0 %3339
      %v3353 = vunpack.c.l.b16 %v3329
      %v3354 = vunpack.c.l.b16 %v3330
      %v3355 = vunpack.c.l.b16 %v3331
      %v3356 = vunpack.c.l.b16 %v3332
      %v3357 = vpack.c.b16 %v3354, %v3353
      %v3358 = vpack.c.b16 %v3356, %v3355
      %v3360 = vsel %vm2963, %v3357, 0
      %v3363 = vsel %vm2963, %v3358, 0
      %3365 = vmatpush.bf16.msra.mxu0 0
      %3366 = vmatpush.bf16.msra.mxu0 0
      %3367 = vmatpush.bf16.msra.mxu0 0
      %3368 = vmatpush.bf16.msra.mxu0 0
      %3369 = vmatpush.bf16.msra.mxu0 %v3340
      %3370 = vmatpush.bf16.msra.mxu0 %v3338
      %3371 = vmatpush.bf16.msra.mxu0 %v3336
      %3372 = vmatpush.bf16.msra.mxu0 %v3334
      %3373 = vmatmul.bf16.gmra.mxu0 %v3360
      %v3374 = vpop.f32.mrf.mxu0
      %v3375 = vadd.f32 0.0, %v3374
      %v3376 = vpop.f32.mrf.mxu0
      %v3377 = vadd.f32 0.0, %v3376
      %3378 = vmatmul.bf16.gmra.mxu0 %v3363
      %v3379 = vpop.f32.mrf.mxu0
      %v3380 = vadd.f32 0.0, %v3379
      %v3381 = vpop.f32.mrf.mxu0
      %v3382 = vadd.f32 0.0, %v3381
      %3383 = vdwg.mxu0
      %v3384 = vadd.f32 %v3324, %v3375
      %v3385 = vadd.f32 %v3325, %v3377
      %v3386 = vadd.f32 %v3326, %v3380
      %v3387 = vadd.f32 %v3327, %v3382
      %s3388 = scalar_lea.vmem %s487, 128
      %v3389 = vld [vmem:[%s3388] sm:$0xf]
      %v3390 = vld [vmem:[%s3388 + $0x4] sm:$0xf]
      %v3391 = vld [vmem:[%s3388 + $0x8] sm:$0xf]
      %v3392 = vld [vmem:[%s3388 + $0xc] sm:$0xf]
      %3393 = vrot.lane.b32.xlu0 %v2933, 8
      %v3394 = vpop.permute.xlu0 %3393
      %3395 = vrot.lane.b32.xlu0 %v2934, 8
      %v3396 = vpop.permute.xlu0 %3395
      %3397 = vrot.lane.b32.xlu0 %v2935, 8
      %v3398 = vpop.permute.xlu0 %3397
      %3399 = vrot.lane.b32.xlu0 %v2936, 8
      %v3400 = vpop.permute.xlu0 %3399
      %v3413 = vunpack.c.l.b16 %v3389
      %v3414 = vunpack.c.l.b16 %v3390
      %v3415 = vunpack.c.l.b16 %v3391
      %v3416 = vunpack.c.l.b16 %v3392
      %v3417 = vpack.c.b16 %v3414, %v3413
      %v3418 = vpack.c.b16 %v3416, %v3415
      %v3420 = vsel %vm2963, %v3417, 0
      %v3423 = vsel %vm2963, %v3418, 0
      %3425 = vmatpush.bf16.msra.mxu0 0
      %3426 = vmatpush.bf16.msra.mxu0 0
      %3427 = vmatpush.bf16.msra.mxu0 0
      %3428 = vmatpush.bf16.msra.mxu0 0
      %3429 = vmatpush.bf16.msra.mxu0 %v3400
      %3430 = vmatpush.bf16.msra.mxu0 %v3398
      %3431 = vmatpush.bf16.msra.mxu0 %v3396
      %3432 = vmatpush.bf16.msra.mxu0 %v3394
      %3433 = vmatmul.bf16.gmra.mxu0 %v3420
      %v3434 = vpop.f32.mrf.mxu0
      %v3435 = vadd.f32 0.0, %v3434
      %v3436 = vpop.f32.mrf.mxu0
      %v3437 = vadd.f32 0.0, %v3436
      %3438 = vmatmul.bf16.gmra.mxu0 %v3423
      %v3439 = vpop.f32.mrf.mxu0
      %v3440 = vadd.f32 0.0, %v3439
      %v3441 = vpop.f32.mrf.mxu0
      %v3442 = vadd.f32 0.0, %v3441
      %3443 = vdwg.mxu0
      %v3444 = vadd.f32 %v3384, %v3435
      %v3445 = vadd.f32 %v3385, %v3437
      %v3446 = vadd.f32 %v3386, %v3440
      %v3447 = vadd.f32 %v3387, %v3442
      %s3448 = scalar_lea.vmem %s487, 144
      %v3449 = vld [vmem:[%s3448] sm:$0xf]
      %v3450 = vld [vmem:[%s3448 + $0x4] sm:$0xf]
      %v3451 = vld [vmem:[%s3448 + $0x8] sm:$0xf]
      %v3452 = vld [vmem:[%s3448 + $0xc] sm:$0xf]
      %3453 = vrot.lane.b32.xlu0 %v2933, 9
      %v3454 = vpop.permute.xlu0 %3453
      %3455 = vrot.lane.b32.xlu0 %v2934, 9
      %v3456 = vpop.permute.xlu0 %3455
      %3457 = vrot.lane.b32.xlu0 %v2935, 9
      %v3458 = vpop.permute.xlu0 %3457
      %3459 = vrot.lane.b32.xlu0 %v2936, 9
      %v3460 = vpop.permute.xlu0 %3459
      %v3473 = vunpack.c.l.b16 %v3449
      %v3474 = vunpack.c.l.b16 %v3450
      %v3475 = vunpack.c.l.b16 %v3451
      %v3476 = vunpack.c.l.b16 %v3452
      %v3477 = vpack.c.b16 %v3474, %v3473
      %v3478 = vpack.c.b16 %v3476, %v3475
      %v3480 = vsel %vm2963, %v3477, 0
      %v3483 = vsel %vm2963, %v3478, 0
      %3485 = vmatpush.bf16.msra.mxu0 0
      %3486 = vmatpush.bf16.msra.mxu0 0
      %3487 = vmatpush.bf16.msra.mxu0 0
      %3488 = vmatpush.bf16.msra.mxu0 0
      %3489 = vmatpush.bf16.msra.mxu0 %v3460
      %3490 = vmatpush.bf16.msra.mxu0 %v3458
      %3491 = vmatpush.bf16.msra.mxu0 %v3456
      %3492 = vmatpush.bf16.msra.mxu0 %v3454
      %3493 = vmatmul.bf16.gmra.mxu0 %v3480
      %v3494 = vpop.f32.mrf.mxu0
      %v3495 = vadd.f32 0.0, %v3494
      %v3496 = vpop.f32.mrf.mxu0
      %v3497 = vadd.f32 0.0, %v3496
      %3498 = vmatmul.bf16.gmra.mxu0 %v3483
      %v3499 = vpop.f32.mrf.mxu0
      %v3500 = vadd.f32 0.0, %v3499
      %v3501 = vpop.f32.mrf.mxu0
      %v3502 = vadd.f32 0.0, %v3501
      %3503 = vdwg.mxu0
      %v3504 = vadd.f32 %v3444, %v3495
      %v3505 = vadd.f32 %v3445, %v3497
      %v3506 = vadd.f32 %v3446, %v3500
      %v3507 = vadd.f32 %v3447, %v3502
      %s3508 = scalar_lea.vmem %s487, 160
      %v3509 = vld [vmem:[%s3508] sm:$0xf]
      %v3510 = vld [vmem:[%s3508 + $0x4] sm:$0xf]
      %v3511 = vld [vmem:[%s3508 + $0x8] sm:$0xf]
      %v3512 = vld [vmem:[%s3508 + $0xc] sm:$0xf]
      %3513 = vrot.lane.b32.xlu0 %v2933, 10
      %v3514 = vpop.permute.xlu0 %3513
      %3515 = vrot.lane.b32.xlu0 %v2934, 10
      %v3516 = vpop.permute.xlu0 %3515
      %3517 = vrot.lane.b32.xlu0 %v2935, 10
      %v3518 = vpop.permute.xlu0 %3517
      %3519 = vrot.lane.b32.xlu0 %v2936, 10
      %v3520 = vpop.permute.xlu0 %3519
      %v3533 = vunpack.c.l.b16 %v3509
      %v3534 = vunpack.c.l.b16 %v3510
      %v3535 = vunpack.c.l.b16 %v3511
      %v3536 = vunpack.c.l.b16 %v3512
      %v3537 = vpack.c.b16 %v3534, %v3533
      %v3538 = vpack.c.b16 %v3536, %v3535
      %v3540 = vsel %vm2963, %v3537, 0
      %v3543 = vsel %vm2963, %v3538, 0
      %3545 = vmatpush.bf16.msra.mxu0 0
      %3546 = vmatpush.bf16.msra.mxu0 0
      %3547 = vmatpush.bf16.msra.mxu0 0
      %3548 = vmatpush.bf16.msra.mxu0 0
      %3549 = vmatpush.bf16.msra.mxu0 %v3520
      %3550 = vmatpush.bf16.msra.mxu0 %v3518
      %3551 = vmatpush.bf16.msra.mxu0 %v3516
      %3552 = vmatpush.bf16.msra.mxu0 %v3514
      %3553 = vmatmul.bf16.gmra.mxu0 %v3540
      %v3554 = vpop.f32.mrf.mxu0
      %v3555 = vadd.f32 0.0, %v3554
      %v3556 = vpop.f32.mrf.mxu0
      %v3557 = vadd.f32 0.0, %v3556
      %3558 = vmatmul.bf16.gmra.mxu0 %v3543
      %v3559 = vpop.f32.mrf.mxu0
      %v3560 = vadd.f32 0.0, %v3559
      %v3561 = vpop.f32.mrf.mxu0
      %v3562 = vadd.f32 0.0, %v3561
      %3563 = vdwg.mxu0
      %v3564 = vadd.f32 %v3504, %v3555
      %v3565 = vadd.f32 %v3505, %v3557
      %v3566 = vadd.f32 %v3506, %v3560
      %v3567 = vadd.f32 %v3507, %v3562
      %s3568 = scalar_lea.vmem %s487, 176
      %v3569 = vld [vmem:[%s3568] sm:$0xf]
      %v3570 = vld [vmem:[%s3568 + $0x4] sm:$0xf]
      %v3571 = vld [vmem:[%s3568 + $0x8] sm:$0xf]
      %v3572 = vld [vmem:[%s3568 + $0xc] sm:$0xf]
      %3573 = vrot.lane.b32.xlu0 %v2933, 11
      %v3574 = vpop.permute.xlu0 %3573
      %3575 = vrot.lane.b32.xlu0 %v2934, 11
      %v3576 = vpop.permute.xlu0 %3575
      %3577 = vrot.lane.b32.xlu0 %v2935, 11
      %v3578 = vpop.permute.xlu0 %3577
      %3579 = vrot.lane.b32.xlu0 %v2936, 11
      %v3580 = vpop.permute.xlu0 %3579
      %v3593 = vunpack.c.l.b16 %v3569
      %v3594 = vunpack.c.l.b16 %v3570
      %v3595 = vunpack.c.l.b16 %v3571
      %v3596 = vunpack.c.l.b16 %v3572
      %v3597 = vpack.c.b16 %v3594, %v3593
      %v3598 = vpack.c.b16 %v3596, %v3595
      %v3600 = vsel %vm2963, %v3597, 0
      %v3603 = vsel %vm2963, %v3598, 0
      %3605 = vmatpush.bf16.msra.mxu0 0
      %3606 = vmatpush.bf16.msra.mxu0 0
      %3607 = vmatpush.bf16.msra.mxu0 0
      %3608 = vmatpush.bf16.msra.mxu0 0
      %3609 = vmatpush.bf16.msra.mxu0 %v3580
      %3610 = vmatpush.bf16.msra.mxu0 %v3578
      %3611 = vmatpush.bf16.msra.mxu0 %v3576
      %3612 = vmatpush.bf16.msra.mxu0 %v3574
      %3613 = vmatmul.bf16.gmra.mxu0 %v3600
      %v3614 = vpop.f32.mrf.mxu0
      %v3615 = vadd.f32 0.0, %v3614
      %v3616 = vpop.f32.mrf.mxu0
      %v3617 = vadd.f32 0.0, %v3616
      %3618 = vmatmul.bf16.gmra.mxu0 %v3603
      %v3619 = vpop.f32.mrf.mxu0
      %v3620 = vadd.f32 0.0, %v3619
      %v3621 = vpop.f32.mrf.mxu0
      %v3622 = vadd.f32 0.0, %v3621
      %3623 = vdwg.mxu0
      %v3624 = vadd.f32 %v3564, %v3615
      %v3625 = vadd.f32 %v3565, %v3617
      %v3626 = vadd.f32 %v3566, %v3620
      %v3627 = vadd.f32 %v3567, %v3622
      %s3628 = scalar_lea.vmem %s487, 192
      %v3629 = vld [vmem:[%s3628] sm:$0xf]
      %v3630 = vld [vmem:[%s3628 + $0x4] sm:$0xf]
      %v3631 = vld [vmem:[%s3628 + $0x8] sm:$0xf]
      %v3632 = vld [vmem:[%s3628 + $0xc] sm:$0xf]
      %3633 = vrot.lane.b32.xlu0 %v2933, 12
      %v3634 = vpop.permute.xlu0 %3633
      %3635 = vrot.lane.b32.xlu0 %v2934, 12
      %v3636 = vpop.permute.xlu0 %3635
      %3637 = vrot.lane.b32.xlu0 %v2935, 12
      %v3638 = vpop.permute.xlu0 %3637
      %3639 = vrot.lane.b32.xlu0 %v2936, 12
      %v3640 = vpop.permute.xlu0 %3639
      %v3653 = vunpack.c.l.b16 %v3629
      %v3654 = vunpack.c.l.b16 %v3630
      %v3655 = vunpack.c.l.b16 %v3631
      %v3656 = vunpack.c.l.b16 %v3632
      %v3657 = vpack.c.b16 %v3654, %v3653
      %v3658 = vpack.c.b16 %v3656, %v3655
      %v3660 = vsel %vm2963, %v3657, 0
      %v3663 = vsel %vm2963, %v3658, 0
      %3665 = vmatpush.bf16.msra.mxu0 0
      %3666 = vmatpush.bf16.msra.mxu0 0
      %3667 = vmatpush.bf16.msra.mxu0 0
      %3668 = vmatpush.bf16.msra.mxu0 0
      %3669 = vmatpush.bf16.msra.mxu0 %v3640
      %3670 = vmatpush.bf16.msra.mxu0 %v3638
      %3671 = vmatpush.bf16.msra.mxu0 %v3636
      %3672 = vmatpush.bf16.msra.mxu0 %v3634
      %3673 = vmatmul.bf16.gmra.mxu0 %v3660
      %v3674 = vpop.f32.mrf.mxu0
      %v3675 = vadd.f32 0.0, %v3674
      %v3676 = vpop.f32.mrf.mxu0
      %v3677 = vadd.f32 0.0, %v3676
      %3678 = vmatmul.bf16.gmra.mxu0 %v3663
      %v3679 = vpop.f32.mrf.mxu0
      %v3680 = vadd.f32 0.0, %v3679
      %v3681 = vpop.f32.mrf.mxu0
      %v3682 = vadd.f32 0.0, %v3681
      %3683 = vdwg.mxu0
      %v3684 = vadd.f32 %v3624, %v3675
      %v3685 = vadd.f32 %v3625, %v3677
      %v3686 = vadd.f32 %v3626, %v3680
      %v3687 = vadd.f32 %v3627, %v3682
      %s3688 = scalar_lea.vmem %s487, 208
      %v3689 = vld [vmem:[%s3688] sm:$0xf]
      %v3690 = vld [vmem:[%s3688 + $0x4] sm:$0xf]
      %v3691 = vld [vmem:[%s3688 + $0x8] sm:$0xf]
      %v3692 = vld [vmem:[%s3688 + $0xc] sm:$0xf]
      %3693 = vrot.lane.b32.xlu0 %v2933, 13
      %v3694 = vpop.permute.xlu0 %3693
      %3695 = vrot.lane.b32.xlu0 %v2934, 13
      %v3696 = vpop.permute.xlu0 %3695
      %3697 = vrot.lane.b32.xlu0 %v2935, 13
      %v3698 = vpop.permute.xlu0 %3697
      %3699 = vrot.lane.b32.xlu0 %v2936, 13
      %v3700 = vpop.permute.xlu0 %3699
      %v3713 = vunpack.c.l.b16 %v3689
      %v3714 = vunpack.c.l.b16 %v3690
      %v3715 = vunpack.c.l.b16 %v3691
      %v3716 = vunpack.c.l.b16 %v3692
      %v3717 = vpack.c.b16 %v3714, %v3713
      %v3718 = vpack.c.b16 %v3716, %v3715
      %v3720 = vsel %vm2963, %v3717, 0
      %v3723 = vsel %vm2963, %v3718, 0
      %3725 = vmatpush.bf16.msra.mxu0 0
      %3726 = vmatpush.bf16.msra.mxu0 0
      %3727 = vmatpush.bf16.msra.mxu0 0
      %3728 = vmatpush.bf16.msra.mxu0 0
      %3729 = vmatpush.bf16.msra.mxu0 %v3700
      %3730 = vmatpush.bf16.msra.mxu0 %v3698
      %3731 = vmatpush.bf16.msra.mxu0 %v3696
      %3732 = vmatpush.bf16.msra.mxu0 %v3694
      %3733 = vmatmul.bf16.gmra.mxu0 %v3720
      %v3734 = vpop.f32.mrf.mxu0
      %v3735 = vadd.f32 0.0, %v3734
      %v3736 = vpop.f32.mrf.mxu0
      %v3737 = vadd.f32 0.0, %v3736
      %3738 = vmatmul.bf16.gmra.mxu0 %v3723
      %v3739 = vpop.f32.mrf.mxu0
      %v3740 = vadd.f32 0.0, %v3739
      %v3741 = vpop.f32.mrf.mxu0
      %v3742 = vadd.f32 0.0, %v3741
      %3743 = vdwg.mxu0
      %v3744 = vadd.f32 %v3684, %v3735
      %v3745 = vadd.f32 %v3685, %v3737
      %v3746 = vadd.f32 %v3686, %v3740
      %v3747 = vadd.f32 %v3687, %v3742
      %s3748 = scalar_lea.vmem %s487, 224
      %v3749 = vld [vmem:[%s3748] sm:$0xf]
      %v3750 = vld [vmem:[%s3748 + $0x4] sm:$0xf]
      %v3751 = vld [vmem:[%s3748 + $0x8] sm:$0xf]
      %v3752 = vld [vmem:[%s3748 + $0xc] sm:$0xf]
      %3753 = vrot.lane.b32.xlu0 %v2933, 14
      %v3754 = vpop.permute.xlu0 %3753
      %3755 = vrot.lane.b32.xlu0 %v2934, 14
      %v3756 = vpop.permute.xlu0 %3755
      %3757 = vrot.lane.b32.xlu0 %v2935, 14
      %v3758 = vpop.permute.xlu0 %3757
      %3759 = vrot.lane.b32.xlu0 %v2936, 14
      %v3760 = vpop.permute.xlu0 %3759
      %v3773 = vunpack.c.l.b16 %v3749
      %v3774 = vunpack.c.l.b16 %v3750
      %v3775 = vunpack.c.l.b16 %v3751
      %v3776 = vunpack.c.l.b16 %v3752
      %v3777 = vpack.c.b16 %v3774, %v3773
      %v3778 = vpack.c.b16 %v3776, %v3775
      %v3780 = vsel %vm2963, %v3777, 0
      %v3783 = vsel %vm2963, %v3778, 0
      %3785 = vmatpush.bf16.msra.mxu0 0
      %3786 = vmatpush.bf16.msra.mxu0 0
      %3787 = vmatpush.bf16.msra.mxu0 0
      %3788 = vmatpush.bf16.msra.mxu0 0
      %3789 = vmatpush.bf16.msra.mxu0 %v3760
      %3790 = vmatpush.bf16.msra.mxu0 %v3758
      %3791 = vmatpush.bf16.msra.mxu0 %v3756
      %3792 = vmatpush.bf16.msra.mxu0 %v3754
      %3793 = vmatmul.bf16.gmra.mxu0 %v3780
      %v3794 = vpop.f32.mrf.mxu0
      %v3795 = vadd.f32 0.0, %v3794
      %v3796 = vpop.f32.mrf.mxu0
      %v3797 = vadd.f32 0.0, %v3796
      %3798 = vmatmul.bf16.gmra.mxu0 %v3783
      %v3799 = vpop.f32.mrf.mxu0
      %v3800 = vadd.f32 0.0, %v3799
      %v3801 = vpop.f32.mrf.mxu0
      %v3802 = vadd.f32 0.0, %v3801
      %3803 = vdwg.mxu0
      %v3804 = vadd.f32 %v3744, %v3795
      %v3805 = vadd.f32 %v3745, %v3797
      %v3806 = vadd.f32 %v3746, %v3800
      %v3807 = vadd.f32 %v3747, %v3802
      %s3808 = scalar_lea.vmem %s487, 240
      %v3809 = vld [vmem:[%s3808] sm:$0xf]
      %v3810 = vld [vmem:[%s3808 + $0x4] sm:$0xf]
      %v3811 = vld [vmem:[%s3808 + $0x8] sm:$0xf]
      %v3812 = vld [vmem:[%s3808 + $0xc] sm:$0xf]
      %3813 = vrot.lane.b32.xlu0 %v2933, 15
      %v3814 = vpop.permute.xlu0 %3813
      %3815 = vrot.lane.b32.xlu0 %v2934, 15
      %v3816 = vpop.permute.xlu0 %3815
      %3817 = vrot.lane.b32.xlu0 %v2935, 15
      %v3818 = vpop.permute.xlu0 %3817
      %3819 = vrot.lane.b32.xlu0 %v2936, 15
      %v3820 = vpop.permute.xlu0 %3819
      %v3833 = vunpack.c.l.b16 %v3809
      %v3834 = vunpack.c.l.b16 %v3810
      %v3835 = vunpack.c.l.b16 %v3811
      %v3836 = vunpack.c.l.b16 %v3812
      %v3837 = vpack.c.b16 %v3834, %v3833
      %v3838 = vpack.c.b16 %v3836, %v3835
      %v3840 = vsel %vm2963, %v3837, 0
      %v3843 = vsel %vm2963, %v3838, 0
      %3845 = vmatpush.bf16.msra.mxu0 0
      %3846 = vmatpush.bf16.msra.mxu0 0
      %3847 = vmatpush.bf16.msra.mxu0 0
      %3848 = vmatpush.bf16.msra.mxu0 0
      %3849 = vmatpush.bf16.msra.mxu0 %v3820
      %3850 = vmatpush.bf16.msra.mxu0 %v3818
      %3851 = vmatpush.bf16.msra.mxu0 %v3816
      %3852 = vmatpush.bf16.msra.mxu0 %v3814
      %3853 = vmatmul.bf16.gmra.mxu0 %v3840
      %v3854 = vpop.f32.mrf.mxu0
      %v3855 = vadd.f32 0.0, %v3854
      %v3856 = vpop.f32.mrf.mxu0
      %v3857 = vadd.f32 0.0, %v3856
      %3858 = vmatmul.bf16.gmra.mxu0 %v3843
      %v3859 = vpop.f32.mrf.mxu0
      %v3860 = vadd.f32 0.0, %v3859
      %v3861 = vpop.f32.mrf.mxu0
      %v3862 = vadd.f32 0.0, %v3861
      %3863 = vdwg.mxu0
      %v3864 = vadd.f32 %v3804, %v3855
      %v3865 = vadd.f32 %v3805, %v3857
      %v3866 = vadd.f32 %v3806, %v3860
      %v3867 = vadd.f32 %v3807, %v3862
      %s3868 = scalar_lea.vmem %s487, 256
      %v3869 = vld [vmem:[%s3868] sm:$0xf]
      %v3870 = vld [vmem:[%s3868 + $0x4] sm:$0xf]
      %v3871 = vld [vmem:[%s3868 + $0x8] sm:$0xf]
      %v3872 = vld [vmem:[%s3868 + $0xc] sm:$0xf]
      %3873 = vrot.lane.b32.xlu0 %v2933, 16
      %v3874 = vpop.permute.xlu0 %3873
      %3875 = vrot.lane.b32.xlu0 %v2934, 16
      %v3876 = vpop.permute.xlu0 %3875
      %3877 = vrot.lane.b32.xlu0 %v2935, 16
      %v3878 = vpop.permute.xlu0 %3877
      %3879 = vrot.lane.b32.xlu0 %v2936, 16
      %v3880 = vpop.permute.xlu0 %3879
      %v3893 = vunpack.c.l.b16 %v3869
      %v3894 = vunpack.c.l.b16 %v3870
      %v3895 = vunpack.c.l.b16 %v3871
      %v3896 = vunpack.c.l.b16 %v3872
      %v3897 = vpack.c.b16 %v3894, %v3893
      %v3898 = vpack.c.b16 %v3896, %v3895
      %v3900 = vsel %vm2963, %v3897, 0
      %v3903 = vsel %vm2963, %v3898, 0
      %3905 = vmatpush.bf16.msra.mxu0 0
      %3906 = vmatpush.bf16.msra.mxu0 0
      %3907 = vmatpush.bf16.msra.mxu0 0
      %3908 = vmatpush.bf16.msra.mxu0 0
      %3909 = vmatpush.bf16.msra.mxu0 %v3880
      %3910 = vmatpush.bf16.msra.mxu0 %v3878
      %3911 = vmatpush.bf16.msra.mxu0 %v3876
      %3912 = vmatpush.bf16.msra.mxu0 %v3874
      %3913 = vmatmul.bf16.gmra.mxu0 %v3900
      %v3914 = vpop.f32.mrf.mxu0
      %v3915 = vadd.f32 0.0, %v3914
      %v3916 = vpop.f32.mrf.mxu0
      %v3917 = vadd.f32 0.0, %v3916
      %3918 = vmatmul.bf16.gmra.mxu0 %v3903
      %v3919 = vpop.f32.mrf.mxu0
      %v3920 = vadd.f32 0.0, %v3919
      %v3921 = vpop.f32.mrf.mxu0
      %v3922 = vadd.f32 0.0, %v3921
      %3923 = vdwg.mxu0
      %v3924 = vadd.f32 %v3864, %v3915
      %v3925 = vadd.f32 %v3865, %v3917
      %v3926 = vadd.f32 %v3866, %v3920
      %v3927 = vadd.f32 %v3867, %v3922
      %s3928 = scalar_lea.vmem %s487, 272
      %v3929 = vld [vmem:[%s3928] sm:$0xf]
      %v3930 = vld [vmem:[%s3928 + $0x4] sm:$0xf]
      %v3931 = vld [vmem:[%s3928 + $0x8] sm:$0xf]
      %v3932 = vld [vmem:[%s3928 + $0xc] sm:$0xf]
      %3933 = vrot.lane.b32.xlu0 %v2933, 17
      %v3934 = vpop.permute.xlu0 %3933
      %3935 = vrot.lane.b32.xlu0 %v2934, 17
      %v3936 = vpop.permute.xlu0 %3935
      %3937 = vrot.lane.b32.xlu0 %v2935, 17
      %v3938 = vpop.permute.xlu0 %3937
      %3939 = vrot.lane.b32.xlu0 %v2936, 17
      %v3940 = vpop.permute.xlu0 %3939
      %v3953 = vunpack.c.l.b16 %v3929
      %v3954 = vunpack.c.l.b16 %v3930
      %v3955 = vunpack.c.l.b16 %v3931
      %v3956 = vunpack.c.l.b16 %v3932
      %v3957 = vpack.c.b16 %v3954, %v3953
      %v3958 = vpack.c.b16 %v3956, %v3955
      %v3960 = vsel %vm2963, %v3957, 0
      %v3963 = vsel %vm2963, %v3958, 0
      %3965 = vmatpush.bf16.msra.mxu0 0
      %3966 = vmatpush.bf16.msra.mxu0 0
      %3967 = vmatpush.bf16.msra.mxu0 0
      %3968 = vmatpush.bf16.msra.mxu0 0
      %3969 = vmatpush.bf16.msra.mxu0 %v3940
      %3970 = vmatpush.bf16.msra.mxu0 %v3938
      %3971 = vmatpush.bf16.msra.mxu0 %v3936
      %3972 = vmatpush.bf16.msra.mxu0 %v3934
      %3973 = vmatmul.bf16.gmra.mxu0 %v3960
      %v3974 = vpop.f32.mrf.mxu0
      %v3975 = vadd.f32 0.0, %v3974
      %v3976 = vpop.f32.mrf.mxu0
      %v3977 = vadd.f32 0.0, %v3976
      %3978 = vmatmul.bf16.gmra.mxu0 %v3963
      %v3979 = vpop.f32.mrf.mxu0
      %v3980 = vadd.f32 0.0, %v3979
      %v3981 = vpop.f32.mrf.mxu0
      %v3982 = vadd.f32 0.0, %v3981
      %3983 = vdwg.mxu0
      %v3984 = vadd.f32 %v3924, %v3975
      %v3985 = vadd.f32 %v3925, %v3977
      %v3986 = vadd.f32 %v3926, %v3980
      %v3987 = vadd.f32 %v3927, %v3982
      %s3988 = scalar_lea.vmem %s487, 288
      %v3989 = vld [vmem:[%s3988] sm:$0xf]
      %v3990 = vld [vmem:[%s3988 + $0x4] sm:$0xf]
      %v3991 = vld [vmem:[%s3988 + $0x8] sm:$0xf]
      %v3992 = vld [vmem:[%s3988 + $0xc] sm:$0xf]
      %3993 = vrot.lane.b32.xlu0 %v2933, 18
      %v3994 = vpop.permute.xlu0 %3993
      %3995 = vrot.lane.b32.xlu0 %v2934, 18
      %v3996 = vpop.permute.xlu0 %3995
      %3997 = vrot.lane.b32.xlu0 %v2935, 18
      %v3998 = vpop.permute.xlu0 %3997
      %3999 = vrot.lane.b32.xlu0 %v2936, 18
      %v4000 = vpop.permute.xlu0 %3999
      %v4013 = vunpack.c.l.b16 %v3989
      %v4014 = vunpack.c.l.b16 %v3990
      %v4015 = vunpack.c.l.b16 %v3991
      %v4016 = vunpack.c.l.b16 %v3992
      %v4017 = vpack.c.b16 %v4014, %v4013
      %v4018 = vpack.c.b16 %v4016, %v4015
      %v4020 = vsel %vm2963, %v4017, 0
      %v4023 = vsel %vm2963, %v4018, 0
      %4025 = vmatpush.bf16.msra.mxu0 0
      %4026 = vmatpush.bf16.msra.mxu0 0
      %4027 = vmatpush.bf16.msra.mxu0 0
      %4028 = vmatpush.bf16.msra.mxu0 0
      %4029 = vmatpush.bf16.msra.mxu0 %v4000
      %4030 = vmatpush.bf16.msra.mxu0 %v3998
      %4031 = vmatpush.bf16.msra.mxu0 %v3996
      %4032 = vmatpush.bf16.msra.mxu0 %v3994
      %4033 = vmatmul.bf16.gmra.mxu0 %v4020
      %v4034 = vpop.f32.mrf.mxu0
      %v4035 = vadd.f32 0.0, %v4034
      %v4036 = vpop.f32.mrf.mxu0
      %v4037 = vadd.f32 0.0, %v4036
      %4038 = vmatmul.bf16.gmra.mxu0 %v4023
      %v4039 = vpop.f32.mrf.mxu0
      %v4040 = vadd.f32 0.0, %v4039
      %v4041 = vpop.f32.mrf.mxu0
      %v4042 = vadd.f32 0.0, %v4041
      %4043 = vdwg.mxu0
      %v4044 = vadd.f32 %v3984, %v4035
      %v4045 = vadd.f32 %v3985, %v4037
      %v4046 = vadd.f32 %v3986, %v4040
      %v4047 = vadd.f32 %v3987, %v4042
      %s4048 = scalar_lea.vmem %s487, 304
      %v4049 = vld [vmem:[%s4048] sm:$0xf]
      %v4050 = vld [vmem:[%s4048 + $0x4] sm:$0xf]
      %v4051 = vld [vmem:[%s4048 + $0x8] sm:$0xf]
      %v4052 = vld [vmem:[%s4048 + $0xc] sm:$0xf]
      %4053 = vrot.lane.b32.xlu0 %v2933, 19
      %v4054 = vpop.permute.xlu0 %4053
      %4055 = vrot.lane.b32.xlu0 %v2934, 19
      %v4056 = vpop.permute.xlu0 %4055
      %4057 = vrot.lane.b32.xlu0 %v2935, 19
      %v4058 = vpop.permute.xlu0 %4057
      %4059 = vrot.lane.b32.xlu0 %v2936, 19
      %v4060 = vpop.permute.xlu0 %4059
      %v4073 = vunpack.c.l.b16 %v4049
      %v4074 = vunpack.c.l.b16 %v4050
      %v4075 = vunpack.c.l.b16 %v4051
      %v4076 = vunpack.c.l.b16 %v4052
      %v4077 = vpack.c.b16 %v4074, %v4073
      %v4078 = vpack.c.b16 %v4076, %v4075
      %v4080 = vsel %vm2963, %v4077, 0
      %v4083 = vsel %vm2963, %v4078, 0
      %4085 = vmatpush.bf16.msra.mxu0 0
      %4086 = vmatpush.bf16.msra.mxu0 0
      %4087 = vmatpush.bf16.msra.mxu0 0
      %4088 = vmatpush.bf16.msra.mxu0 0
      %4089 = vmatpush.bf16.msra.mxu0 %v4060
      %4090 = vmatpush.bf16.msra.mxu0 %v4058
      %4091 = vmatpush.bf16.msra.mxu0 %v4056
      %4092 = vmatpush.bf16.msra.mxu0 %v4054
      %4093 = vmatmul.bf16.gmra.mxu0 %v4080
      %v4094 = vpop.f32.mrf.mxu0
      %v4095 = vadd.f32 0.0, %v4094
      %v4096 = vpop.f32.mrf.mxu0
      %v4097 = vadd.f32 0.0, %v4096
      %4098 = vmatmul.bf16.gmra.mxu0 %v4083
      %v4099 = vpop.f32.mrf.mxu0
      %v4100 = vadd.f32 0.0, %v4099
      %v4101 = vpop.f32.mrf.mxu0
      %v4102 = vadd.f32 0.0, %v4101
      %4103 = vdwg.mxu0
      %v4104 = vadd.f32 %v4044, %v4095
      %v4105 = vadd.f32 %v4045, %v4097
      %v4106 = vadd.f32 %v4046, %v4100
      %v4107 = vadd.f32 %v4047, %v4102
      %4109 = vset.pattern.permute.xlu0 0
      %4110 = vperm.xlu0 %4109, %v523
      %v4111 = vpop.permute.xlu0 %4110
      %4114 = vset.pattern.permute.xlu0 0
      %4115 = vperm.xlu0 %4114, %v524
      %v4116 = vpop.permute.xlu0 %4115
      %4119 = vset.pattern.permute.xlu0 0
      %4120 = vperm.xlu0 %4119, %v525
      %v4121 = vpop.permute.xlu0 %4120
      %4124 = vset.pattern.permute.xlu0 0
      %4125 = vperm.xlu0 %4124, %v526
      %v4126 = vpop.permute.xlu0 %4125
      %v4128 = vadd.f32 %v4104, %v4111
      %v4129 = vadd.f32 %v4105, %v4116
      %v4130 = vadd.f32 %v4106, %v4121
      %v4131 = vadd.f32 %v4107, %v4126
      %v4132 = vmax.f32 %v4128, 0.0
      %v4133 = vmax.f32 %v4129, 0.0
      %v4134 = vmax.f32 %v4130, 0.0
      %v4135 = vmax.f32 %v4131, 0.0
      %v4136 = vperm.slane %v506, 1
      %v4137 = vmul.f32 %v4132, %v4136
      %v4138 = vmul.f32 %v4133, %v4136
      %v4139 = vmul.f32 %v4134, %v4136
      %v4140 = vmul.f32 %v4135, %v4136
      %4142 = vset.pattern.permute.xlu0 0
      %4143 = vperm.xlu0 %4142, %v527
      %v4144 = vpop.permute.xlu0 %4143
      %4147 = vset.pattern.permute.xlu0 0
      %4148 = vperm.xlu0 %4147, %v528
      %v4149 = vpop.permute.xlu0 %4148
      %4152 = vset.pattern.permute.xlu0 0
      %4153 = vperm.xlu0 %4152, %v529
      %v4154 = vpop.permute.xlu0 %4153
      %4157 = vset.pattern.permute.xlu0 0
      %4158 = vperm.xlu0 %4157, %v530
      %v4159 = vpop.permute.xlu0 %4158
      %v4161 = vmul.f32 %v4144, %v4137
      %v4162 = vmul.f32 %v4149, %v4138
      %v4163 = vmul.f32 %v4154, %v4139
      %v4164 = vmul.f32 %v4159, %v4140
      %v4165 = vadd.f32 %v4161, 0.0
      %v4166 = vadd.f32 %v4162, 0.0
      %v4167 = vadd.f32 %v4163, 0.0
      %v4168 = vadd.f32 %v4164, 0.0
      %4173 = vrot.lane.b32.xlu0 %v4137, 1
      %v4174 = vpop.permute.xlu0 %4173
      %4175 = vrot.lane.b32.xlu0 %v4138, 1
      %v4176 = vpop.permute.xlu0 %4175
      %4177 = vrot.lane.b32.xlu0 %v4139, 1
      %v4178 = vpop.permute.xlu0 %4177
      %4179 = vrot.lane.b32.xlu0 %v4140, 1
      %v4180 = vpop.permute.xlu0 %4179
      %4185 = vset.pattern.permute.xlu0 1
      %4186 = vperm.xlu0 %4185, %v527
      %v4187 = vpop.permute.xlu0 %4186
      %4189 = vset.pattern.permute.xlu0 1
      %4190 = vperm.xlu0 %4189, %v528
      %v4191 = vpop.permute.xlu0 %4190
      %4193 = vset.pattern.permute.xlu0 1
      %4194 = vperm.xlu0 %4193, %v529
      %v4195 = vpop.permute.xlu0 %4194
      %4197 = vset.pattern.permute.xlu0 1
      %4198 = vperm.xlu0 %4197, %v530
      %v4199 = vpop.permute.xlu0 %4198
      %v4201 = vmul.f32 %v4187, %v4174
      %v4202 = vmul.f32 %v4191, %v4176
      %v4203 = vmul.f32 %v4195, %v4178
      %v4204 = vmul.f32 %v4199, %v4180
      %v4205 = vadd.f32 %v4165, %v4201
      %v4206 = vadd.f32 %v4166, %v4202
      %v4207 = vadd.f32 %v4167, %v4203
      %v4208 = vadd.f32 %v4168, %v4204
      %4209 = vrot.lane.b32.xlu0 %v4137, 2
      %v4210 = vpop.permute.xlu0 %4209
      %4211 = vrot.lane.b32.xlu0 %v4138, 2
      %v4212 = vpop.permute.xlu0 %4211
      %4213 = vrot.lane.b32.xlu0 %v4139, 2
      %v4214 = vpop.permute.xlu0 %4213
      %4215 = vrot.lane.b32.xlu0 %v4140, 2
      %v4216 = vpop.permute.xlu0 %4215
      %4221 = vset.pattern.permute.xlu0 2
      %4222 = vperm.xlu0 %4221, %v527
      %v4223 = vpop.permute.xlu0 %4222
      %4225 = vset.pattern.permute.xlu0 2
      %4226 = vperm.xlu0 %4225, %v528
      %v4227 = vpop.permute.xlu0 %4226
      %4229 = vset.pattern.permute.xlu0 2
      %4230 = vperm.xlu0 %4229, %v529
      %v4231 = vpop.permute.xlu0 %4230
      %4233 = vset.pattern.permute.xlu0 2
      %4234 = vperm.xlu0 %4233, %v530
      %v4235 = vpop.permute.xlu0 %4234
      %v4237 = vmul.f32 %v4223, %v4210
      %v4238 = vmul.f32 %v4227, %v4212
      %v4239 = vmul.f32 %v4231, %v4214
      %v4240 = vmul.f32 %v4235, %v4216
      %v4241 = vadd.f32 %v4205, %v4237
      %v4242 = vadd.f32 %v4206, %v4238
      %v4243 = vadd.f32 %v4207, %v4239
      %v4244 = vadd.f32 %v4208, %v4240
      %4245 = vrot.lane.b32.xlu0 %v4137, 3
      %v4246 = vpop.permute.xlu0 %4245
      %4247 = vrot.lane.b32.xlu0 %v4138, 3
      %v4248 = vpop.permute.xlu0 %4247
      %4249 = vrot.lane.b32.xlu0 %v4139, 3
      %v4250 = vpop.permute.xlu0 %4249
      %4251 = vrot.lane.b32.xlu0 %v4140, 3
      %v4252 = vpop.permute.xlu0 %4251
      %4257 = vset.pattern.permute.xlu0 3
      %4258 = vperm.xlu0 %4257, %v527
      %v4259 = vpop.permute.xlu0 %4258
      %4261 = vset.pattern.permute.xlu0 3
      %4262 = vperm.xlu0 %4261, %v528
      %v4263 = vpop.permute.xlu0 %4262
      %4265 = vset.pattern.permute.xlu0 3
      %4266 = vperm.xlu0 %4265, %v529
      %v4267 = vpop.permute.xlu0 %4266
      %4269 = vset.pattern.permute.xlu0 3
      %4270 = vperm.xlu0 %4269, %v530
      %v4271 = vpop.permute.xlu0 %4270
      %v4273 = vmul.f32 %v4259, %v4246
      %v4274 = vmul.f32 %v4263, %v4248
      %v4275 = vmul.f32 %v4267, %v4250
      %v4276 = vmul.f32 %v4271, %v4252
      %v4277 = vadd.f32 %v4241, %v4273
      %v4278 = vadd.f32 %v4242, %v4274
      %v4279 = vadd.f32 %v4243, %v4275
      %v4280 = vadd.f32 %v4244, %v4276
      %4281 = vrot.lane.b32.xlu0 %v4137, 4
      %v4282 = vpop.permute.xlu0 %4281
      %4283 = vrot.lane.b32.xlu0 %v4138, 4
      %v4284 = vpop.permute.xlu0 %4283
      %4285 = vrot.lane.b32.xlu0 %v4139, 4
      %v4286 = vpop.permute.xlu0 %4285
      %4287 = vrot.lane.b32.xlu0 %v4140, 4
      %v4288 = vpop.permute.xlu0 %4287
      %4293 = vset.pattern.permute.xlu0 4
      %4294 = vperm.xlu0 %4293, %v527
      %v4295 = vpop.permute.xlu0 %4294
      %4297 = vset.pattern.permute.xlu0 4
      %4298 = vperm.xlu0 %4297, %v528
      %v4299 = vpop.permute.xlu0 %4298
      %4301 = vset.pattern.permute.xlu0 4
      %4302 = vperm.xlu0 %4301, %v529
      %v4303 = vpop.permute.xlu0 %4302
      %4305 = vset.pattern.permute.xlu0 4
      %4306 = vperm.xlu0 %4305, %v530
      %v4307 = vpop.permute.xlu0 %4306
      %v4309 = vmul.f32 %v4295, %v4282
      %v4310 = vmul.f32 %v4299, %v4284
      %v4311 = vmul.f32 %v4303, %v4286
      %v4312 = vmul.f32 %v4307, %v4288
      %v4313 = vadd.f32 %v4277, %v4309
      %v4314 = vadd.f32 %v4278, %v4310
      %v4315 = vadd.f32 %v4279, %v4311
      %v4316 = vadd.f32 %v4280, %v4312
      %4317 = vrot.lane.b32.xlu0 %v4137, 5
      %v4318 = vpop.permute.xlu0 %4317
      %4319 = vrot.lane.b32.xlu0 %v4138, 5
      %v4320 = vpop.permute.xlu0 %4319
      %4321 = vrot.lane.b32.xlu0 %v4139, 5
      %v4322 = vpop.permute.xlu0 %4321
      %4323 = vrot.lane.b32.xlu0 %v4140, 5
      %v4324 = vpop.permute.xlu0 %4323
      %4329 = vset.pattern.permute.xlu0 5
      %4330 = vperm.xlu0 %4329, %v527
      %v4331 = vpop.permute.xlu0 %4330
      %4333 = vset.pattern.permute.xlu0 5
      %4334 = vperm.xlu0 %4333, %v528
      %v4335 = vpop.permute.xlu0 %4334
      %4337 = vset.pattern.permute.xlu0 5
      %4338 = vperm.xlu0 %4337, %v529
      %v4339 = vpop.permute.xlu0 %4338
      %4341 = vset.pattern.permute.xlu0 5
      %4342 = vperm.xlu0 %4341, %v530
      %v4343 = vpop.permute.xlu0 %4342
      %v4345 = vmul.f32 %v4331, %v4318
      %v4346 = vmul.f32 %v4335, %v4320
      %v4347 = vmul.f32 %v4339, %v4322
      %v4348 = vmul.f32 %v4343, %v4324
      %v4349 = vadd.f32 %v4313, %v4345
      %v4350 = vadd.f32 %v4314, %v4346
      %v4351 = vadd.f32 %v4315, %v4347
      %v4352 = vadd.f32 %v4316, %v4348
      %4353 = vrot.lane.b32.xlu0 %v4137, 6
      %v4354 = vpop.permute.xlu0 %4353
      %4355 = vrot.lane.b32.xlu0 %v4138, 6
      %v4356 = vpop.permute.xlu0 %4355
      %4357 = vrot.lane.b32.xlu0 %v4139, 6
      %v4358 = vpop.permute.xlu0 %4357
      %4359 = vrot.lane.b32.xlu0 %v4140, 6
      %v4360 = vpop.permute.xlu0 %4359
      %4365 = vset.pattern.permute.xlu0 6
      %4366 = vperm.xlu0 %4365, %v527
      %v4367 = vpop.permute.xlu0 %4366
      %4369 = vset.pattern.permute.xlu0 6
      %4370 = vperm.xlu0 %4369, %v528
      %v4371 = vpop.permute.xlu0 %4370
      %4373 = vset.pattern.permute.xlu0 6
      %4374 = vperm.xlu0 %4373, %v529
      %v4375 = vpop.permute.xlu0 %4374
      %4377 = vset.pattern.permute.xlu0 6
      %4378 = vperm.xlu0 %4377, %v530
      %v4379 = vpop.permute.xlu0 %4378
      %v4381 = vmul.f32 %v4367, %v4354
      %v4382 = vmul.f32 %v4371, %v4356
      %v4383 = vmul.f32 %v4375, %v4358
      %v4384 = vmul.f32 %v4379, %v4360
      %v4385 = vadd.f32 %v4349, %v4381
      %v4386 = vadd.f32 %v4350, %v4382
      %v4387 = vadd.f32 %v4351, %v4383
      %v4388 = vadd.f32 %v4352, %v4384
      %4389 = vrot.lane.b32.xlu0 %v4137, 7
      %v4390 = vpop.permute.xlu0 %4389
      %4391 = vrot.lane.b32.xlu0 %v4138, 7
      %v4392 = vpop.permute.xlu0 %4391
      %4393 = vrot.lane.b32.xlu0 %v4139, 7
      %v4394 = vpop.permute.xlu0 %4393
      %4395 = vrot.lane.b32.xlu0 %v4140, 7
      %v4396 = vpop.permute.xlu0 %4395
      %4401 = vset.pattern.permute.xlu0 7
      %4402 = vperm.xlu0 %4401, %v527
      %v4403 = vpop.permute.xlu0 %4402
      %4405 = vset.pattern.permute.xlu0 7
      %4406 = vperm.xlu0 %4405, %v528
      %v4407 = vpop.permute.xlu0 %4406
      %4409 = vset.pattern.permute.xlu0 7
      %4410 = vperm.xlu0 %4409, %v529
      %v4411 = vpop.permute.xlu0 %4410
      %4413 = vset.pattern.permute.xlu0 7
      %4414 = vperm.xlu0 %4413, %v530
      %v4415 = vpop.permute.xlu0 %4414
      %v4417 = vmul.f32 %v4403, %v4390
      %v4418 = vmul.f32 %v4407, %v4392
      %v4419 = vmul.f32 %v4411, %v4394
      %v4420 = vmul.f32 %v4415, %v4396
      %v4421 = vadd.f32 %v4385, %v4417
      %v4422 = vadd.f32 %v4386, %v4418
      %v4423 = vadd.f32 %v4387, %v4419
      %v4424 = vadd.f32 %v4388, %v4420
      %4425 = vrot.lane.b32.xlu0 %v4137, 8
      %v4426 = vpop.permute.xlu0 %4425
      %4427 = vrot.lane.b32.xlu0 %v4138, 8
      %v4428 = vpop.permute.xlu0 %4427
      %4429 = vrot.lane.b32.xlu0 %v4139, 8
      %v4430 = vpop.permute.xlu0 %4429
      %4431 = vrot.lane.b32.xlu0 %v4140, 8
      %v4432 = vpop.permute.xlu0 %4431
      %4437 = vset.pattern.permute.xlu0 8
      %4438 = vperm.xlu0 %4437, %v527
      %v4439 = vpop.permute.xlu0 %4438
      %4441 = vset.pattern.permute.xlu0 8
      %4442 = vperm.xlu0 %4441, %v528
      %v4443 = vpop.permute.xlu0 %4442
      %4445 = vset.pattern.permute.xlu0 8
      %4446 = vperm.xlu0 %4445, %v529
      %v4447 = vpop.permute.xlu0 %4446
      %4449 = vset.pattern.permute.xlu0 8
      %4450 = vperm.xlu0 %4449, %v530
      %v4451 = vpop.permute.xlu0 %4450
      %v4453 = vmul.f32 %v4439, %v4426
      %v4454 = vmul.f32 %v4443, %v4428
      %v4455 = vmul.f32 %v4447, %v4430
      %v4456 = vmul.f32 %v4451, %v4432
      %v4457 = vadd.f32 %v4421, %v4453
      %v4458 = vadd.f32 %v4422, %v4454
      %v4459 = vadd.f32 %v4423, %v4455
      %v4460 = vadd.f32 %v4424, %v4456
      %4461 = vrot.lane.b32.xlu0 %v4137, 9
      %v4462 = vpop.permute.xlu0 %4461
      %4463 = vrot.lane.b32.xlu0 %v4138, 9
      %v4464 = vpop.permute.xlu0 %4463
      %4465 = vrot.lane.b32.xlu0 %v4139, 9
      %v4466 = vpop.permute.xlu0 %4465
      %4467 = vrot.lane.b32.xlu0 %v4140, 9
      %v4468 = vpop.permute.xlu0 %4467
      %4473 = vset.pattern.permute.xlu0 9
      %4474 = vperm.xlu0 %4473, %v527
      %v4475 = vpop.permute.xlu0 %4474
      %4477 = vset.pattern.permute.xlu0 9
      %4478 = vperm.xlu0 %4477, %v528
      %v4479 = vpop.permute.xlu0 %4478
      %4481 = vset.pattern.permute.xlu0 9
      %4482 = vperm.xlu0 %4481, %v529
      %v4483 = vpop.permute.xlu0 %4482
      %4485 = vset.pattern.permute.xlu0 9
      %4486 = vperm.xlu0 %4485, %v530
      %v4487 = vpop.permute.xlu0 %4486
      %v4489 = vmul.f32 %v4475, %v4462
      %v4490 = vmul.f32 %v4479, %v4464
      %v4491 = vmul.f32 %v4483, %v4466
      %v4492 = vmul.f32 %v4487, %v4468
      %v4493 = vadd.f32 %v4457, %v4489
      %v4494 = vadd.f32 %v4458, %v4490
      %v4495 = vadd.f32 %v4459, %v4491
      %v4496 = vadd.f32 %v4460, %v4492
      %4497 = vrot.lane.b32.xlu0 %v4137, 10
      %v4498 = vpop.permute.xlu0 %4497
      %4499 = vrot.lane.b32.xlu0 %v4138, 10
      %v4500 = vpop.permute.xlu0 %4499
      %4501 = vrot.lane.b32.xlu0 %v4139, 10
      %v4502 = vpop.permute.xlu0 %4501
      %4503 = vrot.lane.b32.xlu0 %v4140, 10
      %v4504 = vpop.permute.xlu0 %4503
      %4509 = vset.pattern.permute.xlu0 10
      %4510 = vperm.xlu0 %4509, %v527
      %v4511 = vpop.permute.xlu0 %4510
      %4513 = vset.pattern.permute.xlu0 10
      %4514 = vperm.xlu0 %4513, %v528
      %v4515 = vpop.permute.xlu0 %4514
      %4517 = vset.pattern.permute.xlu0 10
      %4518 = vperm.xlu0 %4517, %v529
      %v4519 = vpop.permute.xlu0 %4518
      %4521 = vset.pattern.permute.xlu0 10
      %4522 = vperm.xlu0 %4521, %v530
      %v4523 = vpop.permute.xlu0 %4522
      %v4525 = vmul.f32 %v4511, %v4498
      %v4526 = vmul.f32 %v4515, %v4500
      %v4527 = vmul.f32 %v4519, %v4502
      %v4528 = vmul.f32 %v4523, %v4504
      %v4529 = vadd.f32 %v4493, %v4525
      %v4530 = vadd.f32 %v4494, %v4526
      %v4531 = vadd.f32 %v4495, %v4527
      %v4532 = vadd.f32 %v4496, %v4528
      %4533 = vrot.lane.b32.xlu0 %v4137, 11
      %v4534 = vpop.permute.xlu0 %4533
      %4535 = vrot.lane.b32.xlu0 %v4138, 11
      %v4536 = vpop.permute.xlu0 %4535
      %4537 = vrot.lane.b32.xlu0 %v4139, 11
      %v4538 = vpop.permute.xlu0 %4537
      %4539 = vrot.lane.b32.xlu0 %v4140, 11
      %v4540 = vpop.permute.xlu0 %4539
      %4545 = vset.pattern.permute.xlu0 11
      %4546 = vperm.xlu0 %4545, %v527
      %v4547 = vpop.permute.xlu0 %4546
      %4549 = vset.pattern.permute.xlu0 11
      %4550 = vperm.xlu0 %4549, %v528
      %v4551 = vpop.permute.xlu0 %4550
      %4553 = vset.pattern.permute.xlu0 11
      %4554 = vperm.xlu0 %4553, %v529
      %v4555 = vpop.permute.xlu0 %4554
      %4557 = vset.pattern.permute.xlu0 11
      %4558 = vperm.xlu0 %4557, %v530
      %v4559 = vpop.permute.xlu0 %4558
      %v4561 = vmul.f32 %v4547, %v4534
      %v4562 = vmul.f32 %v4551, %v4536
      %v4563 = vmul.f32 %v4555, %v4538
      %v4564 = vmul.f32 %v4559, %v4540
      %v4565 = vadd.f32 %v4529, %v4561
      %v4566 = vadd.f32 %v4530, %v4562
      %v4567 = vadd.f32 %v4531, %v4563
      %v4568 = vadd.f32 %v4532, %v4564
      %4569 = vrot.lane.b32.xlu0 %v4137, 12
      %v4570 = vpop.permute.xlu0 %4569
      %4571 = vrot.lane.b32.xlu0 %v4138, 12
      %v4572 = vpop.permute.xlu0 %4571
      %4573 = vrot.lane.b32.xlu0 %v4139, 12
      %v4574 = vpop.permute.xlu0 %4573
      %4575 = vrot.lane.b32.xlu0 %v4140, 12
      %v4576 = vpop.permute.xlu0 %4575
      %4581 = vset.pattern.permute.xlu0 12
      %4582 = vperm.xlu0 %4581, %v527
      %v4583 = vpop.permute.xlu0 %4582
      %4585 = vset.pattern.permute.xlu0 12
      %4586 = vperm.xlu0 %4585, %v528
      %v4587 = vpop.permute.xlu0 %4586
      %4589 = vset.pattern.permute.xlu0 12
      %4590 = vperm.xlu0 %4589, %v529
      %v4591 = vpop.permute.xlu0 %4590
      %4593 = vset.pattern.permute.xlu0 12
      %4594 = vperm.xlu0 %4593, %v530
      %v4595 = vpop.permute.xlu0 %4594
      %v4597 = vmul.f32 %v4583, %v4570
      %v4598 = vmul.f32 %v4587, %v4572
      %v4599 = vmul.f32 %v4591, %v4574
      %v4600 = vmul.f32 %v4595, %v4576
      %v4601 = vadd.f32 %v4565, %v4597
      %v4602 = vadd.f32 %v4566, %v4598
      %v4603 = vadd.f32 %v4567, %v4599
      %v4604 = vadd.f32 %v4568, %v4600
      %4605 = vrot.lane.b32.xlu0 %v4137, 13
      %v4606 = vpop.permute.xlu0 %4605
      %4607 = vrot.lane.b32.xlu0 %v4138, 13
      %v4608 = vpop.permute.xlu0 %4607
      %4609 = vrot.lane.b32.xlu0 %v4139, 13
      %v4610 = vpop.permute.xlu0 %4609
      %4611 = vrot.lane.b32.xlu0 %v4140, 13
      %v4612 = vpop.permute.xlu0 %4611
      %4617 = vset.pattern.permute.xlu0 13
      %4618 = vperm.xlu0 %4617, %v527
      %v4619 = vpop.permute.xlu0 %4618
      %4621 = vset.pattern.permute.xlu0 13
      %4622 = vperm.xlu0 %4621, %v528
      %v4623 = vpop.permute.xlu0 %4622
      %4625 = vset.pattern.permute.xlu0 13
      %4626 = vperm.xlu0 %4625, %v529
      %v4627 = vpop.permute.xlu0 %4626
      %4629 = vset.pattern.permute.xlu0 13
      %4630 = vperm.xlu0 %4629, %v530
      %v4631 = vpop.permute.xlu0 %4630
      %v4633 = vmul.f32 %v4619, %v4606
      %v4634 = vmul.f32 %v4623, %v4608
      %v4635 = vmul.f32 %v4627, %v4610
      %v4636 = vmul.f32 %v4631, %v4612
      %v4637 = vadd.f32 %v4601, %v4633
      %v4638 = vadd.f32 %v4602, %v4634
      %v4639 = vadd.f32 %v4603, %v4635
      %v4640 = vadd.f32 %v4604, %v4636
      %4641 = vrot.lane.b32.xlu0 %v4137, 14
      %v4642 = vpop.permute.xlu0 %4641
      %4643 = vrot.lane.b32.xlu0 %v4138, 14
      %v4644 = vpop.permute.xlu0 %4643
      %4645 = vrot.lane.b32.xlu0 %v4139, 14
      %v4646 = vpop.permute.xlu0 %4645
      %4647 = vrot.lane.b32.xlu0 %v4140, 14
      %v4648 = vpop.permute.xlu0 %4647
      %4653 = vset.pattern.permute.xlu0 14
      %4654 = vperm.xlu0 %4653, %v527
      %v4655 = vpop.permute.xlu0 %4654
      %4657 = vset.pattern.permute.xlu0 14
      %4658 = vperm.xlu0 %4657, %v528
      %v4659 = vpop.permute.xlu0 %4658
      %4661 = vset.pattern.permute.xlu0 14
      %4662 = vperm.xlu0 %4661, %v529
      %v4663 = vpop.permute.xlu0 %4662
      %4665 = vset.pattern.permute.xlu0 14
      %4666 = vperm.xlu0 %4665, %v530
      %v4667 = vpop.permute.xlu0 %4666
      %v4669 = vmul.f32 %v4655, %v4642
      %v4670 = vmul.f32 %v4659, %v4644
      %v4671 = vmul.f32 %v4663, %v4646
      %v4672 = vmul.f32 %v4667, %v4648
      %v4673 = vadd.f32 %v4637, %v4669
      %v4674 = vadd.f32 %v4638, %v4670
      %v4675 = vadd.f32 %v4639, %v4671
      %v4676 = vadd.f32 %v4640, %v4672
      %4677 = vrot.lane.b32.xlu0 %v4137, 15
      %v4678 = vpop.permute.xlu0 %4677
      %4679 = vrot.lane.b32.xlu0 %v4138, 15
      %v4680 = vpop.permute.xlu0 %4679
      %4681 = vrot.lane.b32.xlu0 %v4139, 15
      %v4682 = vpop.permute.xlu0 %4681
      %4683 = vrot.lane.b32.xlu0 %v4140, 15
      %v4684 = vpop.permute.xlu0 %4683
      %4689 = vset.pattern.permute.xlu0 15
      %4690 = vperm.xlu0 %4689, %v527
      %v4691 = vpop.permute.xlu0 %4690
      %4693 = vset.pattern.permute.xlu0 15
      %4694 = vperm.xlu0 %4693, %v528
      %v4695 = vpop.permute.xlu0 %4694
      %4697 = vset.pattern.permute.xlu0 15
      %4698 = vperm.xlu0 %4697, %v529
      %v4699 = vpop.permute.xlu0 %4698
      %4701 = vset.pattern.permute.xlu0 15
      %4702 = vperm.xlu0 %4701, %v530
      %v4703 = vpop.permute.xlu0 %4702
      %v4705 = vmul.f32 %v4691, %v4678
      %v4706 = vmul.f32 %v4695, %v4680
      %v4707 = vmul.f32 %v4699, %v4682
      %v4708 = vmul.f32 %v4703, %v4684
      %v4709 = vadd.f32 %v4673, %v4705
      %v4710 = vadd.f32 %v4674, %v4706
      %v4711 = vadd.f32 %v4675, %v4707
      %v4712 = vadd.f32 %v4676, %v4708
      %4713 = vrot.lane.b32.xlu0 %v4137, 16
      %v4714 = vpop.permute.xlu0 %4713
      %4715 = vrot.lane.b32.xlu0 %v4138, 16
      %v4716 = vpop.permute.xlu0 %4715
      %4717 = vrot.lane.b32.xlu0 %v4139, 16
      %v4718 = vpop.permute.xlu0 %4717
      %4719 = vrot.lane.b32.xlu0 %v4140, 16
      %v4720 = vpop.permute.xlu0 %4719
      %4725 = vset.pattern.permute.xlu0 16
      %4726 = vperm.xlu0 %4725, %v527
      %v4727 = vpop.permute.xlu0 %4726
      %4729 = vset.pattern.permute.xlu0 16
      %4730 = vperm.xlu0 %4729, %v528
      %v4731 = vpop.permute.xlu0 %4730
      %4733 = vset.pattern.permute.xlu0 16
      %4734 = vperm.xlu0 %4733, %v529
      %v4735 = vpop.permute.xlu0 %4734
      %4737 = vset.pattern.permute.xlu0 16
      %4738 = vperm.xlu0 %4737, %v530
      %v4739 = vpop.permute.xlu0 %4738
      %v4741 = vmul.f32 %v4727, %v4714
      %v4742 = vmul.f32 %v4731, %v4716
      %v4743 = vmul.f32 %v4735, %v4718
      %v4744 = vmul.f32 %v4739, %v4720
      %v4745 = vadd.f32 %v4709, %v4741
      %v4746 = vadd.f32 %v4710, %v4742
      %v4747 = vadd.f32 %v4711, %v4743
      %v4748 = vadd.f32 %v4712, %v4744
      %4749 = vrot.lane.b32.xlu0 %v4137, 17
      %v4750 = vpop.permute.xlu0 %4749
      %4751 = vrot.lane.b32.xlu0 %v4138, 17
      %v4752 = vpop.permute.xlu0 %4751
      %4753 = vrot.lane.b32.xlu0 %v4139, 17
      %v4754 = vpop.permute.xlu0 %4753
      %4755 = vrot.lane.b32.xlu0 %v4140, 17
      %v4756 = vpop.permute.xlu0 %4755
      %4761 = vset.pattern.permute.xlu0 17
      %4762 = vperm.xlu0 %4761, %v527
      %v4763 = vpop.permute.xlu0 %4762
      %4765 = vset.pattern.permute.xlu0 17
      %4766 = vperm.xlu0 %4765, %v528
      %v4767 = vpop.permute.xlu0 %4766
      %4769 = vset.pattern.permute.xlu0 17
      %4770 = vperm.xlu0 %4769, %v529
      %v4771 = vpop.permute.xlu0 %4770
      %4773 = vset.pattern.permute.xlu0 17
      %4774 = vperm.xlu0 %4773, %v530
      %v4775 = vpop.permute.xlu0 %4774
      %v4777 = vmul.f32 %v4763, %v4750
      %v4778 = vmul.f32 %v4767, %v4752
      %v4779 = vmul.f32 %v4771, %v4754
      %v4780 = vmul.f32 %v4775, %v4756
      %v4781 = vadd.f32 %v4745, %v4777
      %v4782 = vadd.f32 %v4746, %v4778
      %v4783 = vadd.f32 %v4747, %v4779
      %v4784 = vadd.f32 %v4748, %v4780
      %4785 = vrot.lane.b32.xlu0 %v4137, 18
      %v4786 = vpop.permute.xlu0 %4785
      %4787 = vrot.lane.b32.xlu0 %v4138, 18
      %v4788 = vpop.permute.xlu0 %4787
      %4789 = vrot.lane.b32.xlu0 %v4139, 18
      %v4790 = vpop.permute.xlu0 %4789
      %4791 = vrot.lane.b32.xlu0 %v4140, 18
      %v4792 = vpop.permute.xlu0 %4791
      %4797 = vset.pattern.permute.xlu0 18
      %4798 = vperm.xlu0 %4797, %v527
      %v4799 = vpop.permute.xlu0 %4798
      %4801 = vset.pattern.permute.xlu0 18
      %4802 = vperm.xlu0 %4801, %v528
      %v4803 = vpop.permute.xlu0 %4802
      %4805 = vset.pattern.permute.xlu0 18
      %4806 = vperm.xlu0 %4805, %v529
      %v4807 = vpop.permute.xlu0 %4806
      %4809 = vset.pattern.permute.xlu0 18
      %4810 = vperm.xlu0 %4809, %v530
      %v4811 = vpop.permute.xlu0 %4810
      %v4813 = vmul.f32 %v4799, %v4786
      %v4814 = vmul.f32 %v4803, %v4788
      %v4815 = vmul.f32 %v4807, %v4790
      %v4816 = vmul.f32 %v4811, %v4792
      %v4817 = vadd.f32 %v4781, %v4813
      %v4818 = vadd.f32 %v4782, %v4814
      %v4819 = vadd.f32 %v4783, %v4815
      %v4820 = vadd.f32 %v4784, %v4816
      %4821 = vrot.lane.b32.xlu0 %v4137, 19
      %v4822 = vpop.permute.xlu0 %4821
      %4823 = vrot.lane.b32.xlu0 %v4138, 19
      %v4824 = vpop.permute.xlu0 %4823
      %4825 = vrot.lane.b32.xlu0 %v4139, 19
      %v4826 = vpop.permute.xlu0 %4825
      %4827 = vrot.lane.b32.xlu0 %v4140, 19
      %v4828 = vpop.permute.xlu0 %4827
      %4833 = vset.pattern.permute.xlu0 19
      %4834 = vperm.xlu0 %4833, %v527
      %v4835 = vpop.permute.xlu0 %4834
      %4837 = vset.pattern.permute.xlu0 19
      %4838 = vperm.xlu0 %4837, %v528
      %v4839 = vpop.permute.xlu0 %4838
      %4841 = vset.pattern.permute.xlu0 19
      %4842 = vperm.xlu0 %4841, %v529
      %v4843 = vpop.permute.xlu0 %4842
      %4845 = vset.pattern.permute.xlu0 19
      %4846 = vperm.xlu0 %4845, %v530
      %v4847 = vpop.permute.xlu0 %4846
      %v4849 = vmul.f32 %v4835, %v4822
      %v4850 = vmul.f32 %v4839, %v4824
      %v4851 = vmul.f32 %v4843, %v4826
      %v4852 = vmul.f32 %v4847, %v4828
      %v4853 = vadd.f32 %v4817, %v4849
      %v4854 = vadd.f32 %v4818, %v4850
      %v4855 = vadd.f32 %v4819, %v4851
      %v4856 = vadd.f32 %v4820, %v4852
      %v4857 = vadd.f32 %v4853, %v4854
      %v4858 = vadd.f32 %v4857, %v4855
      %v4859 = vadd.f32 %v4858, %v4856
      %v4860 = vrot.slane %v4859, 4
      %v4861 = vadd.f32 %v4859, %v4860
      %v4862 = vrot.slane %v4861, 2
      %v4863 = vadd.f32 %v4861, %v4862
      %v4864 = vrot.slane %v4863, 1
      %v4865 = vadd.f32 %v4863, %v4864
      %4867 = vset.pattern.permute.xlu0 0
      %4868 = vperm.xlu0 %4867, %v531
      %v4869 = vpop.permute.xlu0 %4868
      %v4871 = vperm.slane %v4869, 0
      %v4872 = vadd.f32 %v4865, %v4871
      %4873 = vst [vmem:[%s503] sm:$0x1] %v4872
      %p4874 = scmp.lt.s32.totalorder %s21, 1
      %s4875 = scalar_select %p4874, %s21, 1
      %s4876 = scalar_lea.vmem %s10, %s4875
      // Predicated region
      $region61: #{model_forward.1} parent=59 // pred_check
        %p4877 = pneg %p294
      $region62: #{model_forward.1} parent=59 // pred_check_branch
        %4879 = sbr.rel (%p4877) target = $region64
      $region63: #{model_forward.1} parent=59 // pred_region
        _
      $region64: #{model_forward.1} parent=59 // pred_fallthru
        _
    $region60: #{model_forward.1} parent=5 // pred_fallthru
      _
    %p4880 = scmp.le.s32.totalorder 2, %s16
    // Predicated region
    $region65: #{model_forward.1} parent=5 // pred_check
      %p4881 = pneg %p4880
    $region66: #{model_forward.1} parent=5 // pred_check_branch
      %4883 = sbr.rel (%p4881) target = $region68
    $region67: #{model_forward.1} parent=5 // pred_region
      %s4884 = ssub.s32 %s16, 2
      // Predicated region
      $region69: #{model_forward.1} parent=67 // pred_check
        %p4885 = pneg %p300
      $region70: #{model_forward.1} parent=67 // pred_check_branch
        %4887 = sbr.rel (%p4885) target = $region72
      $region71: #{model_forward.1} parent=67 // pred_region
        %p4888 = scmp.lt.s32.totalorder %s22, 1
        %s4889 = scalar_select %p4888, %s22, 1
        %s4890 = scalar_lea.vmem %s10, %s4889
      $region72: #{model_forward.1} parent=67 // pred_fallthru
        _
    $region68: #{model_forward.1} parent=5 // pred_fallthru
      _
  $region6: #{model_forward.1} parent=0 // loop_footer
    %s20 = sadd.s32 1, %s16
  $region7: #{model_forward.1} parent=0 // loop_footer_branch
    %15 = sbr.rel target = $region3
  $region8: #{model_forward.1} parent=0 // loop_exit
    _

</llo_original>
